<compile_context>
chip_gen: v6e
topology: v6e:2x2x1
jax: 0.10.0
libtpu: 0.0.40
codegen_flags: <defaults>
</compile_context>

<pallas_src>
import functools

import jax
import jax.numpy as jnp
from jax import lax
from jax.experimental import pallas as pl
from jax.experimental.pallas import tpu as pltpu


# --------------------------------------------------------------------------- #
# Kernel variants.  All see:
#   x_ref: (tc, r2, TH, W)      grouped source channels
#   o_ref: (tc, TH, r2*W)       flat output: o[c, h, i*(W*rx) + w*rx + j]
# --------------------------------------------------------------------------- #
def _kernel_strided(x_ref, o_ref, *, ry, rx):
    # rx lane-strided stores per row phase: no interleave arithmetic at all.
    W = x_ref.shape[-1]
    Wo = W * rx
    for i in range(ry):                               # ry, rx tiny -> static unroll
        for j in range(rx):
            o_ref[:, :, pl.ds(i * Wo + j, W, stride=rx)] = x_ref[:, i * rx + j, :, :]


def _kernel_select(x_ref, o_ref, *, ry, rx):
    # Lane-repeat + phase-select; masks hoisted out of all loops (no per-channel
    # / per-phase recompute -- JAX does not CSE the compares).
    _, _, TH, W = x_ref.shape
    Wo = W * rx
    lane_phase = lax.broadcasted_iota(jnp.int32, (TH, Wo), 1) % rx
    masks = [lane_phase == j for j in range(1, rx)]
    for i in range(ry):
        acc = jnp.repeat(x_ref[:, i * rx, :, :], rx, axis=-1)        # (tc, TH, Wo)
        for j in range(1, rx):
            up = jnp.repeat(x_ref[:, i * rx + j, :, :], rx, axis=-1)
            acc = jnp.where(masks[j - 1], up, acc)
        o_ref[:, :, pl.ds(i * Wo, Wo)] = acc


def _kernel_narrow(x_ref, o_ref, *, ry, rx):
    # Compatibility fallback: per-column 1-lane slice copies.  Always lowers,
    # but O(W) tiny stores per block -- only acceptable for small feature maps.
    W = x_ref.shape[-1]
    Wo = W * rx
    for i in range(ry):
        for j in range(rx):
            base = i * Wo + j
            for w in range(W):
                k = base + w * rx
                o_ref[:, :, k:k + 1] = x_ref[:, i * rx + j, :, w:w + 1]


_KERNELS = {
    "strided": _kernel_strided,
    "select": _kernel_select,
    "narrow": _kernel_narrow,
}


# --------------------------------------------------------------------------- #
# Tiling / VMEM heuristics.
# --------------------------------------------------------------------------- #
def _divisors(n):
    return [d for d in range(1, n + 1) if n % d == 0]


def _choose_tiles(B, C_out, H, W, r2, itemsize,
                  target_block_bytes=2 * 1024 * 1024,
                  min_block_bytes=256 * 1024,
                  min_steps=8):
    """Pick (tc, th): channel-group and H-tile sizes (th multiple of 8 or full H)."""
    row_bytes = r2 * W * itemsize                      # one grouped input row == one output row

    th_cands = sorted({d for d in _divisors(H) if d % 8 == 0} | {H})
    fitting = [d for d in th_cands if d * row_bytes <= target_block_bytes]
    th = max(fitting) if fitting else min(th_cands)

    tc_cands = [d for d in _divisors(C_out) if d * th * row_bytes <= target_block_bytes] or [1]
    tc = max(tc_cands)

    def steps():
        return B * (C_out // tc) * (H // th)

    def block_bytes():
        return tc * th * row_bytes

    # Prefer >= min_steps grid steps (keeps both v7x TensorCores busy with >=2
    # double-buffered steps each), but never fragment below min_block_bytes:
    # 1-2 MiB blocks already reach ~85% of the HBM streaming roofline.
    while steps() < min_steps and block_bytes() > min_block_bytes:
        smaller_tc = [d for d in tc_cands if d < tc]
        if smaller_tc and tc > 1:
            tc = max(smaller_tc)
            continue
        smaller_th = [d for d in th_cands if d < th]
        if smaller_th:
            th = max(smaller_th)
            continue
        break
    return tc, th


def _vmem_limit(block_bytes):
    # in + out blocks double-buffered (~4x block) + interleave temporaries (~2-3x).
    want = max(32 * 1024 * 1024, 8 * block_bytes)          # v5e default is only 16 MiB
    try:
        phys = pltpu.get_tpu_info().vmem_capacity_bytes     # 64 MiB on v7x, 128 MiB on v5e/v6e
    except Exception:
        phys = 64 * 1024 * 1024                             # v7x-safe fallback
    return int(min(want, phys - 8 * 1024 * 1024))           # ~8 MiB headroom


# --------------------------------------------------------------------------- #
# pallas_call builder + public wrapper.
# --------------------------------------------------------------------------- #
def _make_call(variant, B, C_out, r2, H, W, dtype, ry, rx, tc, th, vmem_limit):
    kernel = functools.partial(_KERNELS[variant], ry=ry, rx=rx)
    itemsize = jnp.dtype(dtype).itemsize
    return pl.pallas_call(
        kernel,
        out_shape=jax.ShapeDtypeStruct((B, C_out, H, r2 * W), dtype),
        grid=(B, C_out // tc, H // th),
        in_specs=[
            pl.BlockSpec((pl.Squeezed(), tc, r2, th, W),
                         lambda b, c, h: (b, c, 0, h, 0)),
        ],
        out_specs=pl.BlockSpec((pl.Squeezed(), tc, th, r2 * W),
                               lambda b, c, h: (b, c, h, 0)),
        compiler_params=pltpu.CompilerParams(
            dimension_semantics=("parallel", "parallel", "parallel"),
            vmem_limit_bytes=vmem_limit,
        ),
        cost_estimate=pl.CostEstimate(
            flops=0,
            transcendentals=0,
            bytes_accessed=2 * B * C_out * r2 * H * W * itemsize,
        ),
    )


def pixel_shuffle(x, ry=2, rx=2):
    B, C, H, W = x.shape
    r2 = ry * rx
    if C % r2 != 0:
        raise ValueError("C must be divisible by ry*rx")
    C_out = C // r2
    itemsize = jnp.dtype(x.dtype).itemsize

    tc, th = _choose_tiles(B, C_out, H, W, r2, itemsize)
    vmem_limit = _vmem_limit(tc * r2 * th * W * itemsize)

    # Free row-major view: group the r2 source channels of each output channel
    # (matches PyTorch's reshape(B, C//(ry*rx), ry, rx, H, W) ordering).
    x_grouped = x.reshape(B, C_out, r2, H, W)

    out_flat = None
    last_err = None
    for variant in ("strided", "select", "narrow"):
        try:
            call = _make_call(variant, B, C_out, r2, H, W, x.dtype,
                              ry, rx, tc, th, vmem_limit)
            out_flat = jax.block_until_ready(call(x_grouped))
            break
        except Exception as err:   # lowering / fit failure on this toolchain -> next variant
            last_err = err
            out_flat = None
    if out_flat is None:
        raise last_err

    # (B, C_out, H, ry*W*rx) -> (B, C_out, H*ry, W*rx): free row-major view.
    return out_flat.reshape(B, C_out, H * ry, W * rx)


def pixel_shuffle_ref(x, ry=2, rx=2):
    # Pure-JAX reference mirroring the PyTorch forward exactly.
    B, C, H, W = x.shape
    y = x.reshape(B, C // (ry * rx), ry, rx, H, W)
    y = jnp.transpose(y, (0, 1, 4, 2, 5, 3))
    return y.reshape(B, C // (ry * rx), H * ry, W * rx)


if __name__ == "__main__":
    key = jax.random.PRNGKey(0)
    ry, rx = 2, 2
    # B=2, C=4 (= ry*rx * 1 output channel), H=W=16
    x = jax.random.normal(key, (2, 4, 16, 16), dtype=jnp.float32)

    out = pixel_shuffle(x, ry=ry, rx=rx)
    out = jax.block_until_ready(out)

    ref = pixel_shuffle_ref(x, ry=ry, rx=rx)
    assert out.shape == ref.shape, (out.shape, ref.shape)
    assert out.dtype == ref.dtype, (out.dtype, ref.dtype)
    assert jnp.array_equal(out, ref), "Pallas PixelShuffle mismatch vs reference"

    print("KERNEL_OK")
</pallas_src>

<mosaic_0001>
module attributes {stable_mosaic.version = 11 : i64} {
  func.func @_kernel_strided(%arg0: i32, %arg1: i32, %arg2: i32, %arg3: memref<1x1x4x16x16xf32, #tpu.memory_space<vmem>>, %arg4: memref<1x1x16x64xf32, #tpu.memory_space<vmem>>) attributes {dimension_semantics = [#tpu.dimension_semantics<parallel>, #tpu.dimension_semantics<parallel>, #tpu.dimension_semantics<parallel>], iteration_bounds = array<i64: 2, 1, 1>, scalar_prefetch = 0 : i64, scratch_operands = 0 : i64, tpu.core_type = #tpu.core_type<tc>, window_params = [{transform_indices = @transform_0, window_bounds = array<i64: 1, 1, 4, 16, 16>}, {transform_indices = @transform_1, window_bounds = array<i64: 1, 1, 16, 64>}]} {
    %c0 = arith.constant 0 : index
    %c0_0 = arith.constant 0 : index
    %c0_1 = arith.constant 0 : index
    %c0_2 = arith.constant 0 : index
    %c0_3 = arith.constant 0 : index
    %0 = vector.load %arg3[%c0, %c0_0, %c0_1, %c0_2, %c0_3] : memref<1x1x4x16x16xf32, #tpu.memory_space<vmem>>, vector<1x1x1x16x16xf32>
    %1 = vector.shape_cast %0 : vector<1x1x1x16x16xf32> to vector<1x16x16xf32>
    %c0_4 = arith.constant 0 : index
    %c0_5 = arith.constant 0 : index
    %c0_6 = arith.constant 0 : index
    %c0_7 = arith.constant 0 : index
    %2 = tpu.strided_load %arg4[%c0_4, %c0_5, %c0_6, %c0_7] {strides = array<i32: 1, 1, 1, 2>} : memref<1x1x16x64xf32, #tpu.memory_space<vmem>>, vector<1x1x16x16xf32>
    %3 = vector.shape_cast %2 : vector<1x1x16x16xf32> to vector<1x16x16xf32>
    %4 = vector.shape_cast %1 : vector<1x16x16xf32> to vector<1x1x16x16xf32>
    tpu.strided_store %arg4[%c0_4, %c0_5, %c0_6, %c0_7], %4 {strides = array<i32: 1, 1, 1, 2>} : memref<1x1x16x64xf32, #tpu.memory_space<vmem>>, vector<1x1x16x16xf32>
    %c0_8 = arith.constant 0 : index
    %c0_9 = arith.constant 0 : index
    %c1 = arith.constant 1 : index
    %c0_10 = arith.constant 0 : index
    %c0_11 = arith.constant 0 : index
    %5 = vector.load %arg3[%c0_8, %c0_9, %c1, %c0_10, %c0_11] : memref<1x1x4x16x16xf32, #tpu.memory_space<vmem>>, vector<1x1x1x16x16xf32>
    %6 = vector.shape_cast %5 : vector<1x1x1x16x16xf32> to vector<1x16x16xf32>
    %c0_12 = arith.constant 0 : index
    %c0_13 = arith.constant 0 : index
    %c0_14 = arith.constant 0 : index
    %c1_15 = arith.constant 1 : index
    %7 = tpu.strided_load %arg4[%c0_12, %c0_13, %c0_14, %c1_15] {strides = array<i32: 1, 1, 1, 2>} : memref<1x1x16x64xf32, #tpu.memory_space<vmem>>, vector<1x1x16x16xf32>
    %8 = vector.shape_cast %7 : vector<1x1x16x16xf32> to vector<1x16x16xf32>
    %9 = vector.shape_cast %6 : vector<1x16x16xf32> to vector<1x1x16x16xf32>
    tpu.strided_store %arg4[%c0_12, %c0_13, %c0_14, %c1_15], %9 {strides = array<i32: 1, 1, 1, 2>} : memref<1x1x16x64xf32, #tpu.memory_space<vmem>>, vector<1x1x16x16xf32>
    %c0_16 = arith.constant 0 : index
    %c0_17 = arith.constant 0 : index
    %c2 = arith.constant 2 : index
    %c0_18 = arith.constant 0 : index
    %c0_19 = arith.constant 0 : index
    %10 = vector.load %arg3[%c0_16, %c0_17, %c2, %c0_18, %c0_19] : memref<1x1x4x16x16xf32, #tpu.memory_space<vmem>>, vector<1x1x1x16x16xf32>
    %11 = vector.shape_cast %10 : vector<1x1x1x16x16xf32> to vector<1x16x16xf32>
    %c0_20 = arith.constant 0 : index
    %c0_21 = arith.constant 0 : index
    %c0_22 = arith.constant 0 : index
    %c32 = arith.constant 32 : index
    %12 = tpu.strided_load %arg4[%c0_20, %c0_21, %c0_22, %c32] {strides = array<i32: 1, 1, 1, 2>} : memref<1x1x16x64xf32, #tpu.memory_space<vmem>>, vector<1x1x16x16xf32>
    %13 = vector.shape_cast %12 : vector<1x1x16x16xf32> to vector<1x16x16xf32>
    %14 = vector.shape_cast %11 : vector<1x16x16xf32> to vector<1x1x16x16xf32>
    tpu.strided_store %arg4[%c0_20, %c0_21, %c0_22, %c32], %14 {strides = array<i32: 1, 1, 1, 2>} : memref<1x1x16x64xf32, #tpu.memory_space<vmem>>, vector<1x1x16x16xf32>
    %c0_23 = arith.constant 0 : index
    %c0_24 = arith.constant 0 : index
    %c3 = arith.constant 3 : index
    %c0_25 = arith.constant 0 : index
    %c0_26 = arith.constant 0 : index
    %15 = vector.load %arg3[%c0_23, %c0_24, %c3, %c0_25, %c0_26] : memref<1x1x4x16x16xf32, #tpu.memory_space<vmem>>, vector<1x1x1x16x16xf32>
    %16 = vector.shape_cast %15 : vector<1x1x1x16x16xf32> to vector<1x16x16xf32>
    %c0_27 = arith.constant 0 : index
    %c0_28 = arith.constant 0 : index
    %c0_29 = arith.constant 0 : index
    %c33 = arith.constant 33 : index
    %17 = tpu.strided_load %arg4[%c0_27, %c0_28, %c0_29, %c33] {strides = array<i32: 1, 1, 1, 2>} : memref<1x1x16x64xf32, #tpu.memory_space<vmem>>, vector<1x1x16x16xf32>
    %18 = vector.shape_cast %17 : vector<1x1x16x16xf32> to vector<1x16x16xf32>
    %19 = vector.shape_cast %16 : vector<1x16x16xf32> to vector<1x1x16x16xf32>
    tpu.strided_store %arg4[%c0_27, %c0_28, %c0_29, %c33], %19 {strides = array<i32: 1, 1, 1, 2>} : memref<1x1x16x64xf32, #tpu.memory_space<vmem>>, vector<1x1x16x16xf32>
    return
  }
  func.func @transform_0(%arg0: i32, %arg1: i32, %arg2: i32) -> (i32, i32, i32, i32, i32) {
    %c0_i32 = arith.constant 0 : i32
    %c0_i32_0 = arith.constant 0 : i32
    %c0_i32_1 = arith.constant 0 : i32
    return %arg0, %arg1, %c0_i32, %arg2, %c0_i32_0 : i32, i32, i32, i32, i32
  }
  func.func @transform_1(%arg0: i32, %arg1: i32, %arg2: i32) -> (i32, i32, i32, i32) {
    %c0_i32 = arith.constant 0 : i32
    %c0_i32_0 = arith.constant 0 : i32
    return %arg0, %arg1, %arg2, %c0_i32 : i32, i32, i32, i32
  }
}

module attributes {stable_mosaic.version = 11 : i64} {
  func.func @_kernel_select(%arg0: i32, %arg1: i32, %arg2: i32, %arg3: memref<1x1x4x16x16xf32, #tpu.memory_space<vmem>>, %arg4: memref<1x1x16x64xf32, #tpu.memory_space<vmem>>) attributes {dimension_semantics = [#tpu.dimension_semantics<parallel>, #tpu.dimension_semantics<parallel>, #tpu.dimension_semantics<parallel>], iteration_bounds = array<i64: 2, 1, 1>, scalar_prefetch = 0 : i64, scratch_operands = 0 : i64, tpu.core_type = #tpu.core_type<tc>, window_params = [{transform_indices = @transform_0, window_bounds = array<i64: 1, 1, 4, 16, 16>}, {transform_indices = @transform_1, window_bounds = array<i64: 1, 1, 16, 64>}]} {
    %0 = tpu.iota {dimensions = array<i32: 1>} : vector<16x32xi32>
    %c2_i32 = arith.constant 2 : i32
    %c0_i32 = arith.constant 0 : i32
    %1 = arith.cmpi eq, %c2_i32, %c0_i32 : i32
    %c1_i32 = arith.constant 1 : i32
    %2 = arith.select %1, %c1_i32, %c2_i32 : i32
    %3 = vector.broadcast %2 : i32 to vector<16x32xi32>
    %4 = arith.remsi %0, %3 : vector<16x32xi32>
    %c0_i32_0 = arith.constant 0 : i32
    %5 = vector.broadcast %c0_i32_0 : i32 to vector<16x32xi32>
    %6 = arith.cmpi ne, %4, %5 : vector<16x32xi32>
    %c0_i32_1 = arith.constant 0 : i32
    %7 = vector.broadcast %c0_i32_1 : i32 to vector<16x32xi32>
    %8 = arith.cmpi slt, %4, %7 : vector<16x32xi32>
    %c0_i32_2 = arith.constant 0 : i32
    %9 = arith.cmpi slt, %2, %c0_i32_2 : i32
    %10 = vector.broadcast %9 : i1 to vector<16x32xi1>
    %11 = vector.broadcast %10 : vector<16x32xi1> to vector<16x32xi1>
    %12 = arith.xori %8, %11 : vector<16x32xi1>
    %13 = arith.andi %12, %6 : vector<16x32xi1>
    %14 = vector.broadcast %2 : i32 to vector<16x32xi32>
    %15 = arith.addi %4, %14 : vector<16x32xi32>
    %16 = arith.select %13, %15, %4 : vector<16x32xi1>, vector<16x32xi32>
    %c1_i32_3 = arith.constant 1 : i32
    %17 = vector.broadcast %c1_i32_3 : i32 to vector<16x32xi32>
    %18 = arith.cmpi eq, %16, %17 : vector<16x32xi32>
    %c0 = arith.constant 0 : index
    %c0_4 = arith.constant 0 : index
    %c0_5 = arith.constant 0 : index
    %c0_6 = arith.constant 0 : index
    %c0_7 = arith.constant 0 : index
    %19 = vector.load %arg3[%c0, %c0_4, %c0_5, %c0_6, %c0_7] : memref<1x1x4x16x16xf32, #tpu.memory_space<vmem>>, vector<1x1x1x16x16xf32>
    %20 = vector.shape_cast %19 : vector<1x1x1x16x16xf32> to vector<1x16x16xf32>
    %21 = vector.shape_cast %20 : vector<1x16x16xf32> to vector<1x16x16x1xf32>
    %22 = vector.broadcast %21 : vector<1x16x16x1xf32> to vector<1x16x16x2xf32>
    %23 = vector.shape_cast %22 : vector<1x16x16x2xf32> to vector<1x16x32xf32>
    %c0_8 = arith.constant 0 : index
    %c0_9 = arith.constant 0 : index
    %c1 = arith.constant 1 : index
    %c0_10 = arith.constant 0 : index
    %c0_11 = arith.constant 0 : index
    %24 = vector.load %arg3[%c0_8, %c0_9, %c1, %c0_10, %c0_11] : memref<1x1x4x16x16xf32, #tpu.memory_space<vmem>>, vector<1x1x1x16x16xf32>
    %25 = vector.shape_cast %24 : vector<1x1x1x16x16xf32> to vector<1x16x16xf32>
    %26 = vector.shape_cast %25 : vector<1x16x16xf32> to vector<1x16x16x1xf32>
    %27 = vector.broadcast %26 : vector<1x16x16x1xf32> to vector<1x16x16x2xf32>
    %28 = vector.shape_cast %27 : vector<1x16x16x2xf32> to vector<1x16x32xf32>
    %29 = vector.shape_cast %18 : vector<16x32xi1> to vector<1x16x32xi1>
    %30 = arith.select %29, %28, %23 : vector<1x16x32xi1>, vector<1x16x32xf32>
    %c0_12 = arith.constant 0 : index
    %c0_13 = arith.constant 0 : index
    %c0_14 = arith.constant 0 : index
    %c0_15 = arith.constant 0 : index
    %31 = vector.load %arg4[%c0_12, %c0_13, %c0_14, %c0_15] : memref<1x1x16x64xf32, #tpu.memory_space<vmem>>, vector<1x1x16x32xf32>
    %32 = vector.shape_cast %31 : vector<1x1x16x32xf32> to vector<1x16x32xf32>
    %33 = vector.shape_cast %30 : vector<1x16x32xf32> to vector<1x1x16x32xf32>
    tpu.vector_store %arg4[%c0_12, %c0_13, %c0_14, %c0_15], %33 {strides = array<i32>} : memref<1x1x16x64xf32, #tpu.memory_space<vmem>>, vector<1x1x16x32xf32>,
    %c0_16 = arith.constant 0 : index
    %c0_17 = arith.constant 0 : index
    %c2 = arith.constant 2 : index
    %c0_18 = arith.constant 0 : index
    %c0_19 = arith.constant 0 : index
    %34 = vector.load %arg3[%c0_16, %c0_17, %c2, %c0_18, %c0_19] : memref<1x1x4x16x16xf32, #tpu.memory_space<vmem>>, vector<1x1x1x16x16xf32>
    %35 = vector.shape_cast %34 : vector<1x1x1x16x16xf32> to vector<1x16x16xf32>
    %36 = vector.shape_cast %35 : vector<1x16x16xf32> to vector<1x16x16x1xf32>
    %37 = vector.broadcast %36 : vector<1x16x16x1xf32> to vector<1x16x16x2xf32>
    %38 = vector.shape_cast %37 : vector<1x16x16x2xf32> to vector<1x16x32xf32>
    %c0_20 = arith.constant 0 : index
    %c0_21 = arith.constant 0 : index
    %c3 = arith.constant 3 : index
    %c0_22 = arith.constant 0 : index
    %c0_23 = arith.constant 0 : index
    %39 = vector.load %arg3[%c0_20, %c0_21, %c3, %c0_22, %c0_23] : memref<1x1x4x16x16xf32, #tpu.memory_space<vmem>>, vector<1x1x1x16x16xf32>
    %40 = vector.shape_cast %39 : vector<1x1x1x16x16xf32> to vector<1x16x16xf32>
    %41 = vector.shape_cast %40 : vector<1x16x16xf32> to vector<1x16x16x1xf32>
    %42 = vector.broadcast %41 : vector<1x16x16x1xf32> to vector<1x16x16x2xf32>
    %43 = vector.shape_cast %42 : vector<1x16x16x2xf32> to vector<1x16x32xf32>
    %44 = vector.shape_cast %18 : vector<16x32xi1> to vector<1x16x32xi1>
    %45 = arith.select %44, %43, %38 : vector<1x16x32xi1>, vector<1x16x32xf32>
    %c0_24 = arith.constant 0 : index
    %c0_25 = arith.constant 0 : index
    %c0_26 = arith.constant 0 : index
    %c32 = arith.constant 32 : index
    %46 = vector.load %arg4[%c0_24, %c0_25, %c0_26, %c32] : memref<1x1x16x64xf32, #tpu.memory_space<vmem>>, vector<1x1x16x32xf32>
    %47 = vector.shape_cast %46 : vector<1x1x16x32xf32> to vector<1x16x32xf32>
    %48 = vector.shape_cast %45 : vector<1x16x32xf32> to vector<1x1x16x32xf32>
    tpu.vector_store %arg4[%c0_24, %c0_25, %c0_26, %c32], %48 {strides = array<i32>} : memref<1x1x16x64xf32, #tpu.memory_space<vmem>>, vector<1x1x16x32xf32>,
    return
  }
  func.func @transform_0(%arg0: i32, %arg1: i32, %arg2: i32) -> (i32, i32, i32, i32, i32) {
    %c0_i32 = arith.constant 0 : i32
    %c0_i32_0 = arith.constant 0 : i32
    %c0_i32_1 = arith.constant 0 : i32
    return %arg0, %arg1, %c0_i32, %arg2, %c0_i32_0 : i32, i32, i32, i32, i32
  }
  func.func @transform_1(%arg0: i32, %arg1: i32, %arg2: i32) -> (i32, i32, i32, i32) {
    %c0_i32 = arith.constant 0 : i32
    %c0_i32_0 = arith.constant 0 : i32
    return %arg0, %arg1, %arg2, %c0_i32 : i32, i32, i32, i32
  }
}

module attributes {stable_mosaic.version = 11 : i64} {
  func.func @_kernel_narrow(%arg0: i32, %arg1: i32, %arg2: i32, %arg3: memref<1x1x4x16x16xf32, #tpu.memory_space<vmem>>, %arg4: memref<1x1x16x64xf32, #tpu.memory_space<vmem>>) attributes {dimension_semantics = [#tpu.dimension_semantics<parallel>, #tpu.dimension_semantics<parallel>, #tpu.dimension_semantics<parallel>], iteration_bounds = array<i64: 2, 1, 1>, scalar_prefetch = 0 : i64, scratch_operands = 0 : i64, tpu.core_type = #tpu.core_type<tc>, window_params = [{transform_indices = @transform_0, window_bounds = array<i64: 1, 1, 4, 16, 16>}, {transform_indices = @transform_1, window_bounds = array<i64: 1, 1, 16, 64>}]} {
    %c0 = arith.constant 0 : index
    %c0_0 = arith.constant 0 : index
    %c0_1 = arith.constant 0 : index
    %c0_2 = arith.constant 0 : index
    %c0_3 = arith.constant 0 : index
    %0 = vector.load %arg3[%c0, %c0_0, %c0_1, %c0_2, %c0_3] : memref<1x1x4x16x16xf32, #tpu.memory_space<vmem>>, vector<1x1x1x16x1xf32>
    %1 = vector.shape_cast %0 : vector<1x1x1x16x1xf32> to vector<1x16x1xf32>
    %c0_4 = arith.constant 0 : index
    %c0_5 = arith.constant 0 : index
    %c0_6 = arith.constant 0 : index
    %c0_7 = arith.constant 0 : index
    %2 = vector.load %arg4[%c0_4, %c0_5, %c0_6, %c0_7] : memref<1x1x16x64xf32, #tpu.memory_space<vmem>>, vector<1x1x16x1xf32>
    %3 = vector.shape_cast %2 : vector<1x1x16x1xf32> to vector<1x16x1xf32>
    %4 = vector.shape_cast %1 : vector<1x16x1xf32> to vector<1x1x16x1xf32>
    tpu.vector_store %arg4[%c0_4, %c0_5, %c0_6, %c0_7], %4 {strides = array<i32>} : memref<1x1x16x64xf32, #tpu.memory_space<vmem>>, vector<1x1x16x1xf32>,
    %c0_8 = arith.constant 0 : index
    %c0_9 = arith.constant 0 : index
    %c0_10 = arith.constant 0 : index
    %c0_11 = arith.constant 0 : index
    %c1 = arith.constant 1 : index
    %5 = vector.load %arg3[%c0_8, %c0_9, %c0_10, %c0_11, %c1] : memref<1x1x4x16x16xf32, #tpu.memory_space<vmem>>, vector<1x1x1x16x1xf32>
    %6 = vector.shape_cast %5 : vector<1x1x1x16x1xf32> to vector<1x16x1xf32>
    %c0_12 = arith.constant 0 : index
    %c0_13 = arith.constant 0 : index
    %c0_14 = arith.constant 0 : index
    %c2 = arith.constant 2 : index
    %7 = vector.load %arg4[%c0_12, %c0_13, %c0_14, %c2] : memref<1x1x16x64xf32, #tpu.memory_space<vmem>>, vector<1x1x16x1xf32>
    %8 = vector.shape_cast %7 : vector<1x1x16x1xf32> to vector<1x16x1xf32>
    %9 = vector.shape_cast %6 : vector<1x16x1xf32> to vector<1x1x16x1xf32>
    tpu.vector_store %arg4[%c0_12, %c0_13, %c0_14, %c2], %9 {strides = array<i32>} : memref<1x1x16x64xf32, #tpu.memory_space<vmem>>, vector<1x1x16x1xf32>,
    %c0_15 = arith.constant 0 : index
    %c0_16 = arith.constant 0 : index
    %c0_17 = arith.constant 0 : index
    %c0_18 = arith.constant 0 : index
    %c2_19 = arith.constant 2 : index
    %10 = vector.load %arg3[%c0_15, %c0_16, %c0_17, %c0_18, %c2_19] : memref<1x1x4x16x16xf32, #tpu.memory_space<vmem>>, vector<1x1x1x16x1xf32>
    %11 = vector.shape_cast %10 : vector<1x1x1x16x1xf32> to vector<1x16x1xf32>
    %c0_20 = arith.constant 0 : index
    %c0_21 = arith.constant 0 : index
    %c0_22 = arith.constant 0 : index
    %c4 = arith.constant 4 : index
    %12 = vector.load %arg4[%c0_20, %c0_21, %c0_22, %c4] : memref<1x1x16x64xf32, #tpu.memory_space<vmem>>, vector<1x1x16x1xf32>
    %13 = vector.shape_cast %12 : vector<1x1x16x1xf32> to vector<1x16x1xf32>
    %14 = vector.shape_cast %11 : vector<1x16x1xf32> to vector<1x1x16x1xf32>
    tpu.vector_store %arg4[%c0_20, %c0_21, %c0_22, %c4], %14 {strides = array<i32>} : memref<1x1x16x64xf32, #tpu.memory_space<vmem>>, vector<1x1x16x1xf32>,
    %c0_23 = arith.constant 0 : index
    %c0_24 = arith.constant 0 : index
    %c0_25 = arith.constant 0 : index
    %c0_26 = arith.constant 0 : index
    %c3 = arith.constant 3 : index
    %15 = vector.load %arg3[%c0_23, %c0_24, %c0_25, %c0_26, %c3] : memref<1x1x4x16x16xf32, #tpu.memory_space<vmem>>, vector<1x1x1x16x1xf32>
    %16 = vector.shape_cast %15 : vector<1x1x1x16x1xf32> to vector<1x16x1xf32>
    %c0_27 = arith.constant 0 : index
    %c0_28 = arith.constant 0 : index
    %c0_29 = arith.constant 0 : index
    %c6 = arith.constant 6 : index
    %17 = vector.load %arg4[%c0_27, %c0_28, %c0_29, %c6] : memref<1x1x16x64xf32, #tpu.memory_space<vmem>>, vector<1x1x16x1xf32>
    %18 = vector.shape_cast %17 : vector<1x1x16x1xf32> to vector<1x16x1xf32>
    %19 = vector.shape_cast %16 : vector<1x16x1xf32> to vector<1x1x16x1xf32>
    tpu.vector_store %arg4[%c0_27, %c0_28, %c0_29, %c6], %19 {strides = array<i32>} : memref<1x1x16x64xf32, #tpu.memory_space<vmem>>, vector<1x1x16x1xf32>,
    %c0_30 = arith.constant 0 : index
    %c0_31 = arith.constant 0 : index
    %c0_32 = arith.constant 0 : index
    %c0_33 = arith.constant 0 : index
    %c4_34 = arith.constant 4 : index
    %20 = vector.load %arg3[%c0_30, %c0_31, %c0_32, %c0_33, %c4_34] : memref<1x1x4x16x16xf32, #tpu.memory_space<vmem>>, vector<1x1x1x16x1xf32>
    %21 = vector.shape_cast %20 : vector<1x1x1x16x1xf32> to vector<1x16x1xf32>
    %c0_35 = arith.constant 0 : index
    %c0_36 = arith.constant 0 : index
    %c0_37 = arith.constant 0 : index
    %c8 = arith.constant 8 : index
    %22 = vector.load %arg4[%c0_35, %c0_36, %c0_37, %c8] : memref<1x1x16x64xf32, #tpu.memory_space<vmem>>, vector<1x1x16x1xf32>
    %23 = vector.shape_cast %22 : vector<1x1x16x1xf32> to vector<1x16x1xf32>
    %24 = vector.shape_cast %21 : vector<1x16x1xf32> to vector<1x1x16x1xf32>
    tpu.vector_store %arg4[%c0_35, %c0_36, %c0_37, %c8], %24 {strides = array<i32>} : memref<1x1x16x64xf32, #tpu.memory_space<vmem>>, vector<1x1x16x1xf32>,
    %c0_38 = arith.constant 0 : index
    %c0_39 = arith.constant 0 : index
    %c0_40 = arith.constant 0 : index
    %c0_41 = arith.constant 0 : index
    %c5 = arith.constant 5 : index
    %25 = vector.load %arg3[%c0_38, %c0_39, %c0_40, %c0_41, %c5] : memref<1x1x4x16x16xf32, #tpu.memory_space<vmem>>, vector<1x1x1x16x1xf32>
    %26 = vector.shape_cast %25 : vector<1x1x1x16x1xf32> to vector<1x16x1xf32>
    %c0_42 = arith.constant 0 : index
    %c0_43 = arith.constant 0 : index
    %c0_44 = arith.constant 0 : index
    %c10 = arith.constant 10 : index
    %27 = vector.load %arg4[%c0_42, %c0_43, %c0_44, %c10] : memref<1x1x16x64xf32, #tpu.memory_space<vmem>>, vector<1x1x16x1xf32>
    %28 = vector.shape_cast %27 : vector<1x1x16x1xf32> to vector<1x16x1xf32>
    %29 = vector.shape_cast %26 : vector<1x16x1xf32> to vector<1x1x16x1xf32>
    tpu.vector_store %arg4[%c0_42, %c0_43, %c0_44, %c10], %29 {strides = array<i32>} : memref<1x1x16x64xf32, #tpu.memory_space<vmem>>, vector<1x1x16x1xf32>,
    %c0_45 = arith.constant 0 : index
    %c0_46 = arith.constant 0 : index
    %c0_47 = arith.constant 0 : index
    %c0_48 = arith.constant 0 : index
    %c6_49 = arith.constant 6 : index
    %30 = vector.load %arg3[%c0_45, %c0_46, %c0_47, %c0_48, %c6_49] : memref<1x1x4x16x16xf32, #tpu.memory_space<vmem>>, vector<1x1x1x16x1xf32>
    %31 = vector.shape_cast %30 : vector<1x1x1x16x1xf32> to vector<1x16x1xf32>
    %c0_50 = arith.constant 0 : index
    %c0_51 = arith.constant 0 : index
    %c0_52 = arith.constant 0 : index
    %c12 = arith.constant 12 : index
    %32 = vector.load %arg4[%c0_50, %c0_51, %c0_52, %c12] : memref<1x1x16x64xf32, #tpu.memory_space<vmem>>, vector<1x1x16x1xf32>
    %33 = vector.shape_cast %32 : vector<1x1x16x1xf32> to vector<1x16x1xf32>
    %34 = vector.shape_cast %31 : vector<1x16x1xf32> to vector<1x1x16x1xf32>
    tpu.vector_store %arg4[%c0_50, %c0_51, %c0_52, %c12], %34 {strides = array<i32>} : memref<1x1x16x64xf32, #tpu.memory_space<vmem>>, vector<1x1x16x1xf32>,
    %c0_53 = arith.constant 0 : index
    %c0_54 = arith.constant 0 : index
    %c0_55 = arith.constant 0 : index
    %c0_56 = arith.constant 0 : index
    %c7 = arith.constant 7 : index
    %35 = vector.load %arg3[%c0_53, %c0_54, %c0_55, %c0_56, %c7] : memref<1x1x4x16x16xf32, #tpu.memory_space<vmem>>, vector<1x1x1x16x1xf32>
    %36 = vector.shape_cast %35 : vector<1x1x1x16x1xf32> to vector<1x16x1xf32>
    %c0_57 = arith.constant 0 : index
    %c0_58 = arith.constant 0 : index
    %c0_59 = arith.constant 0 : index
    %c14 = arith.constant 14 : index
    %37 = vector.load %arg4[%c0_57, %c0_58, %c0_59, %c14] : memref<1x1x16x64xf32, #tpu.memory_space<vmem>>, vector<1x1x16x1xf32>
    %38 = vector.shape_cast %37 : vector<1x1x16x1xf32> to vector<1x16x1xf32>
    %39 = vector.shape_cast %36 : vector<1x16x1xf32> to vector<1x1x16x1xf32>
    tpu.vector_store %arg4[%c0_57, %c0_58, %c0_59, %c14], %39 {strides = array<i32>} : memref<1x1x16x64xf32, #tpu.memory_space<vmem>>, vector<1x1x16x1xf32>,
    %c0_60 = arith.constant 0 : index
    %c0_61 = arith.constant 0 : index
    %c0_62 = arith.constant 0 : index
    %c0_63 = arith.constant 0 : index
    %c8_64 = arith.constant 8 : index
    %40 = vector.load %arg3[%c0_60, %c0_61, %c0_62, %c0_63, %c8_64] : memref<1x1x4x16x16xf32, #tpu.memory_space<vmem>>, vector<1x1x1x16x1xf32>
    %41 = vector.shape_cast %40 : vector<1x1x1x16x1xf32> to vector<1x16x1xf32>
    %c0_65 = arith.constant 0 : index
    %c0_66 = arith.constant 0 : index
    %c0_67 = arith.constant 0 : index
    %c16 = arith.constant 16 : index
    %42 = vector.load %arg4[%c0_65, %c0_66, %c0_67, %c16] : memref<1x1x16x64xf32, #tpu.memory_space<vmem>>, vector<1x1x16x1xf32>
    %43 = vector.shape_cast %42 : vector<1x1x16x1xf32> to vector<1x16x1xf32>
    %44 = vector.shape_cast %41 : vector<1x16x1xf32> to vector<1x1x16x1xf32>
    tpu.vector_store %arg4[%c0_65, %c0_66, %c0_67, %c16], %44 {strides = array<i32>} : memref<1x1x16x64xf32, #tpu.memory_space<vmem>>, vector<1x1x16x1xf32>,
    %c0_68 = arith.constant 0 : index
    %c0_69 = arith.constant 0 : index
    %c0_70 = arith.constant 0 : index
    %c0_71 = arith.constant 0 : index
    %c9 = arith.constant 9 : index
    %45 = vector.load %arg3[%c0_68, %c0_69, %c0_70, %c0_71, %c9] : memref<1x1x4x16x16xf32, #tpu.memory_space<vmem>>, vector<1x1x1x16x1xf32>
    %46 = vector.shape_cast %45 : vector<1x1x1x16x1xf32> to vector<1x16x1xf32>
    %c0_72 = arith.constant 0 : index
    %c0_73 = arith.constant 0 : index
    %c0_74 = arith.constant 0 : index
    %c18 = arith.constant 18 : index
    %47 = vector.load %arg4[%c0_72, %c0_73, %c0_74, %c18] : memref<1x1x16x64xf32, #tpu.memory_space<vmem>>, vector<1x1x16x1xf32>
    %48 = vector.shape_cast %47 : vector<1x1x16x1xf32> to vector<1x16x1xf32>
    %49 = vector.shape_cast %46 : vector<1x16x1xf32> to vector<1x1x16x1xf32>
    tpu.vector_store %arg4[%c0_72, %c0_73, %c0_74, %c18], %49 {strides = array<i32>} : memref<1x1x16x64xf32, #tpu.memory_space<vmem>>, vector<1x1x16x1xf32>,
    %c0_75 = arith.constant 0 : index
    %c0_76 = arith.constant 0 : index
    %c0_77 = arith.constant 0 : index
    %c0_78 = arith.constant 0 : index
    %c10_79 = arith.constant 10 : index
    %50 = vector.load %arg3[%c0_75, %c0_76, %c0_77, %c0_78, %c10_79] : memref<1x1x4x16x16xf32, #tpu.memory_space<vmem>>, vector<1x1x1x16x1xf32>
    %51 = vector.shape_cast %50 : vector<1x1x1x16x1xf32> to vector<1x16x1xf32>
    %c0_80 = arith.constant 0 : index
    %c0_81 = arith.constant 0 : index
    %c0_82 = arith.constant 0 : index
    %c20 = arith.constant 20 : index
    %52 = vector.load %arg4[%c0_80, %c0_81, %c0_82, %c20] : memref<1x1x16x64xf32, #tpu.memory_space<vmem>>, vector<1x1x16x1xf32>
    %53 = vector.shape_cast %52 : vector<1x1x16x1xf32> to vector<1x16x1xf32>
    %54 = vector.shape_cast %51 : vector<1x16x1xf32> to vector<1x1x16x1xf32>
    tpu.vector_store %arg4[%c0_80, %c0_81, %c0_82, %c20], %54 {strides = array<i32>} : memref<1x1x16x64xf32, #tpu.memory_space<vmem>>, vector<1x1x16x1xf32>,
    %c0_83 = arith.constant 0 : index
    %c0_84 = arith.constant 0 : index
    %c0_85 = arith.constant 0 : index
    %c0_86 = arith.constant 0 : index
    %c11 = arith.constant 11 : index
    %55 = vector.load %arg3[%c0_83, %c0_84, %c0_85, %c0_86, %c11] : memref<1x1x4x16x16xf32, #tpu.memory_space<vmem>>, vector<1x1x1x16x1xf32>
    %56 = vector.shape_cast %55 : vector<1x1x1x16x1xf32> to vector<1x16x1xf32>
    %c0_87 = arith.constant 0 : index
    %c0_88 = arith.constant 0 : index
    %c0_89 = arith.constant 0 : index
    %c22 = arith.constant 22 : index
    %57 = vector.load %arg4[%c0_87, %c0_88, %c0_89, %c22] : memref<1x1x16x64xf32, #tpu.memory_space<vmem>>, vector<1x1x16x1xf32>
    %58 = vector.shape_cast %57 : vector<1x1x16x1xf32> to vector<1x16x1xf32>
    %59 = vector.shape_cast %56 : vector<1x16x1xf32> to vector<1x1x16x1xf32>
    tpu.vector_store %arg4[%c0_87, %c0_88, %c0_89, %c22], %59 {strides = array<i32>} : memref<1x1x16x64xf32, #tpu.memory_space<vmem>>, vector<1x1x16x1xf32>,
    %c0_90 = arith.constant 0 : index
    %c0_91 = arith.constant 0 : index
    %c0_92 = arith.constant 0 : index
    %c0_93 = arith.constant 0 : index
    %c12_94 = arith.constant 12 : index
    %60 = vector.load %arg3[%c0_90, %c0_91, %c0_92, %c0_93, %c12_94] : memref<1x1x4x16x16xf32, #tpu.memory_space<vmem>>, vector<1x1x1x16x1xf32>
    %61 = vector.shape_cast %60 : vector<1x1x1x16x1xf32> to vector<1x16x1xf32>
    %c0_95 = arith.constant 0 : index
    %c0_96 = arith.constant 0 : index
    %c0_97 = arith.constant 0 : index
    %c24 = arith.constant 24 : index
    %62 = vector.load %arg4[%c0_95, %c0_96, %c0_97, %c24] : memref<1x1x16x64xf32, #tpu.memory_space<vmem>>, vector<1x1x16x1xf32>
    %63 = vector.shape_cast %62 : vector<1x1x16x1xf32> to vector<1x16x1xf32>
    %64 = vector.shape_cast %61 : vector<1x16x1xf32> to vector<1x1x16x1xf32>
    tpu.vector_store %arg4[%c0_95, %c0_96, %c0_97, %c24], %64 {strides = array<i32>} : memref<1x1x16x64xf32, #tpu.memory_space<vmem>>, vector<1x1x16x1xf32>,
    %c0_98 = arith.constant 0 : index
    %c0_99 = arith.constant 0 : index
    %c0_100 = arith.constant 0 : index
    %c0_101 = arith.constant 0 : index
    %c13 = arith.constant 13 : index
    %65 = vector.load %arg3[%c0_98, %c0_99, %c0_100, %c0_101, %c13] : memref<1x1x4x16x16xf32, #tpu.memory_space<vmem>>, vector<1x1x1x16x1xf32>
    %66 = vector.shape_cast %65 : vector<1x1x1x16x1xf32> to vector<1x16x1xf32>
    %c0_102 = arith.constant 0 : index
    %c0_103 = arith.constant 0 : index
    %c0_104 = arith.constant 0 : index
    %c26 = arith.constant 26 : index
    %67 = vector.load %arg4[%c0_102, %c0_103, %c0_104, %c26] : memref<1x1x16x64xf32, #tpu.memory_space<vmem>>, vector<1x1x16x1xf32>
    %68 = vector.shape_cast %67 : vector<1x1x16x1xf32> to vector<1x16x1xf32>
    %69 = vector.shape_cast %66 : vector<1x16x1xf32> to vector<1x1x16x1xf32>
    tpu.vector_store %arg4[%c0_102, %c0_103, %c0_104, %c26], %69 {strides = array<i32>} : memref<1x1x16x64xf32, #tpu.memory_space<vmem>>, vector<1x1x16x1xf32>,
    %c0_105 = arith.constant 0 : index
    %c0_106 = arith.constant 0 : index
    %c0_107 = arith.constant 0 : index
    %c0_108 = arith.constant 0 : index
    %c14_109 = arith.constant 14 : index
    %70 = vector.load %arg3[%c0_105, %c0_106, %c0_107, %c0_108, %c14_109] : memref<1x1x4x16x16xf32, #tpu.memory_space<vmem>>, vector<1x1x1x16x1xf32>
    %71 = vector.shape_cast %70 : vector<1x1x1x16x1xf32> to vector<1x16x1xf32>
    %c0_110 = arith.constant 0 : index
    %c0_111 = arith.constant 0 : index
    %c0_112 = arith.constant 0 : index
    %c28 = arith.constant 28 : index
    %72 = vector.load %arg4[%c0_110, %c0_111, %c0_112, %c28] : memref<1x1x16x64xf32, #tpu.memory_space<vmem>>, vector<1x1x16x1xf32>
    %73 = vector.shape_cast %72 : vector<1x1x16x1xf32> to vector<1x16x1xf32>
    %74 = vector.shape_cast %71 : vector<1x16x1xf32> to vector<1x1x16x1xf32>
    tpu.vector_store %arg4[%c0_110, %c0_111, %c0_112, %c28], %74 {strides = array<i32>} : memref<1x1x16x64xf32, #tpu.memory_space<vmem>>, vector<1x1x16x1xf32>,
    %c0_113 = arith.constant 0 : index
    %c0_114 = arith.constant 0 : index
    %c0_115 = arith.constant 0 : index
    %c0_116 = arith.constant 0 : index
    %c15 = arith.constant 15 : index
    %75 = vector.load %arg3[%c0_113, %c0_114, %c0_115, %c0_116, %c15] : memref<1x1x4x16x16xf32, #tpu.memory_space<vmem>>, vector<1x1x1x16x1xf32>
    %76 = vector.shape_cast %75 : vector<1x1x1x16x1xf32> to vector<1x16x1xf32>
    %c0_117 = arith.constant 0 : index
    %c0_118 = arith.constant 0 : index
    %c0_119 = arith.constant 0 : index
    %c30 = arith.constant 30 : index
    %77 = vector.load %arg4[%c0_117, %c0_118, %c0_119, %c30] : memref<1x1x16x64xf32, #tpu.memory_space<vmem>>, vector<1x1x16x1xf32>
    %78 = vector.shape_cast %77 : vector<1x1x16x1xf32> to vector<1x16x1xf32>
    %79 = vector.shape_cast %76 : vector<1x16x1xf32> to vector<1x1x16x1xf32>
    tpu.vector_store %arg4[%c0_117, %c0_118, %c0_119, %c30], %79 {strides = array<i32>} : memref<1x1x16x64xf32, #tpu.memory_space<vmem>>, vector<1x1x16x1xf32>,
    %c0_120 = arith.constant 0 : index
    %c0_121 = arith.constant 0 : index
    %c1_122 = arith.constant 1 : index
    %c0_123 = arith.constant 0 : index
    %c0_124 = arith.constant 0 : index
    %80 = vector.load %arg3[%c0_120, %c0_121, %c1_122, %c0_123, %c0_124] : memref<1x1x4x16x16xf32, #tpu.memory_space<vmem>>, vector<1x1x1x16x1xf32>
    %81 = vector.shape_cast %80 : vector<1x1x1x16x1xf32> to vector<1x16x1xf32>
    %c0_125 = arith.constant 0 : index
    %c0_126 = arith.constant 0 : index
    %c0_127 = arith.constant 0 : index
    %c1_128 = arith.constant 1 : index
    %82 = vector.load %arg4[%c0_125, %c0_126, %c0_127, %c1_128] : memref<1x1x16x64xf32, #tpu.memory_space<vmem>>, vector<1x1x16x1xf32>
    %83 = vector.shape_cast %82 : vector<1x1x16x1xf32> to vector<1x16x1xf32>
    %84 = vector.shape_cast %81 : vector<1x16x1xf32> to vector<1x1x16x1xf32>
    tpu.vector_store %arg4[%c0_125, %c0_126, %c0_127, %c1_128], %84 {strides = array<i32>} : memref<1x1x16x64xf32, #tpu.memory_space<vmem>>, vector<1x1x16x1xf32>,
    %c0_129 = arith.constant 0 : index
    %c0_130 = arith.constant 0 : index
    %c1_131 = arith.constant 1 : index
    %c0_132 = arith.constant 0 : index
    %c1_133 = arith.constant 1 : index
    %85 = vector.load %arg3[%c0_129, %c0_130, %c1_131, %c0_132, %c1_133] : memref<1x1x4x16x16xf32, #tpu.memory_space<vmem>>, vector<1x1x1x16x1xf32>
    %86 = vector.shape_cast %85 : vector<1x1x1x16x1xf32> to vector<1x16x1xf32>
    %c0_134 = arith.constant 0 : index
    %c0_135 = arith.constant 0 : index
    %c0_136 = arith.constant 0 : index
    %c3_137 = arith.constant 3 : index
    %87 = vector.load %arg4[%c0_134, %c0_135, %c0_136, %c3_137] : memref<1x1x16x64xf32, #tpu.memory_space<vmem>>, vector<1x1x16x1xf32>
    %88 = vector.shape_cast %87 : vector<1x1x16x1xf32> to vector<1x16x1xf32>
    %89 = vector.shape_cast %86 : vector<1x16x1xf32> to vector<1x1x16x1xf32>
    tpu.vector_store %arg4[%c0_134, %c0_135, %c0_136, %c3_137], %89 {strides = array<i32>} : memref<1x1x16x64xf32, #tpu.memory_space<vmem>>, vector<1x1x16x1xf32>,
    %c0_138 = arith.constant 0 : index
    %c0_139 = arith.constant 0 : index
    %c1_140 = arith.constant 1 : index
    %c0_141 = arith.constant 0 : index
    %c2_142 = arith.constant 2 : index
    %90 = vector.load %arg3[%c0_138, %c0_139, %c1_140, %c0_141, %c2_142] : memref<1x1x4x16x16xf32, #tpu.memory_space<vmem>>, vector<1x1x1x16x1xf32>
    %91 = vector.shape_cast %90 : vector<1x1x1x16x1xf32> to vector<1x16x1xf32>
    %c0_143 = arith.constant 0 : index
    %c0_144 = arith.constant 0 : index
    %c0_145 = arith.constant 0 : index
    %c5_146 = arith.constant 5 : index
    %92 = vector.load %arg4[%c0_143, %c0_144, %c0_145, %c5_146] : memref<1x1x16x64xf32, #tpu.memory_space<vmem>>, vector<1x1x16x1xf32>
    %93 = vector.shape_cast %92 : vector<1x1x16x1xf32> to vector<1x16x1xf32>
    %94 = vector.shape_cast %91 : vector<1x16x1xf32> to vector<1x1x16x1xf32>
    tpu.vector_store %arg4[%c0_143, %c0_144, %c0_145, %c5_146], %94 {strides = array<i32>} : memref<1x1x16x64xf32, #tpu.memory_space<vmem>>, vector<1x1x16x1xf32>,
    %c0_147 = arith.constant 0 : index
    %c0_148 = arith.constant 0 : index
    %c1_149 = arith.constant 1 : index
    %c0_150 = arith.constant 0 : index
    %c3_151 = arith.constant 3 : index
    %95 = vector.load %arg3[%c0_147, %c0_148, %c1_149, %c0_150, %c3_151] : memref<1x1x4x16x16xf32, #tpu.memory_space<vmem>>, vector<1x1x1x16x1xf32>
    %96 = vector.shape_cast %95 : vector<1x1x1x16x1xf32> to vector<1x16x1xf32>
    %c0_152 = arith.constant 0 : index
    %c0_153 = arith.constant 0 : index
    %c0_154 = arith.constant 0 : index
    %c7_155 = arith.constant 7 : index
    %97 = vector.load %arg4[%c0_152, %c0_153, %c0_154, %c7_155] : memref<1x1x16x64xf32, #tpu.memory_space<vmem>>, vector<1x1x16x1xf32>
    %98 = vector.shape_cast %97 : vector<1x1x16x1xf32> to vector<1x16x1xf32>
    %99 = vector.shape_cast %96 : vector<1x16x1xf32> to vector<1x1x16x1xf32>
    tpu.vector_store %arg4[%c0_152, %c0_153, %c0_154, %c7_155], %99 {strides = array<i32>} : memref<1x1x16x64xf32, #tpu.memory_space<vmem>>, vector<1x1x16x1xf32>,
    %c0_156 = arith.constant 0 : index
    %c0_157 = arith.constant 0 : index
    %c1_158 = arith.constant 1 : index
    %c0_159 = arith.constant 0 : index
    %c4_160 = arith.constant 4 : index
    %100 = vector.load %arg3[%c0_156, %c0_157, %c1_158, %c0_159, %c4_160] : memref<1x1x4x16x16xf32, #tpu.memory_space<vmem>>, vector<1x1x1x16x1xf32>
    %101 = vector.shape_cast %100 : vector<1x1x1x16x1xf32> to vector<1x16x1xf32>
    %c0_161 = arith.constant 0 : index
    %c0_162 = arith.constant 0 : index
    %c0_163 = arith.constant 0 : index
    %c9_164 = arith.constant 9 : index
    %102 = vector.load %arg4[%c0_161, %c0_162, %c0_163, %c9_164] : memref<1x1x16x64xf32, #tpu.memory_space<vmem>>, vector<1x1x16x1xf32>
    %103 = vector.shape_cast %102 : vector<1x1x16x1xf32> to vector<1x16x1xf32>
    %104 = vector.shape_cast %101 : vector<1x16x1xf32> to vector<1x1x16x1xf32>
    tpu.vector_store %arg4[%c0_161, %c0_162, %c0_163, %c9_164], %104 {strides = array<i32>} : memref<1x1x16x64xf32, #tpu.memory_space<vmem>>, vector<1x1x16x1xf32>,
    %c0_165 = arith.constant 0 : index
    %c0_166 = arith.constant 0 : index
    %c1_167 = arith.constant 1 : index
    %c0_168 = arith.constant 0 : index
    %c5_169 = arith.constant 5 : index
    %105 = vector.load %arg3[%c0_165, %c0_166, %c1_167, %c0_168, %c5_169] : memref<1x1x4x16x16xf32, #tpu.memory_space<vmem>>, vector<1x1x1x16x1xf32>
    %106 = vector.shape_cast %105 : vector<1x1x1x16x1xf32> to vector<1x16x1xf32>
    %c0_170 = arith.constant 0 : index
    %c0_171 = arith.constant 0 : index
    %c0_172 = arith.constant 0 : index
    %c11_173 = arith.constant 11 : index
    %107 = vector.load %arg4[%c0_170, %c0_171, %c0_172, %c11_173] : memref<1x1x16x64xf32, #tpu.memory_space<vmem>>, vector<1x1x16x1xf32>
    %108 = vector.shape_cast %107 : vector<1x1x16x1xf32> to vector<1x16x1xf32>
    %109 = vector.shape_cast %106 : vector<1x16x1xf32> to vector<1x1x16x1xf32>
    tpu.vector_store %arg4[%c0_170, %c0_171, %c0_172, %c11_173], %109 {strides = array<i32>} : memref<1x1x16x64xf32, #tpu.memory_space<vmem>>, vector<1x1x16x1xf32>,
    %c0_174 = arith.constant 0 : index
    %c0_175 = arith.constant 0 : index
    %c1_176 = arith.constant 1 : index
    %c0_177 = arith.constant 0 : index
    %c6_178 = arith.constant 6 : index
    %110 = vector.load %arg3[%c0_174, %c0_175, %c1_176, %c0_177, %c6_178] : memref<1x1x4x16x16xf32, #tpu.memory_space<vmem>>, vector<1x1x1x16x1xf32>
    %111 = vector.shape_cast %110 : vector<1x1x1x16x1xf32> to vector<1x16x1xf32>
    %c0_179 = arith.constant 0 : index
    %c0_180 = arith.constant 0 : index
    %c0_181 = arith.constant 0 : index
    %c13_182 = arith.constant 13 : index
    %112 = vector.load %arg4[%c0_179, %c0_180, %c0_181, %c13_182] : memref<1x1x16x64xf32, #tpu.memory_space<vmem>>, vector<1x1x16x1xf32>
    %113 = vector.shape_cast %112 : vector<1x1x16x1xf32> to vector<1x16x1xf32>
    %114 = vector.shape_cast %111 : vector<1x16x1xf32> to vector<1x1x16x1xf32>
    tpu.vector_store %arg4[%c0_179, %c0_180, %c0_181, %c13_182], %114 {strides = array<i32>} : memref<1x1x16x64xf32, #tpu.memory_space<vmem>>, vector<1x1x16x1xf32>,
    %c0_183 = arith.constant 0 : index
    %c0_184 = arith.constant 0 : index
    %c1_185 = arith.constant 1 : index
    %c0_186 = arith.constant 0 : index
    %c7_187 = arith.constant 7 : index
    %115 = vector.load %arg3[%c0_183, %c0_184, %c1_185, %c0_186, %c7_187] : memref<1x1x4x16x16xf32, #tpu.memory_space<vmem>>, vector<1x1x1x16x1xf32>
    %116 = vector.shape_cast %115 : vector<1x1x1x16x1xf32> to vector<1x16x1xf32>
    %c0_188 = arith.constant 0 : index
    %c0_189 = arith.constant 0 : index
    %c0_190 = arith.constant 0 : index
    %c15_191 = arith.constant 15 : index
    %117 = vector.load %arg4[%c0_188, %c0_189, %c0_190, %c15_191] : memref<1x1x16x64xf32, #tpu.memory_space<vmem>>, vector<1x1x16x1xf32>
    %118 = vector.shape_cast %117 : vector<1x1x16x1xf32> to vector<1x16x1xf32>
    %119 = vector.shape_cast %116 : vector<1x16x1xf32> to vector<1x1x16x1xf32>
    tpu.vector_store %arg4[%c0_188, %c0_189, %c0_190, %c15_191], %119 {strides = array<i32>} : memref<1x1x16x64xf32, #tpu.memory_space<vmem>>, vector<1x1x16x1xf32>,
    %c0_192 = arith.constant 0 : index
    %c0_193 = arith.constant 0 : index
    %c1_194 = arith.constant 1 : index
    %c0_195 = arith.constant 0 : index
    %c8_196 = arith.constant 8 : index
    %120 = vector.load %arg3[%c0_192, %c0_193, %c1_194, %c0_195, %c8_196] : memref<1x1x4x16x16xf32, #tpu.memory_space<vmem>>, vector<1x1x1x16x1xf32>
    %121 = vector.shape_cast %120 : vector<1x1x1x16x1xf32> to vector<1x16x1xf32>
    %c0_197 = arith.constant 0 : index
    %c0_198 = arith.constant 0 : index
    %c0_199 = arith.constant 0 : index
    %c17 = arith.constant 17 : index
    %122 = vector.load %arg4[%c0_197, %c0_198, %c0_199, %c17] : memref<1x1x16x64xf32, #tpu.memory_space<vmem>>, vector<1x1x16x1xf32>
    %123 = vector.shape_cast %122 : vector<1x1x16x1xf32> to vector<1x16x1xf32>
    %124 = vector.shape_cast %121 : vector<1x16x1xf32> to vector<1x1x16x1xf32>
    tpu.vector_store %arg4[%c0_197, %c0_198, %c0_199, %c17], %124 {strides = array<i32>} : memref<1x1x16x64xf32, #tpu.memory_space<vmem>>, vector<1x1x16x1xf32>,
    %c0_200 = arith.constant 0 : index
    %c0_201 = arith.constant 0 : index
    %c1_202 = arith.constant 1 : index
    %c0_203 = arith.constant 0 : index
    %c9_204 = arith.constant 9 : index
    %125 = vector.load %arg3[%c0_200, %c0_201, %c1_202, %c0_203, %c9_204] : memref<1x1x4x16x16xf32, #tpu.memory_space<vmem>>, vector<1x1x1x16x1xf32>
    %126 = vector.shape_cast %125 : vector<1x1x1x16x1xf32> to vector<1x16x1xf32>
    %c0_205 = arith.constant 0 : index
    %c0_206 = arith.constant 0 : index
    %c0_207 = arith.constant 0 : index
    %c19 = arith.constant 19 : index
    %127 = vector.load %arg4[%c0_205, %c0_206, %c0_207, %c19] : memref<1x1x16x64xf32, #tpu.memory_space<vmem>>, vector<1x1x16x1xf32>
    %128 = vector.shape_cast %127 : vector<1x1x16x1xf32> to vector<1x16x1xf32>
    %129 = vector.shape_cast %126 : vector<1x16x1xf32> to vector<1x1x16x1xf32>
    tpu.vector_store %arg4[%c0_205, %c0_206, %c0_207, %c19], %129 {strides = array<i32>} : memref<1x1x16x64xf32, #tpu.memory_space<vmem>>, vector<1x1x16x1xf32>,
    %c0_208 = arith.constant 0 : index
    %c0_209 = arith.constant 0 : index
    %c1_210 = arith.constant 1 : index
    %c0_211 = arith.constant 0 : index
    %c10_212 = arith.constant 10 : index
    %130 = vector.load %arg3[%c0_208, %c0_209, %c1_210, %c0_211, %c10_212] : memref<1x1x4x16x16xf32, #tpu.memory_space<vmem>>, vector<1x1x1x16x1xf32>
    %131 = vector.shape_cast %130 : vector<1x1x1x16x1xf32> to vector<1x16x1xf32>
    %c0_213 = arith.constant 0 : index
    %c0_214 = arith.constant 0 : index
    %c0_215 = arith.constant 0 : index
    %c21 = arith.constant 21 : index
    %132 = vector.load %arg4[%c0_213, %c0_214, %c0_215, %c21] : memref<1x1x16x64xf32, #tpu.memory_space<vmem>>, vector<1x1x16x1xf32>
    %133 = vector.shape_cast %132 : vector<1x1x16x1xf32> to vector<1x16x1xf32>
    %134 = vector.shape_cast %131 : vector<1x16x1xf32> to vector<1x1x16x1xf32>
    tpu.vector_store %arg4[%c0_213, %c0_214, %c0_215, %c21], %134 {strides = array<i32>} : memref<1x1x16x64xf32, #tpu.memory_space<vmem>>, vector<1x1x16x1xf32>,
    %c0_216 = arith.constant 0 : index
    %c0_217 = arith.constant 0 : index
    %c1_218 = arith.constant 1 : index
    %c0_219 = arith.constant 0 : index
    %c11_220 = arith.constant 11 : index
    %135 = vector.load %arg3[%c0_216, %c0_217, %c1_218, %c0_219, %c11_220] : memref<1x1x4x16x16xf32, #tpu.memory_space<vmem>>, vector<1x1x1x16x1xf32>
    %136 = vector.shape_cast %135 : vector<1x1x1x16x1xf32> to vector<1x16x1xf32>
    %c0_221 = arith.constant 0 : index
    %c0_222 = arith.constant 0 : index
    %c0_223 = arith.constant 0 : index
    %c23 = arith.constant 23 : index
    %137 = vector.load %arg4[%c0_221, %c0_222, %c0_223, %c23] : memref<1x1x16x64xf32, #tpu.memory_space<vmem>>, vector<1x1x16x1xf32>
    %138 = vector.shape_cast %137 : vector<1x1x16x1xf32> to vector<1x16x1xf32>
    %139 = vector.shape_cast %136 : vector<1x16x1xf32> to vector<1x1x16x1xf32>
    tpu.vector_store %arg4[%c0_221, %c0_222, %c0_223, %c23], %139 {strides = array<i32>} : memref<1x1x16x64xf32, #tpu.memory_space<vmem>>, vector<1x1x16x1xf32>,
    %c0_224 = arith.constant 0 : index
    %c0_225 = arith.constant 0 : index
    %c1_226 = arith.constant 1 : index
    %c0_227 = arith.constant 0 : index
    %c12_228 = arith.constant 12 : index
    %140 = vector.load %arg3[%c0_224, %c0_225, %c1_226, %c0_227, %c12_228] : memref<1x1x4x16x16xf32, #tpu.memory_space<vmem>>, vector<1x1x1x16x1xf32>
    %141 = vector.shape_cast %140 : vector<1x1x1x16x1xf32> to vector<1x16x1xf32>
    %c0_229 = arith.constant 0 : index
    %c0_230 = arith.constant 0 : index
    %c0_231 = arith.constant 0 : index
    %c25 = arith.constant 25 : index
    %142 = vector.load %arg4[%c0_229, %c0_230, %c0_231, %c25] : memref<1x1x16x64xf32, #tpu.memory_space<vmem>>, vector<1x1x16x1xf32>
    %143 = vector.shape_cast %142 : vector<1x1x16x1xf32> to vector<1x16x1xf32>
    %144 = vector.shape_cast %141 : vector<1x16x1xf32> to vector<1x1x16x1xf32>
    tpu.vector_store %arg4[%c0_229, %c0_230, %c0_231, %c25], %144 {strides = array<i32>} : memref<1x1x16x64xf32, #tpu.memory_space<vmem>>, vector<1x1x16x1xf32>,
    %c0_232 = arith.constant 0 : index
    %c0_233 = arith.constant 0 : index
    %c1_234 = arith.constant 1 : index
    %c0_235 = arith.constant 0 : index
    %c13_236 = arith.constant 13 : index
    %145 = vector.load %arg3[%c0_232, %c0_233, %c1_234, %c0_235, %c13_236] : memref<1x1x4x16x16xf32, #tpu.memory_space<vmem>>, vector<1x1x1x16x1xf32>
    %146 = vector.shape_cast %145 : vector<1x1x1x16x1xf32> to vector<1x16x1xf32>
    %c0_237 = arith.constant 0 : index
    %c0_238 = arith.constant 0 : index
    %c0_239 = arith.constant 0 : index
    %c27 = arith.constant 27 : index
    %147 = vector.load %arg4[%c0_237, %c0_238, %c0_239, %c27] : memref<1x1x16x64xf32, #tpu.memory_space<vmem>>, vector<1x1x16x1xf32>
    %148 = vector.shape_cast %147 : vector<1x1x16x1xf32> to vector<1x16x1xf32>
    %149 = vector.shape_cast %146 : vector<1x16x1xf32> to vector<1x1x16x1xf32>
    tpu.vector_store %arg4[%c0_237, %c0_238, %c0_239, %c27], %149 {strides = array<i32>} : memref<1x1x16x64xf32, #tpu.memory_space<vmem>>, vector<1x1x16x1xf32>,
    %c0_240 = arith.constant 0 : index
    %c0_241 = arith.constant 0 : index
    %c1_242 = arith.constant 1 : index
    %c0_243 = arith.constant 0 : index
    %c14_244 = arith.constant 14 : index
    %150 = vector.load %arg3[%c0_240, %c0_241, %c1_242, %c0_243, %c14_244] : memref<1x1x4x16x16xf32, #tpu.memory_space<vmem>>, vector<1x1x1x16x1xf32>
    %151 = vector.shape_cast %150 : vector<1x1x1x16x1xf32> to vector<1x16x1xf32>
    %c0_245 = arith.constant 0 : index
    %c0_246 = arith.constant 0 : index
    %c0_247 = arith.constant 0 : index
    %c29 = arith.constant 29 : index
    %152 = vector.load %arg4[%c0_245, %c0_246, %c0_247, %c29] : memref<1x1x16x64xf32, #tpu.memory_space<vmem>>, vector<1x1x16x1xf32>
    %153 = vector.shape_cast %152 : vector<1x1x16x1xf32> to vector<1x16x1xf32>
    %154 = vector.shape_cast %151 : vector<1x16x1xf32> to vector<1x1x16x1xf32>
    tpu.vector_store %arg4[%c0_245, %c0_246, %c0_247, %c29], %154 {strides = array<i32>} : memref<1x1x16x64xf32, #tpu.memory_space<vmem>>, vector<1x1x16x1xf32>,
    %c0_248 = arith.constant 0 : index
    %c0_249 = arith.constant 0 : index
    %c1_250 = arith.constant 1 : index
    %c0_251 = arith.constant 0 : index
    %c15_252 = arith.constant 15 : index
    %155 = vector.load %arg3[%c0_248, %c0_249, %c1_250, %c0_251, %c15_252] : memref<1x1x4x16x16xf32, #tpu.memory_space<vmem>>, vector<1x1x1x16x1xf32>
    %156 = vector.shape_cast %155 : vector<1x1x1x16x1xf32> to vector<1x16x1xf32>
    %c0_253 = arith.constant 0 : index
    %c0_254 = arith.constant 0 : index
    %c0_255 = arith.constant 0 : index
    %c31 = arith.constant 31 : index
    %157 = vector.load %arg4[%c0_253, %c0_254, %c0_255, %c31] : memref<1x1x16x64xf32, #tpu.memory_space<vmem>>, vector<1x1x16x1xf32>
    %158 = vector.shape_cast %157 : vector<1x1x16x1xf32> to vector<1x16x1xf32>
    %159 = vector.shape_cast %156 : vector<1x16x1xf32> to vector<1x1x16x1xf32>
    tpu.vector_store %arg4[%c0_253, %c0_254, %c0_255, %c31], %159 {strides = array<i32>} : memref<1x1x16x64xf32, #tpu.memory_space<vmem>>, vector<1x1x16x1xf32>,
    %c0_256 = arith.constant 0 : index
    %c0_257 = arith.constant 0 : index
    %c2_258 = arith.constant 2 : index
    %c0_259 = arith.constant 0 : index
    %c0_260 = arith.constant 0 : index
    %160 = vector.load %arg3[%c0_256, %c0_257, %c2_258, %c0_259, %c0_260] : memref<1x1x4x16x16xf32, #tpu.memory_space<vmem>>, vector<1x1x1x16x1xf32>
    %161 = vector.shape_cast %160 : vector<1x1x1x16x1xf32> to vector<1x16x1xf32>
    %c0_261 = arith.constant 0 : index
    %c0_262 = arith.constant 0 : index
    %c0_263 = arith.constant 0 : index
    %c32 = arith.constant 32 : index
    %162 = vector.load %arg4[%c0_261, %c0_262, %c0_263, %c32] : memref<1x1x16x64xf32, #tpu.memory_space<vmem>>, vector<1x1x16x1xf32>
    %163 = vector.shape_cast %162 : vector<1x1x16x1xf32> to vector<1x16x1xf32>
    %164 = vector.shape_cast %161 : vector<1x16x1xf32> to vector<1x1x16x1xf32>
    tpu.vector_store %arg4[%c0_261, %c0_262, %c0_263, %c32], %164 {strides = array<i32>} : memref<1x1x16x64xf32, #tpu.memory_space<vmem>>, vector<1x1x16x1xf32>,
    %c0_264 = arith.constant 0 : index
    %c0_265 = arith.constant 0 : index
    %c2_266 = arith.constant 2 : index
    %c0_267 = arith.constant 0 : index
    %c1_268 = arith.constant 1 : index
    %165 = vector.load %arg3[%c0_264, %c0_265, %c2_266, %c0_267, %c1_268] : memref<1x1x4x16x16xf32, #tpu.memory_space<vmem>>, vector<1x1x1x16x1xf32>
    %166 = vector.shape_cast %165 : vector<1x1x1x16x1xf32> to vector<1x16x1xf32>
    %c0_269 = arith.constant 0 : index
    %c0_270 = arith.constant 0 : index
    %c0_271 = arith.constant 0 : index
    %c34 = arith.constant 34 : index
    %167 = vector.load %arg4[%c0_269, %c0_270, %c0_271, %c34] : memref<1x1x16x64xf32, #tpu.memory_space<vmem>>, vector<1x1x16x1xf32>
    %168 = vector.shape_cast %167 : vector<1x1x16x1xf32> to vector<1x16x1xf32>
    %169 = vector.shape_cast %166 : vector<1x16x1xf32> to vector<1x1x16x1xf32>
    tpu.vector_store %arg4[%c0_269, %c0_270, %c0_271, %c34], %169 {strides = array<i32>} : memref<1x1x16x64xf32, #tpu.memory_space<vmem>>, vector<1x1x16x1xf32>,
    %c0_272 = arith.constant 0 : index
    %c0_273 = arith.constant 0 : index
    %c2_274 = arith.constant 2 : index
    %c0_275 = arith.constant 0 : index
    %c2_276 = arith.constant 2 : index
    %170 = vector.load %arg3[%c0_272, %c0_273, %c2_274, %c0_275, %c2_276] : memref<1x1x4x16x16xf32, #tpu.memory_space<vmem>>, vector<1x1x1x16x1xf32>
    %171 = vector.shape_cast %170 : vector<1x1x1x16x1xf32> to vector<1x16x1xf32>
    %c0_277 = arith.constant 0 : index
    %c0_278 = arith.constant 0 : index
    %c0_279 = arith.constant 0 : index
    %c36 = arith.constant 36 : index
    %172 = vector.load %arg4[%c0_277, %c0_278, %c0_279, %c36] : memref<1x1x16x64xf32, #tpu.memory_space<vmem>>, vector<1x1x16x1xf32>
    %173 = vector.shape_cast %172 : vector<1x1x16x1xf32> to vector<1x16x1xf32>
    %174 = vector.shape_cast %171 : vector<1x16x1xf32> to vector<1x1x16x1xf32>
    tpu.vector_store %arg4[%c0_277, %c0_278, %c0_279, %c36], %174 {strides = array<i32>} : memref<1x1x16x64xf32, #tpu.memory_space<vmem>>, vector<1x1x16x1xf32>,
    %c0_280 = arith.constant 0 : index
    %c0_281 = arith.constant 0 : index
    %c2_282 = arith.constant 2 : index
    %c0_283 = arith.constant 0 : index
    %c3_284 = arith.constant 3 : index
    %175 = vector.load %arg3[%c0_280, %c0_281, %c2_282, %c0_283, %c3_284] : memref<1x1x4x16x16xf32, #tpu.memory_space<vmem>>, vector<1x1x1x16x1xf32>
    %176 = vector.shape_cast %175 : vector<1x1x1x16x1xf32> to vector<1x16x1xf32>
    %c0_285 = arith.constant 0 : index
    %c0_286 = arith.constant 0 : index
    %c0_287 = arith.constant 0 : index
    %c38 = arith.constant 38 : index
    %177 = vector.load %arg4[%c0_285, %c0_286, %c0_287, %c38] : memref<1x1x16x64xf32, #tpu.memory_space<vmem>>, vector<1x1x16x1xf32>
    %178 = vector.shape_cast %177 : vector<1x1x16x1xf32> to vector<1x16x1xf32>
    %179 = vector.shape_cast %176 : vector<1x16x1xf32> to vector<1x1x16x1xf32>
    tpu.vector_store %arg4[%c0_285, %c0_286, %c0_287, %c38], %179 {strides = array<i32>} : memref<1x1x16x64xf32, #tpu.memory_space<vmem>>, vector<1x1x16x1xf32>,
    %c0_288 = arith.constant 0 : index
    %c0_289 = arith.constant 0 : index
    %c2_290 = arith.constant 2 : index
    %c0_291 = arith.constant 0 : index
    %c4_292 = arith.constant 4 : index
    %180 = vector.load %arg3[%c0_288, %c0_289, %c2_290, %c0_291, %c4_292] : memref<1x1x4x16x16xf32, #tpu.memory_space<vmem>>, vector<1x1x1x16x1xf32>
    %181 = vector.shape_cast %180 : vector<1x1x1x16x1xf32> to vector<1x16x1xf32>
    %c0_293 = arith.constant 0 : index
    %c0_294 = arith.constant 0 : index
    %c0_295 = arith.constant 0 : index
    %c40 = arith.constant 40 : index
    %182 = vector.load %arg4[%c0_293, %c0_294, %c0_295, %c40] : memref<1x1x16x64xf32, #tpu.memory_space<vmem>>, vector<1x1x16x1xf32>
    %183 = vector.shape_cast %182 : vector<1x1x16x1xf32> to vector<1x16x1xf32>
    %184 = vector.shape_cast %181 : vector<1x16x1xf32> to vector<1x1x16x1xf32>
    tpu.vector_store %arg4[%c0_293, %c0_294, %c0_295, %c40], %184 {strides = array<i32>} : memref<1x1x16x64xf32, #tpu.memory_space<vmem>>, vector<1x1x16x1xf32>,
    %c0_296 = arith.constant 0 : index
    %c0_297 = arith.constant 0 : index
    %c2_298 = arith.constant 2 : index
    %c0_299 = arith.constant 0 : index
    %c5_300 = arith.constant 5 : index
    %185 = vector.load %arg3[%c0_296, %c0_297, %c2_298, %c0_299, %c5_300] : memref<1x1x4x16x16xf32, #tpu.memory_space<vmem>>, vector<1x1x1x16x1xf32>
    %186 = vector.shape_cast %185 : vector<1x1x1x16x1xf32> to vector<1x16x1xf32>
    %c0_301 = arith.constant 0 : index
    %c0_302 = arith.constant 0 : index
    %c0_303 = arith.constant 0 : index
    %c42 = arith.constant 42 : index
    %187 = vector.load %arg4[%c0_301, %c0_302, %c0_303, %c42] : memref<1x1x16x64xf32, #tpu.memory_space<vmem>>, vector<1x1x16x1xf32>
    %188 = vector.shape_cast %187 : vector<1x1x16x1xf32> to vector<1x16x1xf32>
    %189 = vector.shape_cast %186 : vector<1x16x1xf32> to vector<1x1x16x1xf32>
    tpu.vector_store %arg4[%c0_301, %c0_302, %c0_303, %c42], %189 {strides = array<i32>} : memref<1x1x16x64xf32, #tpu.memory_space<vmem>>, vector<1x1x16x1xf32>,
    %c0_304 = arith.constant 0 : index
    %c0_305 = arith.constant 0 : index
    %c2_306 = arith.constant 2 : index
    %c0_307 = arith.constant 0 : index
    %c6_308 = arith.constant 6 : index
    %190 = vector.load %arg3[%c0_304, %c0_305, %c2_306, %c0_307, %c6_308] : memref<1x1x4x16x16xf32, #tpu.memory_space<vmem>>, vector<1x1x1x16x1xf32>
    %191 = vector.shape_cast %190 : vector<1x1x1x16x1xf32> to vector<1x16x1xf32>
    %c0_309 = arith.constant 0 : index
    %c0_310 = arith.constant 0 : index
    %c0_311 = arith.constant 0 : index
    %c44 = arith.constant 44 : index
    %192 = vector.load %arg4[%c0_309, %c0_310, %c0_311, %c44] : memref<1x1x16x64xf32, #tpu.memory_space<vmem>>, vector<1x1x16x1xf32>
    %193 = vector.shape_cast %192 : vector<1x1x16x1xf32> to vector<1x16x1xf32>
    %194 = vector.shape_cast %191 : vector<1x16x1xf32> to vector<1x1x16x1xf32>
    tpu.vector_store %arg4[%c0_309, %c0_310, %c0_311, %c44], %194 {strides = array<i32>} : memref<1x1x16x64xf32, #tpu.memory_space<vmem>>, vector<1x1x16x1xf32>,
    %c0_312 = arith.constant 0 : index
    %c0_313 = arith.constant 0 : index
    %c2_314 = arith.constant 2 : index
    %c0_315 = arith.constant 0 : index
    %c7_316 = arith.constant 7 : index
    %195 = vector.load %arg3[%c0_312, %c0_313, %c2_314, %c0_315, %c7_316] : memref<1x1x4x16x16xf32, #tpu.memory_space<vmem>>, vector<1x1x1x16x1xf32>
    %196 = vector.shape_cast %195 : vector<1x1x1x16x1xf32> to vector<1x16x1xf32>
    %c0_317 = arith.constant 0 : index
    %c0_318 = arith.constant 0 : index
    %c0_319 = arith.constant 0 : index
    %c46 = arith.constant 46 : index
    %197 = vector.load %arg4[%c0_317, %c0_318, %c0_319, %c46] : memref<1x1x16x64xf32, #tpu.memory_space<vmem>>, vector<1x1x16x1xf32>
    %198 = vector.shape_cast %197 : vector<1x1x16x1xf32> to vector<1x16x1xf32>
    %199 = vector.shape_cast %196 : vector<1x16x1xf32> to vector<1x1x16x1xf32>
    tpu.vector_store %arg4[%c0_317, %c0_318, %c0_319, %c46], %199 {strides = array<i32>} : memref<1x1x16x64xf32, #tpu.memory_space<vmem>>, vector<1x1x16x1xf32>,
    %c0_320 = arith.constant 0 : index
    %c0_321 = arith.constant 0 : index
    %c2_322 = arith.constant 2 : index
    %c0_323 = arith.constant 0 : index
    %c8_324 = arith.constant 8 : index
    %200 = vector.load %arg3[%c0_320, %c0_321, %c2_322, %c0_323, %c8_324] : memref<1x1x4x16x16xf32, #tpu.memory_space<vmem>>, vector<1x1x1x16x1xf32>
    %201 = vector.shape_cast %200 : vector<1x1x1x16x1xf32> to vector<1x16x1xf32>
    %c0_325 = arith.constant 0 : index
    %c0_326 = arith.constant 0 : index
    %c0_327 = arith.constant 0 : index
    %c48 = arith.constant 48 : index
    %202 = vector.load %arg4[%c0_325, %c0_326, %c0_327, %c48] : memref<1x1x16x64xf32, #tpu.memory_space<vmem>>, vector<1x1x16x1xf32>
    %203 = vector.shape_cast %202 : vector<1x1x16x1xf32> to vector<1x16x1xf32>
    %204 = vector.shape_cast %201 : vector<1x16x1xf32> to vector<1x1x16x1xf32>
    tpu.vector_store %arg4[%c0_325, %c0_326, %c0_327, %c48], %204 {strides = array<i32>} : memref<1x1x16x64xf32, #tpu.memory_space<vmem>>, vector<1x1x16x1xf32>,
    %c0_328 = arith.constant 0 : index
    %c0_329 = arith.constant 0 : index
    %c2_330 = arith.constant 2 : index
    %c0_331 = arith.constant 0 : index
    %c9_332 = arith.constant 9 : index
    %205 = vector.load %arg3[%c0_328, %c0_329, %c2_330, %c0_331, %c9_332] : memref<1x1x4x16x16xf32, #tpu.memory_space<vmem>>, vector<1x1x1x16x1xf32>
    %206 = vector.shape_cast %205 : vector<1x1x1x16x1xf32> to vector<1x16x1xf32>
    %c0_333 = arith.constant 0 : index
    %c0_334 = arith.constant 0 : index
    %c0_335 = arith.constant 0 : index
    %c50 = arith.constant 50 : index
    %207 = vector.load %arg4[%c0_333, %c0_334, %c0_335, %c50] : memref<1x1x16x64xf32, #tpu.memory_space<vmem>>, vector<1x1x16x1xf32>
    %208 = vector.shape_cast %207 : vector<1x1x16x1xf32> to vector<1x16x1xf32>
    %209 = vector.shape_cast %206 : vector<1x16x1xf32> to vector<1x1x16x1xf32>
    tpu.vector_store %arg4[%c0_333, %c0_334, %c0_335, %c50], %209 {strides = array<i32>} : memref<1x1x16x64xf32, #tpu.memory_space<vmem>>, vector<1x1x16x1xf32>,
    %c0_336 = arith.constant 0 : index
    %c0_337 = arith.constant 0 : index
    %c2_338 = arith.constant 2 : index
    %c0_339 = arith.constant 0 : index
    %c10_340 = arith.constant 10 : index
    %210 = vector.load %arg3[%c0_336, %c0_337, %c2_338, %c0_339, %c10_340] : memref<1x1x4x16x16xf32, #tpu.memory_space<vmem>>, vector<1x1x1x16x1xf32>
    %211 = vector.shape_cast %210 : vector<1x1x1x16x1xf32> to vector<1x16x1xf32>
    %c0_341 = arith.constant 0 : index
    %c0_342 = arith.constant 0 : index
    %c0_343 = arith.constant 0 : index
    %c52 = arith.constant 52 : index
    %212 = vector.load %arg4[%c0_341, %c0_342, %c0_343, %c52] : memref<1x1x16x64xf32, #tpu.memory_space<vmem>>, vector<1x1x16x1xf32>
    %213 = vector.shape_cast %212 : vector<1x1x16x1xf32> to vector<1x16x1xf32>
    %214 = vector.shape_cast %211 : vector<1x16x1xf32> to vector<1x1x16x1xf32>
    tpu.vector_store %arg4[%c0_341, %c0_342, %c0_343, %c52], %214 {strides = array<i32>} : memref<1x1x16x64xf32, #tpu.memory_space<vmem>>, vector<1x1x16x1xf32>,
    %c0_344 = arith.constant 0 : index
    %c0_345 = arith.constant 0 : index
    %c2_346 = arith.constant 2 : index
    %c0_347 = arith.constant 0 : index
    %c11_348 = arith.constant 11 : index
    %215 = vector.load %arg3[%c0_344, %c0_345, %c2_346, %c0_347, %c11_348] : memref<1x1x4x16x16xf32, #tpu.memory_space<vmem>>, vector<1x1x1x16x1xf32>
    %216 = vector.shape_cast %215 : vector<1x1x1x16x1xf32> to vector<1x16x1xf32>
    %c0_349 = arith.constant 0 : index
    %c0_350 = arith.constant 0 : index
    %c0_351 = arith.constant 0 : index
    %c54 = arith.constant 54 : index
    %217 = vector.load %arg4[%c0_349, %c0_350, %c0_351, %c54] : memref<1x1x16x64xf32, #tpu.memory_space<vmem>>, vector<1x1x16x1xf32>
    %218 = vector.shape_cast %217 : vector<1x1x16x1xf32> to vector<1x16x1xf32>
    %219 = vector.shape_cast %216 : vector<1x16x1xf32> to vector<1x1x16x1xf32>
    tpu.vector_store %arg4[%c0_349, %c0_350, %c0_351, %c54], %219 {strides = array<i32>} : memref<1x1x16x64xf32, #tpu.memory_space<vmem>>, vector<1x1x16x1xf32>,
    %c0_352 = arith.constant 0 : index
    %c0_353 = arith.constant 0 : index
    %c2_354 = arith.constant 2 : index
    %c0_355 = arith.constant 0 : index
    %c12_356 = arith.constant 12 : index
    %220 = vector.load %arg3[%c0_352, %c0_353, %c2_354, %c0_355, %c12_356] : memref<1x1x4x16x16xf32, #tpu.memory_space<vmem>>, vector<1x1x1x16x1xf32>
    %221 = vector.shape_cast %220 : vector<1x1x1x16x1xf32> to vector<1x16x1xf32>
    %c0_357 = arith.constant 0 : index
    %c0_358 = arith.constant 0 : index
    %c0_359 = arith.constant 0 : index
    %c56 = arith.constant 56 : index
    %222 = vector.load %arg4[%c0_357, %c0_358, %c0_359, %c56] : memref<1x1x16x64xf32, #tpu.memory_space<vmem>>, vector<1x1x16x1xf32>
    %223 = vector.shape_cast %222 : vector<1x1x16x1xf32> to vector<1x16x1xf32>
    %224 = vector.shape_cast %221 : vector<1x16x1xf32> to vector<1x1x16x1xf32>
    tpu.vector_store %arg4[%c0_357, %c0_358, %c0_359, %c56], %224 {strides = array<i32>} : memref<1x1x16x64xf32, #tpu.memory_space<vmem>>, vector<1x1x16x1xf32>,
    %c0_360 = arith.constant 0 : index
    %c0_361 = arith.constant 0 : index
    %c2_362 = arith.constant 2 : index
    %c0_363 = arith.constant 0 : index
    %c13_364 = arith.constant 13 : index
    %225 = vector.load %arg3[%c0_360, %c0_361, %c2_362, %c0_363, %c13_364] : memref<1x1x4x16x16xf32, #tpu.memory_space<vmem>>, vector<1x1x1x16x1xf32>
    %226 = vector.shape_cast %225 : vector<1x1x1x16x1xf32> to vector<1x16x1xf32>
    %c0_365 = arith.constant 0 : index
    %c0_366 = arith.constant 0 : index
    %c0_367 = arith.constant 0 : index
    %c58 = arith.constant 58 : index
    %227 = vector.load %arg4[%c0_365, %c0_366, %c0_367, %c58] : memref<1x1x16x64xf32, #tpu.memory_space<vmem>>, vector<1x1x16x1xf32>
    %228 = vector.shape_cast %227 : vector<1x1x16x1xf32> to vector<1x16x1xf32>
    %229 = vector.shape_cast %226 : vector<1x16x1xf32> to vector<1x1x16x1xf32>
    tpu.vector_store %arg4[%c0_365, %c0_366, %c0_367, %c58], %229 {strides = array<i32>} : memref<1x1x16x64xf32, #tpu.memory_space<vmem>>, vector<1x1x16x1xf32>,
    %c0_368 = arith.constant 0 : index
    %c0_369 = arith.constant 0 : index
    %c2_370 = arith.constant 2 : index
    %c0_371 = arith.constant 0 : index
    %c14_372 = arith.constant 14 : index
    %230 = vector.load %arg3[%c0_368, %c0_369, %c2_370, %c0_371, %c14_372] : memref<1x1x4x16x16xf32, #tpu.memory_space<vmem>>, vector<1x1x1x16x1xf32>
    %231 = vector.shape_cast %230 : vector<1x1x1x16x1xf32> to vector<1x16x1xf32>
    %c0_373 = arith.constant 0 : index
    %c0_374 = arith.constant 0 : index
    %c0_375 = arith.constant 0 : index
    %c60 = arith.constant 60 : index
    %232 = vector.load %arg4[%c0_373, %c0_374, %c0_375, %c60] : memref<1x1x16x64xf32, #tpu.memory_space<vmem>>, vector<1x1x16x1xf32>
    %233 = vector.shape_cast %232 : vector<1x1x16x1xf32> to vector<1x16x1xf32>
    %234 = vector.shape_cast %231 : vector<1x16x1xf32> to vector<1x1x16x1xf32>
    tpu.vector_store %arg4[%c0_373, %c0_374, %c0_375, %c60], %234 {strides = array<i32>} : memref<1x1x16x64xf32, #tpu.memory_space<vmem>>, vector<1x1x16x1xf32>,
    %c0_376 = arith.constant 0 : index
    %c0_377 = arith.constant 0 : index
    %c2_378 = arith.constant 2 : index
    %c0_379 = arith.constant 0 : index
    %c15_380 = arith.constant 15 : index
    %235 = vector.load %arg3[%c0_376, %c0_377, %c2_378, %c0_379, %c15_380] : memref<1x1x4x16x16xf32, #tpu.memory_space<vmem>>, vector<1x1x1x16x1xf32>
    %236 = vector.shape_cast %235 : vector<1x1x1x16x1xf32> to vector<1x16x1xf32>
    %c0_381 = arith.constant 0 : index
    %c0_382 = arith.constant 0 : index
    %c0_383 = arith.constant 0 : index
    %c62 = arith.constant 62 : index
    %237 = vector.load %arg4[%c0_381, %c0_382, %c0_383, %c62] : memref<1x1x16x64xf32, #tpu.memory_space<vmem>>, vector<1x1x16x1xf32>
    %238 = vector.shape_cast %237 : vector<1x1x16x1xf32> to vector<1x16x1xf32>
    %239 = vector.shape_cast %236 : vector<1x16x1xf32> to vector<1x1x16x1xf32>
    tpu.vector_store %arg4[%c0_381, %c0_382, %c0_383, %c62], %239 {strides = array<i32>} : memref<1x1x16x64xf32, #tpu.memory_space<vmem>>, vector<1x1x16x1xf32>,
    %c0_384 = arith.constant 0 : index
    %c0_385 = arith.constant 0 : index
    %c3_386 = arith.constant 3 : index
    %c0_387 = arith.constant 0 : index
    %c0_388 = arith.constant 0 : index
    %240 = vector.load %arg3[%c0_384, %c0_385, %c3_386, %c0_387, %c0_388] : memref<1x1x4x16x16xf32, #tpu.memory_space<vmem>>, vector<1x1x1x16x1xf32>
    %241 = vector.shape_cast %240 : vector<1x1x1x16x1xf32> to vector<1x16x1xf32>
    %c0_389 = arith.constant 0 : index
    %c0_390 = arith.constant 0 : index
    %c0_391 = arith.constant 0 : index
    %c33 = arith.constant 33 : index
    %242 = vector.load %arg4[%c0_389, %c0_390, %c0_391, %c33] : memref<1x1x16x64xf32, #tpu.memory_space<vmem>>, vector<1x1x16x1xf32>
    %243 = vector.shape_cast %242 : vector<1x1x16x1xf32> to vector<1x16x1xf32>
    %244 = vector.shape_cast %241 : vector<1x16x1xf32> to vector<1x1x16x1xf32>
    tpu.vector_store %arg4[%c0_389, %c0_390, %c0_391, %c33], %244 {strides = array<i32>} : memref<1x1x16x64xf32, #tpu.memory_space<vmem>>, vector<1x1x16x1xf32>,
    %c0_392 = arith.constant 0 : index
    %c0_393 = arith.constant 0 : index
    %c3_394 = arith.constant 3 : index
    %c0_395 = arith.constant 0 : index
    %c1_396 = arith.constant 1 : index
    %245 = vector.load %arg3[%c0_392, %c0_393, %c3_394, %c0_395, %c1_396] : memref<1x1x4x16x16xf32, #tpu.memory_space<vmem>>, vector<1x1x1x16x1xf32>
    %246 = vector.shape_cast %245 : vector<1x1x1x16x1xf32> to vector<1x16x1xf32>
    %c0_397 = arith.constant 0 : index
    %c0_398 = arith.constant 0 : index
    %c0_399 = arith.constant 0 : index
    %c35 = arith.constant 35 : index
    %247 = vector.load %arg4[%c0_397, %c0_398, %c0_399, %c35] : memref<1x1x16x64xf32, #tpu.memory_space<vmem>>, vector<1x1x16x1xf32>
    %248 = vector.shape_cast %247 : vector<1x1x16x1xf32> to vector<1x16x1xf32>
    %249 = vector.shape_cast %246 : vector<1x16x1xf32> to vector<1x1x16x1xf32>
    tpu.vector_store %arg4[%c0_397, %c0_398, %c0_399, %c35], %249 {strides = array<i32>} : memref<1x1x16x64xf32, #tpu.memory_space<vmem>>, vector<1x1x16x1xf32>,
    %c0_400 = arith.constant 0 : index
    %c0_401 = arith.constant 0 : index
    %c3_402 = arith.constant 3 : index
    %c0_403 = arith.constant 0 : index
    %c2_404 = arith.constant 2 : index
    %250 = vector.load %arg3[%c0_400, %c0_401, %c3_402, %c0_403, %c2_404] : memref<1x1x4x16x16xf32, #tpu.memory_space<vmem>>, vector<1x1x1x16x1xf32>
    %251 = vector.shape_cast %250 : vector<1x1x1x16x1xf32> to vector<1x16x1xf32>
    %c0_405 = arith.constant 0 : index
    %c0_406 = arith.constant 0 : index
    %c0_407 = arith.constant 0 : index
    %c37 = arith.constant 37 : index
    %252 = vector.load %arg4[%c0_405, %c0_406, %c0_407, %c37] : memref<1x1x16x64xf32, #tpu.memory_space<vmem>>, vector<1x1x16x1xf32>
    %253 = vector.shape_cast %252 : vector<1x1x16x1xf32> to vector<1x16x1xf32>
    %254 = vector.shape_cast %251 : vector<1x16x1xf32> to vector<1x1x16x1xf32>
    tpu.vector_store %arg4[%c0_405, %c0_406, %c0_407, %c37], %254 {strides = array<i32>} : memref<1x1x16x64xf32, #tpu.memory_space<vmem>>, vector<1x1x16x1xf32>,
    %c0_408 = arith.constant 0 : index
    %c0_409 = arith.constant 0 : index
    %c3_410 = arith.constant 3 : index
    %c0_411 = arith.constant 0 : index
    %c3_412 = arith.constant 3 : index
    %255 = vector.load %arg3[%c0_408, %c0_409, %c3_410, %c0_411, %c3_412] : memref<1x1x4x16x16xf32, #tpu.memory_space<vmem>>, vector<1x1x1x16x1xf32>
    %256 = vector.shape_cast %255 : vector<1x1x1x16x1xf32> to vector<1x16x1xf32>
    %c0_413 = arith.constant 0 : index
    %c0_414 = arith.constant 0 : index
    %c0_415 = arith.constant 0 : index
    %c39 = arith.constant 39 : index
    %257 = vector.load %arg4[%c0_413, %c0_414, %c0_415, %c39] : memref<1x1x16x64xf32, #tpu.memory_space<vmem>>, vector<1x1x16x1xf32>
    %258 = vector.shape_cast %257 : vector<1x1x16x1xf32> to vector<1x16x1xf32>
    %259 = vector.shape_cast %256 : vector<1x16x1xf32> to vector<1x1x16x1xf32>
    tpu.vector_store %arg4[%c0_413, %c0_414, %c0_415, %c39], %259 {strides = array<i32>} : memref<1x1x16x64xf32, #tpu.memory_space<vmem>>, vector<1x1x16x1xf32>,
    %c0_416 = arith.constant 0 : index
    %c0_417 = arith.constant 0 : index
    %c3_418 = arith.constant 3 : index
    %c0_419 = arith.constant 0 : index
    %c4_420 = arith.constant 4 : index
    %260 = vector.load %arg3[%c0_416, %c0_417, %c3_418, %c0_419, %c4_420] : memref<1x1x4x16x16xf32, #tpu.memory_space<vmem>>, vector<1x1x1x16x1xf32>
    %261 = vector.shape_cast %260 : vector<1x1x1x16x1xf32> to vector<1x16x1xf32>
    %c0_421 = arith.constant 0 : index
    %c0_422 = arith.constant 0 : index
    %c0_423 = arith.constant 0 : index
    %c41 = arith.constant 41 : index
    %262 = vector.load %arg4[%c0_421, %c0_422, %c0_423, %c41] : memref<1x1x16x64xf32, #tpu.memory_space<vmem>>, vector<1x1x16x1xf32>
    %263 = vector.shape_cast %262 : vector<1x1x16x1xf32> to vector<1x16x1xf32>
    %264 = vector.shape_cast %261 : vector<1x16x1xf32> to vector<1x1x16x1xf32>
    tpu.vector_store %arg4[%c0_421, %c0_422, %c0_423, %c41], %264 {strides = array<i32>} : memref<1x1x16x64xf32, #tpu.memory_space<vmem>>, vector<1x1x16x1xf32>,
    %c0_424 = arith.constant 0 : index
    %c0_425 = arith.constant 0 : index
    %c3_426 = arith.constant 3 : index
    %c0_427 = arith.constant 0 : index
    %c5_428 = arith.constant 5 : index
    %265 = vector.load %arg3[%c0_424, %c0_425, %c3_426, %c0_427, %c5_428] : memref<1x1x4x16x16xf32, #tpu.memory_space<vmem>>, vector<1x1x1x16x1xf32>
    %266 = vector.shape_cast %265 : vector<1x1x1x16x1xf32> to vector<1x16x1xf32>
    %c0_429 = arith.constant 0 : index
    %c0_430 = arith.constant 0 : index
    %c0_431 = arith.constant 0 : index
    %c43 = arith.constant 43 : index
    %267 = vector.load %arg4[%c0_429, %c0_430, %c0_431, %c43] : memref<1x1x16x64xf32, #tpu.memory_space<vmem>>, vector<1x1x16x1xf32>
    %268 = vector.shape_cast %267 : vector<1x1x16x1xf32> to vector<1x16x1xf32>
    %269 = vector.shape_cast %266 : vector<1x16x1xf32> to vector<1x1x16x1xf32>
    tpu.vector_store %arg4[%c0_429, %c0_430, %c0_431, %c43], %269 {strides = array<i32>} : memref<1x1x16x64xf32, #tpu.memory_space<vmem>>, vector<1x1x16x1xf32>,
    %c0_432 = arith.constant 0 : index
    %c0_433 = arith.constant 0 : index
    %c3_434 = arith.constant 3 : index
    %c0_435 = arith.constant 0 : index
    %c6_436 = arith.constant 6 : index
    %270 = vector.load %arg3[%c0_432, %c0_433, %c3_434, %c0_435, %c6_436] : memref<1x1x4x16x16xf32, #tpu.memory_space<vmem>>, vector<1x1x1x16x1xf32>
    %271 = vector.shape_cast %270 : vector<1x1x1x16x1xf32> to vector<1x16x1xf32>
    %c0_437 = arith.constant 0 : index
    %c0_438 = arith.constant 0 : index
    %c0_439 = arith.constant 0 : index
    %c45 = arith.constant 45 : index
    %272 = vector.load %arg4[%c0_437, %c0_438, %c0_439, %c45] : memref<1x1x16x64xf32, #tpu.memory_space<vmem>>, vector<1x1x16x1xf32>
    %273 = vector.shape_cast %272 : vector<1x1x16x1xf32> to vector<1x16x1xf32>
    %274 = vector.shape_cast %271 : vector<1x16x1xf32> to vector<1x1x16x1xf32>
    tpu.vector_store %arg4[%c0_437, %c0_438, %c0_439, %c45], %274 {strides = array<i32>} : memref<1x1x16x64xf32, #tpu.memory_space<vmem>>, vector<1x1x16x1xf32>,
    %c0_440 = arith.constant 0 : index
    %c0_441 = arith.constant 0 : index
    %c3_442 = arith.constant 3 : index
    %c0_443 = arith.constant 0 : index
    %c7_444 = arith.constant 7 : index
    %275 = vector.load %arg3[%c0_440, %c0_441, %c3_442, %c0_443, %c7_444] : memref<1x1x4x16x16xf32, #tpu.memory_space<vmem>>, vector<1x1x1x16x1xf32>
    %276 = vector.shape_cast %275 : vector<1x1x1x16x1xf32> to vector<1x16x1xf32>
    %c0_445 = arith.constant 0 : index
    %c0_446 = arith.constant 0 : index
    %c0_447 = arith.constant 0 : index
    %c47 = arith.constant 47 : index
    %277 = vector.load %arg4[%c0_445, %c0_446, %c0_447, %c47] : memref<1x1x16x64xf32, #tpu.memory_space<vmem>>, vector<1x1x16x1xf32>
    %278 = vector.shape_cast %277 : vector<1x1x16x1xf32> to vector<1x16x1xf32>
    %279 = vector.shape_cast %276 : vector<1x16x1xf32> to vector<1x1x16x1xf32>
    tpu.vector_store %arg4[%c0_445, %c0_446, %c0_447, %c47], %279 {strides = array<i32>} : memref<1x1x16x64xf32, #tpu.memory_space<vmem>>, vector<1x1x16x1xf32>,
    %c0_448 = arith.constant 0 : index
    %c0_449 = arith.constant 0 : index
    %c3_450 = arith.constant 3 : index
    %c0_451 = arith.constant 0 : index
    %c8_452 = arith.constant 8 : index
    %280 = vector.load %arg3[%c0_448, %c0_449, %c3_450, %c0_451, %c8_452] : memref<1x1x4x16x16xf32, #tpu.memory_space<vmem>>, vector<1x1x1x16x1xf32>
    %281 = vector.shape_cast %280 : vector<1x1x1x16x1xf32> to vector<1x16x1xf32>
    %c0_453 = arith.constant 0 : index
    %c0_454 = arith.constant 0 : index
    %c0_455 = arith.constant 0 : index
    %c49 = arith.constant 49 : index
    %282 = vector.load %arg4[%c0_453, %c0_454, %c0_455, %c49] : memref<1x1x16x64xf32, #tpu.memory_space<vmem>>, vector<1x1x16x1xf32>
    %283 = vector.shape_cast %282 : vector<1x1x16x1xf32> to vector<1x16x1xf32>
    %284 = vector.shape_cast %281 : vector<1x16x1xf32> to vector<1x1x16x1xf32>
    tpu.vector_store %arg4[%c0_453, %c0_454, %c0_455, %c49], %284 {strides = array<i32>} : memref<1x1x16x64xf32, #tpu.memory_space<vmem>>, vector<1x1x16x1xf32>,
    %c0_456 = arith.constant 0 : index
    %c0_457 = arith.constant 0 : index
    %c3_458 = arith.constant 3 : index
    %c0_459 = arith.constant 0 : index
    %c9_460 = arith.constant 9 : index
    %285 = vector.load %arg3[%c0_456, %c0_457, %c3_458, %c0_459, %c9_460] : memref<1x1x4x16x16xf32, #tpu.memory_space<vmem>>, vector<1x1x1x16x1xf32>
    %286 = vector.shape_cast %285 : vector<1x1x1x16x1xf32> to vector<1x16x1xf32>
    %c0_461 = arith.constant 0 : index
    %c0_462 = arith.constant 0 : index
    %c0_463 = arith.constant 0 : index
    %c51 = arith.constant 51 : index
    %287 = vector.load %arg4[%c0_461, %c0_462, %c0_463, %c51] : memref<1x1x16x64xf32, #tpu.memory_space<vmem>>, vector<1x1x16x1xf32>
    %288 = vector.shape_cast %287 : vector<1x1x16x1xf32> to vector<1x16x1xf32>
    %289 = vector.shape_cast %286 : vector<1x16x1xf32> to vector<1x1x16x1xf32>
    tpu.vector_store %arg4[%c0_461, %c0_462, %c0_463, %c51], %289 {strides = array<i32>} : memref<1x1x16x64xf32, #tpu.memory_space<vmem>>, vector<1x1x16x1xf32>,
    %c0_464 = arith.constant 0 : index
    %c0_465 = arith.constant 0 : index
    %c3_466 = arith.constant 3 : index
    %c0_467 = arith.constant 0 : index
    %c10_468 = arith.constant 10 : index
    %290 = vector.load %arg3[%c0_464, %c0_465, %c3_466, %c0_467, %c10_468] : memref<1x1x4x16x16xf32, #tpu.memory_space<vmem>>, vector<1x1x1x16x1xf32>
    %291 = vector.shape_cast %290 : vector<1x1x1x16x1xf32> to vector<1x16x1xf32>
    %c0_469 = arith.constant 0 : index
    %c0_470 = arith.constant 0 : index
    %c0_471 = arith.constant 0 : index
    %c53 = arith.constant 53 : index
    %292 = vector.load %arg4[%c0_469, %c0_470, %c0_471, %c53] : memref<1x1x16x64xf32, #tpu.memory_space<vmem>>, vector<1x1x16x1xf32>
    %293 = vector.shape_cast %292 : vector<1x1x16x1xf32> to vector<1x16x1xf32>
    %294 = vector.shape_cast %291 : vector<1x16x1xf32> to vector<1x1x16x1xf32>
    tpu.vector_store %arg4[%c0_469, %c0_470, %c0_471, %c53], %294 {strides = array<i32>} : memref<1x1x16x64xf32, #tpu.memory_space<vmem>>, vector<1x1x16x1xf32>,
    %c0_472 = arith.constant 0 : index
    %c0_473 = arith.constant 0 : index
    %c3_474 = arith.constant 3 : index
    %c0_475 = arith.constant 0 : index
    %c11_476 = arith.constant 11 : index
    %295 = vector.load %arg3[%c0_472, %c0_473, %c3_474, %c0_475, %c11_476] : memref<1x1x4x16x16xf32, #tpu.memory_space<vmem>>, vector<1x1x1x16x1xf32>
    %296 = vector.shape_cast %295 : vector<1x1x1x16x1xf32> to vector<1x16x1xf32>
    %c0_477 = arith.constant 0 : index
    %c0_478 = arith.constant 0 : index
    %c0_479 = arith.constant 0 : index
    %c55 = arith.constant 55 : index
    %297 = vector.load %arg4[%c0_477, %c0_478, %c0_479, %c55] : memref<1x1x16x64xf32, #tpu.memory_space<vmem>>, vector<1x1x16x1xf32>
    %298 = vector.shape_cast %297 : vector<1x1x16x1xf32> to vector<1x16x1xf32>
    %299 = vector.shape_cast %296 : vector<1x16x1xf32> to vector<1x1x16x1xf32>
    tpu.vector_store %arg4[%c0_477, %c0_478, %c0_479, %c55], %299 {strides = array<i32>} : memref<1x1x16x64xf32, #tpu.memory_space<vmem>>, vector<1x1x16x1xf32>,
    %c0_480 = arith.constant 0 : index
    %c0_481 = arith.constant 0 : index
    %c3_482 = arith.constant 3 : index
    %c0_483 = arith.constant 0 : index
    %c12_484 = arith.constant 12 : index
    %300 = vector.load %arg3[%c0_480, %c0_481, %c3_482, %c0_483, %c12_484] : memref<1x1x4x16x16xf32, #tpu.memory_space<vmem>>, vector<1x1x1x16x1xf32>
    %301 = vector.shape_cast %300 : vector<1x1x1x16x1xf32> to vector<1x16x1xf32>
    %c0_485 = arith.constant 0 : index
    %c0_486 = arith.constant 0 : index
    %c0_487 = arith.constant 0 : index
    %c57 = arith.constant 57 : index
    %302 = vector.load %arg4[%c0_485, %c0_486, %c0_487, %c57] : memref<1x1x16x64xf32, #tpu.memory_space<vmem>>, vector<1x1x16x1xf32>
    %303 = vector.shape_cast %302 : vector<1x1x16x1xf32> to vector<1x16x1xf32>
    %304 = vector.shape_cast %301 : vector<1x16x1xf32> to vector<1x1x16x1xf32>
    tpu.vector_store %arg4[%c0_485, %c0_486, %c0_487, %c57], %304 {strides = array<i32>} : memref<1x1x16x64xf32, #tpu.memory_space<vmem>>, vector<1x1x16x1xf32>,
    %c0_488 = arith.constant 0 : index
    %c0_489 = arith.constant 0 : index
    %c3_490 = arith.constant 3 : index
    %c0_491 = arith.constant 0 : index
    %c13_492 = arith.constant 13 : index
    %305 = vector.load %arg3[%c0_488, %c0_489, %c3_490, %c0_491, %c13_492] : memref<1x1x4x16x16xf32, #tpu.memory_space<vmem>>, vector<1x1x1x16x1xf32>
    %306 = vector.shape_cast %305 : vector<1x1x1x16x1xf32> to vector<1x16x1xf32>
    %c0_493 = arith.constant 0 : index
    %c0_494 = arith.constant 0 : index
    %c0_495 = arith.constant 0 : index
    %c59 = arith.constant 59 : index
    %307 = vector.load %arg4[%c0_493, %c0_494, %c0_495, %c59] : memref<1x1x16x64xf32, #tpu.memory_space<vmem>>, vector<1x1x16x1xf32>
    %308 = vector.shape_cast %307 : vector<1x1x16x1xf32> to vector<1x16x1xf32>
    %309 = vector.shape_cast %306 : vector<1x16x1xf32> to vector<1x1x16x1xf32>
    tpu.vector_store %arg4[%c0_493, %c0_494, %c0_495, %c59], %309 {strides = array<i32>} : memref<1x1x16x64xf32, #tpu.memory_space<vmem>>, vector<1x1x16x1xf32>,
    %c0_496 = arith.constant 0 : index
    %c0_497 = arith.constant 0 : index
    %c3_498 = arith.constant 3 : index
    %c0_499 = arith.constant 0 : index
    %c14_500 = arith.constant 14 : index
    %310 = vector.load %arg3[%c0_496, %c0_497, %c3_498, %c0_499, %c14_500] : memref<1x1x4x16x16xf32, #tpu.memory_space<vmem>>, vector<1x1x1x16x1xf32>
    %311 = vector.shape_cast %310 : vector<1x1x1x16x1xf32> to vector<1x16x1xf32>
    %c0_501 = arith.constant 0 : index
    %c0_502 = arith.constant 0 : index
    %c0_503 = arith.constant 0 : index
    %c61 = arith.constant 61 : index
    %312 = vector.load %arg4[%c0_501, %c0_502, %c0_503, %c61] : memref<1x1x16x64xf32, #tpu.memory_space<vmem>>, vector<1x1x16x1xf32>
    %313 = vector.shape_cast %312 : vector<1x1x16x1xf32> to vector<1x16x1xf32>
    %314 = vector.shape_cast %311 : vector<1x16x1xf32> to vector<1x1x16x1xf32>
    tpu.vector_store %arg4[%c0_501, %c0_502, %c0_503, %c61], %314 {strides = array<i32>} : memref<1x1x16x64xf32, #tpu.memory_space<vmem>>, vector<1x1x16x1xf32>,
    %c0_504 = arith.constant 0 : index
    %c0_505 = arith.constant 0 : index
    %c3_506 = arith.constant 3 : index
    %c0_507 = arith.constant 0 : index
    %c15_508 = arith.constant 15 : index
    %315 = vector.load %arg3[%c0_504, %c0_505, %c3_506, %c0_507, %c15_508] : memref<1x1x4x16x16xf32, #tpu.memory_space<vmem>>, vector<1x1x1x16x1xf32>
    %316 = vector.shape_cast %315 : vector<1x1x1x16x1xf32> to vector<1x16x1xf32>
    %c0_509 = arith.constant 0 : index
    %c0_510 = arith.constant 0 : index
    %c0_511 = arith.constant 0 : index
    %c63 = arith.constant 63 : index
    %317 = vector.load %arg4[%c0_509, %c0_510, %c0_511, %c63] : memref<1x1x16x64xf32, #tpu.memory_space<vmem>>, vector<1x1x16x1xf32>
    %318 = vector.shape_cast %317 : vector<1x1x16x1xf32> to vector<1x16x1xf32>
    %319 = vector.shape_cast %316 : vector<1x16x1xf32> to vector<1x1x16x1xf32>
    tpu.vector_store %arg4[%c0_509, %c0_510, %c0_511, %c63], %319 {strides = array<i32>} : memref<1x1x16x64xf32, #tpu.memory_space<vmem>>, vector<1x1x16x1xf32>,
    return
  }
  func.func @transform_0(%arg0: i32, %arg1: i32, %arg2: i32) -> (i32, i32, i32, i32, i32) {
    %c0_i32 = arith.constant 0 : i32
    %c0_i32_0 = arith.constant 0 : i32
    %c0_i32_1 = arith.constant 0 : i32
    return %arg0, %arg1, %c0_i32, %arg2, %c0_i32_0 : i32, i32, i32, i32, i32
  }
  func.func @transform_1(%arg0: i32, %arg1: i32, %arg2: i32) -> (i32, i32, i32, i32) {
    %c0_i32 = arith.constant 0 : i32
    %c0_i32_0 = arith.constant 0 : i32
    return %arg0, %arg1, %arg2, %c0_i32 : i32, i32, i32, i32
  }
}

</mosaic_0001>

<llo_original>
// kernel: tpu_custom_call.1
$region0: #{tpu_custom_call.1}
  #allocation0 [shape = 'u32[]', space=smem, size = 0x4, offset = 0x4, fixed_abs, tag = 'smem constant byte address 0x4 - core index']
  #allocation1 [shape = 'u32[144,128]{1,0:T(1,128)}', space=vmem, size = 0x12000, scoped, tag = 'internal scratch']
  %s0 = inlined_call_operand.hbm [shape: f32[2,1,4,16,16], index: 0, kind: input, shape index: {}]
  %s1 = inlined_call_operand.hbm [shape: f32[2,1,16,64], index: 1, kind: output, shape index: {}]
  %s2 = sld [smem:[#allocation0]]
  $region41: #{tpu_custom_call.1} parent=0
    _
  %s4 = ssub.s32 1, %s2
  %s5 = scalar_select 0, %s4, %s2
  $region1: #{tpu_custom_call.1} parent=0
    #allocation2 [shape = 'u8[65536]{0}', space=vmem, size = 0x10000, scoped, tag = 'input window, operand 0']
    #allocation3 [shape = 's32[2]{0}', space=sflag, size = 0x8, scoped, tag = 'scoped memory for tpu_custom_call.1']
    #allocation4 [shape = 's32[2]{0}', space=sflag, size = 0x8, scoped, tag = 'scoped memory for tpu_custom_call.1']
    #allocation5 [shape = 'u8[16384]{0}', space=vmem, size = 0x4000, scoped, tag = 'output window, operand 0']
    %6 = vsyncpa [#allocation3], 0
    %s7 = scalar_lea.sflag [#allocation3], 1
    %8 = vsyncpa %s7, 0
    %9 = vsyncpa [#allocation4], 0
    %s10 = scalar_lea.sflag [#allocation4], 1
    %11 = vsyncpa %s10, 0
    loop: start=0, step=1, limit=4
    $region2: #{tpu_custom_call.1} parent=1 // loop_pre_header
      _
    $region3: #{tpu_custom_call.1} parent=1 // loop_header
      %s13 = sphi 0, %s17
      %p14 = scmp.ge.s32.totalorder %s13, 4
      %s20 = sphi 0, %s39
      %s21 = sphi 0, %s35
      %s22 = sphi 0, %s31
      %s23 = sphi 0, %s20
      %s24 = sphi 0, %s21
      %s25 = sphi 0, %s22
      %s26 = sphi 0, %s23
      %s27 = sphi 0, %s24
      %s28 = sphi 0, %s25
      %s46 = sphi 0, %s48
      %s49 = sphi 0, %s46
      %s50 = sphi 0, %s49
      %s66 = sphi 0, %s50
      %s76 = sphi 0, %s78
      %s79 = sphi 0, %s76
      %s80 = sphi 0, %s79
      %s96 = sphi 0, %s80
    $region4: #{tpu_custom_call.1} parent=1 // loop_header_branch
      %16 = sbr.rel (%p14) target = $region8
    $region5: #{tpu_custom_call.1} parent=1 // loop_body
      %s18 = ssub.s32 %s13, 1
      %s19 = ssub.s32 %s13, 2
      %s29 = sadd.s32 1, %s22
      %p30 = scmp.ge.s32.totalorder %s29, 1
      %s31 = scalar_select %p30, 0, %s29
      %s32 = sadd.s32 1, %s21
      %s33 = scalar_select %p30, %s32, %s21
      %p34 = scmp.ge.s32.totalorder %s33, 1
      %s35 = scalar_select %p34, 0, %s33
      %s36 = sadd.s32 1, %s20
      %s37 = scalar_select %p34, %s36, %s20
      %p38 = scmp.ge.s32.totalorder %s37, 2
      %s39 = scalar_select %p38, 0, %s37
      %s40 = ssub.s32 %s20, %s39
      %s41 = ssub.s32 %s21, %s35
      %s42 = sor.u32 %s40, %s41
      %s43 = ssub.s32 %s22, %s31
      %s44 = sor.u32 %s42, %s43
      %p45 = scmp.eq.s32.totalorder %s44, 0
      %s47 = sadd.s32 %s46, 1
      %s48 = scalar_select %p45, %s46, %s47
      %p51 = pneg %p45
      %p52 = scmp.eq.s32.totalorder %s13, 1
      %p53 = por %p51, %p52
      %p54 = scmp.ne.s32.totalorder %s46, %s49
      %p55 = scmp.eq.s32.totalorder %s13, 0
      %p56 = por %p54, %p55
      %p57 = scmp.ne.s32.totalorder %s46, %s49
      %p58 = scmp.eq.s32.totalorder %s18, 1
      %p59 = por %p57, %p58
      %p60 = scmp.ne.s32.totalorder %s49, %s50
      %p61 = scmp.eq.s32.totalorder %s18, 0
      %p62 = por %p60, %p61
      %p63 = scmp.ne.s32.totalorder %s49, %s50
      %p64 = scmp.eq.s32.totalorder %s19, 1
      %p65 = por %p63, %p64
      %p67 = scmp.ne.s32.totalorder %s50, %s66
      %p68 = scmp.eq.s32.totalorder %s19, 0
      %p69 = por %p67, %p68
      %s70 = ssub.s32 %s20, %s39
      %s71 = ssub.s32 %s21, %s35
      %s72 = sor.u32 %s70, %s71
      %s73 = ssub.s32 %s22, %s31
      %s74 = sor.u32 %s72, %s73
      %p75 = scmp.eq.s32.totalorder %s74, 0
      %s77 = sadd.s32 %s76, 1
      %s78 = scalar_select %p75, %s76, %s77
      %p81 = pneg %p75
      %p82 = scmp.eq.s32.totalorder %s13, 1
      %p83 = por %p81, %p82
      %p84 = scmp.ne.s32.totalorder %s76, %s79
      %p85 = scmp.eq.s32.totalorder %s13, 0
      %p86 = por %p84, %p85
      %p87 = scmp.ne.s32.totalorder %s76, %s79
      %p88 = scmp.eq.s32.totalorder %s18, 1
      %p89 = por %p87, %p88
      %p90 = scmp.ne.s32.totalorder %s79, %s80
      %p91 = scmp.eq.s32.totalorder %s18, 0
      %p92 = por %p90, %p91
      %p93 = scmp.ne.s32.totalorder %s79, %s80
      %p94 = scmp.eq.s32.totalorder %s19, 1
      %p95 = por %p93, %p94
      %p97 = scmp.ne.s32.totalorder %s80, %s96
      %p98 = scmp.eq.s32.totalorder %s19, 0
      %p99 = por %p97, %p98
      %p100 = scmp.le.s32.totalorder 1, %s13
      %p101 = scmp.lt.s32.totalorder %s13, 3
      %p102 = pnand %p100, %p101
      %p103 = pneg %p102
      // Predicated region
      $region9: #{tpu_custom_call.1} parent=5 // pred_check
        _
      $region10: #{tpu_custom_call.1} parent=5 // pred_check_branch
        %105 = sbr.rel (%p102) target = $region12
      $region11: #{tpu_custom_call.1} parent=5 // pred_region
        %s106 = ssub.s32 %s13, 1
      $region12: #{tpu_custom_call.1} parent=5 // pred_fallthru
        _
      %p107 = scmp.lt.s32.totalorder %s13, 2
      // Predicated region
      $region13: #{tpu_custom_call.1} parent=5 // pred_check
        %p108 = pneg %p107
      $region14: #{tpu_custom_call.1} parent=5 // pred_check_branch
        %110 = sbr.rel (%p108) target = $region16
      $region15: #{tpu_custom_call.1} parent=5 // pred_region
        // Predicated region
        $region17: #{tpu_custom_call.1} parent=15 // pred_check
          %p111 = pneg %p56
        $region18: #{tpu_custom_call.1} parent=15 // pred_check_branch
          %113 = sbr.rel (%p111) target = $region20
        $region19: #{tpu_custom_call.1} parent=15 // pred_region
          %s114 = sand.u32 %s46, 1
          %s115 = scalar_lea.sflag [#allocation3], %s114
          %s116 = sand.u32 %s46, 1
          %s117 = smul.addr %s116, 64
          %s118 = scalar_lea.vmem [#allocation2], %s117
          %s119 = smul.u32 2, %s22
          %s121 = ssub.s32 1024, 1024
          %122 = vsyncadd %s115, %s121
          %s123 = smul.addr %s21, 8
          %s124 = sadd.s32 %s119, %s123
          %s125 = smul.addr %s20, 8
          %s126 = sadd.s32 %s124, %s125
          %s127 = smul.addr %s126, 128
          %s128 = scalar_lea.hbm %s0, %s127
          %s129 = sshll.u32 %s118, 4
          %s130 = int_to_ptr.vmem [resolvable:$true] %s129
          %135 = dma.hbm_to_vmem [thread:$0]  %s128, 1024, %s130, %s115, 128, 128, 8
        $region20: #{tpu_custom_call.1} parent=15 // pred_fallthru
          _
      $region16: #{tpu_custom_call.1} parent=5 // pred_fallthru
        _
      %p136 = scmp.le.s32.totalorder 1, %s13
      %p137 = scmp.lt.s32.totalorder %s13, 3
      %p138 = pnand %p136, %p137
      %p139 = pneg %p138
      // Predicated region
      $region21: #{tpu_custom_call.1} parent=5 // pred_check
        _
      $region22: #{tpu_custom_call.1} parent=5 // pred_check_branch
        %141 = sbr.rel (%p138) target = $region24
      $region23: #{tpu_custom_call.1} parent=5 // pred_region
        %s142 = ssub.s32 %s13, 1
        %s143 = sand.u32 %s49, 1
        %s144 = scalar_lea.sflag [#allocation3], %s143
        %s145 = sand.u32 %s49, 1
        %s146 = smul.addr %s145, 64
        %s147 = scalar_lea.vmem [#allocation2], %s146
        // Predicated region
        $region25: #{tpu_custom_call.1} parent=23 // pred_check
          %p148 = pneg %p62
        $region26: #{tpu_custom_call.1} parent=23 // pred_check_branch
          %150 = sbr.rel (%p148) target = $region28
        $region27: #{tpu_custom_call.1} parent=23 // pred_region
          %151 = dma.done %s144, 1024
        $region28: #{tpu_custom_call.1} parent=23 // pred_fallthru
          _
        %s152 = sand.u32 %s49, 1
        %s153 = scalar_lea.sflag [#allocation3], %s152
        %s154 = sand.u32 %s49, 1
        %s155 = smul.addr %s154, 64
        %s156 = scalar_lea.vmem [#allocation2], %s155
        %p157 = pneg %p62
        %p158 = pneg %p59
        %p159 = pneg %p92
        %p160 = pneg %p89
        %s161 = sand.u32 %s79, 1
        %s162 = scalar_lea.sflag [#allocation4], %s161
        %s163 = sand.u32 %s79, 1
        %s164 = smul.addr %s163, 16
        %s165 = scalar_lea.vmem [#allocation5], %s164
        %s166 = smul.u32 2, %s25
        %s167 = smul.u32 2, %s25
        %v168 = vlaneseq
        %v169 = vand.u32 %v168, 127
        %vm170 = vcmp.lt.s32.totalorder %v169, 0
        %v171 = vsub.s32 0, %v169
        %v172 = vsel %vm170, %v171, %v169
        %v173 = vshrl.u32 %v172, 1
        %v174 = vand.u32 %v172, 1
        %v175 = vsub.s32 0, %v174
        %v176 = vsel %vm170, %v175, %v174
        %vm177 = vcmp.ne.s32.totalorder %v176, 0
        %vm178 = vcmp.lt.s32.totalorder %v176, 0
        %vm179 = vmand %vm178, %vm177
        %v180 = vadd.s32 %v176, 2
        %v181 = vsel %vm179, %v180, %v176
        %vm182 = vcmp.eq.s32.totalorder %v181, 1
        %v183 = vld [vmem:[%s147] sm:$0xff]
        %v184 = vld [vmem:[%s147 + $0x8] sm:$0xff]
        %v185 = vlaneseq
        %v186 = vshrl.u32 %v185, 7
        %v187 = vsub.s32 0, %v186
        %v188 = vrot.slane %v183, %v187
        %190 = vbcast.lane.b32.xlu0 %v188, 256
        %v191 = vpop.permute.xlu0 %190
        %s193 = sor.u32 256, 8
        %194 = vbcast.lane.b32.xlu0 %v188, %s193
        %v195 = vpop.permute.xlu0 %194
        %v196 = vlaneseq
        %v197 = vshrl.u32 %v196, 7
        %v198 = vsub.s32 1, %v197
        %v199 = vrot.slane %v183, %v198
        %201 = vbcast.lane.b32.xlu0 %v199, 256
        %v202 = vpop.permute.xlu0 %201
        %s204 = sor.u32 256, 8
        %205 = vbcast.lane.b32.xlu0 %v199, %s204
        %v206 = vpop.permute.xlu0 %205
        %v207 = vlaneseq
        %v208 = vshrl.u32 %v207, 7
        %v209 = vsub.s32 2, %v208
        %v210 = vrot.slane %v183, %v209
        %212 = vbcast.lane.b32.xlu0 %v210, 256
        %v213 = vpop.permute.xlu0 %212
        %s215 = sor.u32 256, 8
        %216 = vbcast.lane.b32.xlu0 %v210, %s215
        %v217 = vpop.permute.xlu0 %216
        %v218 = vlaneseq
        %v219 = vshrl.u32 %v218, 7
        %v220 = vsub.s32 3, %v219
        %v221 = vrot.slane %v183, %v220
        %223 = vbcast.lane.b32.xlu0 %v221, 256
        %v224 = vpop.permute.xlu0 %223
        %s226 = sor.u32 256, 8
        %227 = vbcast.lane.b32.xlu0 %v221, %s226
        %v228 = vpop.permute.xlu0 %227
        %v229 = vlaneseq
        %v230 = vshrl.u32 %v229, 7
        %v231 = vsub.s32 4, %v230
        %v232 = vrot.slane %v183, %v231
        %234 = vbcast.lane.b32.xlu0 %v232, 256
        %v235 = vpop.permute.xlu0 %234
        %s237 = sor.u32 256, 8
        %238 = vbcast.lane.b32.xlu0 %v232, %s237
        %v239 = vpop.permute.xlu0 %238
        %v240 = vlaneseq
        %v241 = vshrl.u32 %v240, 7
        %v242 = vsub.s32 5, %v241
        %v243 = vrot.slane %v183, %v242
        %245 = vbcast.lane.b32.xlu0 %v243, 256
        %v246 = vpop.permute.xlu0 %245
        %s248 = sor.u32 256, 8
        %249 = vbcast.lane.b32.xlu0 %v243, %s248
        %v250 = vpop.permute.xlu0 %249
        %v251 = vlaneseq
        %v252 = vshrl.u32 %v251, 7
        %v253 = vsub.s32 6, %v252
        %v254 = vrot.slane %v183, %v253
        %256 = vbcast.lane.b32.xlu0 %v254, 256
        %v257 = vpop.permute.xlu0 %256
        %s259 = sor.u32 256, 8
        %260 = vbcast.lane.b32.xlu0 %v254, %s259
        %v261 = vpop.permute.xlu0 %260
        %v262 = vlaneseq
        %v263 = vshrl.u32 %v262, 7
        %v264 = vsub.s32 7, %v263
        %v265 = vrot.slane %v183, %v264
        %267 = vbcast.lane.b32.xlu0 %v265, 256
        %v268 = vpop.permute.xlu0 %267
        %s270 = sor.u32 256, 8
        %271 = vbcast.lane.b32.xlu0 %v265, %s270
        %v272 = vpop.permute.xlu0 %271
        %v273 = vlaneseq
        %v274 = vshrl.u32 %v273, 7
        %v275 = vsub.s32 0, %v274
        %v276 = vrot.slane %v184, %v275
        %278 = vbcast.lane.b32.xlu0 %v276, 256
        %v279 = vpop.permute.xlu0 %278
        %s281 = sor.u32 256, 8
        %282 = vbcast.lane.b32.xlu0 %v276, %s281
        %v283 = vpop.permute.xlu0 %282
        %v284 = vlaneseq
        %v285 = vshrl.u32 %v284, 7
        %v286 = vsub.s32 1, %v285
        %v287 = vrot.slane %v184, %v286
        %289 = vbcast.lane.b32.xlu0 %v287, 256
        %v290 = vpop.permute.xlu0 %289
        %s292 = sor.u32 256, 8
        %293 = vbcast.lane.b32.xlu0 %v287, %s292
        %v294 = vpop.permute.xlu0 %293
        %v295 = vlaneseq
        %v296 = vshrl.u32 %v295, 7
        %v297 = vsub.s32 2, %v296
        %v298 = vrot.slane %v184, %v297
        %300 = vbcast.lane.b32.xlu0 %v298, 256
        %v301 = vpop.permute.xlu0 %300
        %s303 = sor.u32 256, 8
        %304 = vbcast.lane.b32.xlu0 %v298, %s303
        %v305 = vpop.permute.xlu0 %304
        %v306 = vlaneseq
        %v307 = vshrl.u32 %v306, 7
        %v308 = vsub.s32 3, %v307
        %v309 = vrot.slane %v184, %v308
        %311 = vbcast.lane.b32.xlu0 %v309, 256
        %v312 = vpop.permute.xlu0 %311
        %s314 = sor.u32 256, 8
        %315 = vbcast.lane.b32.xlu0 %v309, %s314
        %v316 = vpop.permute.xlu0 %315
        %v317 = vlaneseq
        %v318 = vshrl.u32 %v317, 7
        %v319 = vsub.s32 4, %v318
        %v320 = vrot.slane %v184, %v319
        %322 = vbcast.lane.b32.xlu0 %v320, 256
        %v323 = vpop.permute.xlu0 %322
        %s325 = sor.u32 256, 8
        %326 = vbcast.lane.b32.xlu0 %v320, %s325
        %v327 = vpop.permute.xlu0 %326
        %v328 = vlaneseq
        %v329 = vshrl.u32 %v328, 7
        %v330 = vsub.s32 5, %v329
        %v331 = vrot.slane %v184, %v330
        %333 = vbcast.lane.b32.xlu0 %v331, 256
        %v334 = vpop.permute.xlu0 %333
        %s336 = sor.u32 256, 8
        %337 = vbcast.lane.b32.xlu0 %v331, %s336
        %v338 = vpop.permute.xlu0 %337
        %v339 = vlaneseq
        %v340 = vshrl.u32 %v339, 7
        %v341 = vsub.s32 6, %v340
        %v342 = vrot.slane %v184, %v341
        %344 = vbcast.lane.b32.xlu0 %v342, 256
        %v345 = vpop.permute.xlu0 %344
        %s347 = sor.u32 256, 8
        %348 = vbcast.lane.b32.xlu0 %v342, %s347
        %v349 = vpop.permute.xlu0 %348
        %v350 = vlaneseq
        %v351 = vshrl.u32 %v350, 7
        %v352 = vsub.s32 7, %v351
        %v353 = vrot.slane %v184, %v352
        %355 = vbcast.lane.b32.xlu0 %v353, 256
        %v356 = vpop.permute.xlu0 %355
        %s358 = sor.u32 256, 8
        %359 = vbcast.lane.b32.xlu0 %v353, %s358
        %v360 = vpop.permute.xlu0 %359
        %v361 = vcombine.low %v191, %v213
        %v362 = vcombine.high %v191, %v213
        %v364 = vunpack.c.l.s4 1983009808
        %v365 = vunpack.c.0.s8 %v364
        %v366 = vlaneseq
        %v367 = vshrl.u32 %v366, 7
        %v368 = vsub.s32 %v365, %v367
        %v369 = vrot.slane %v361, %v368
        %v371 = vunpack.c.l.s4 1983009808
        %v372 = vunpack.c.0.s8 %v371
        %v373 = vlaneseq
        %v374 = vshrl.u32 %v373, 7
        %v375 = vsub.s32 %v372, %v374
        %v376 = vrot.slane %v362, %v375
        %v377 = vcombine.low %v202, %v224
        %v378 = vcombine.high %v202, %v224
        %v380 = vunpack.c.l.s4 1983009808
        %v381 = vunpack.c.0.s8 %v380
        %v382 = vlaneseq
        %v383 = vshrl.u32 %v382, 7
        %v384 = vsub.s32 %v381, %v383
        %v385 = vrot.slane %v377, %v384
        %v387 = vunpack.c.l.s4 1983009808
        %v388 = vunpack.c.0.s8 %v387
        %v389 = vlaneseq
        %v390 = vshrl.u32 %v389, 7
        %v391 = vsub.s32 %v388, %v390
        %v392 = vrot.slane %v378, %v391
        %v393 = vcombine.low %v235, %v257
        %v394 = vcombine.high %v235, %v257
        %v396 = vunpack.c.l.s4 1983009808
        %v397 = vunpack.c.0.s8 %v396
        %v398 = vlaneseq
        %v399 = vshrl.u32 %v398, 7
        %v400 = vsub.s32 %v397, %v399
        %v401 = vrot.slane %v393, %v400
        %v403 = vunpack.c.l.s4 1983009808
        %v404 = vunpack.c.0.s8 %v403
        %v405 = vlaneseq
        %v406 = vshrl.u32 %v405, 7
        %v407 = vsub.s32 %v404, %v406
        %v408 = vrot.slane %v394, %v407
        %v409 = vcombine.low %v246, %v268
        %v410 = vcombine.high %v246, %v268
        %v412 = vunpack.c.l.s4 1983009808
        %v413 = vunpack.c.0.s8 %v412
        %v414 = vlaneseq
        %v415 = vshrl.u32 %v414, 7
        %v416 = vsub.s32 %v413, %v415
        %v417 = vrot.slane %v409, %v416
        %v419 = vunpack.c.l.s4 1983009808
        %v420 = vunpack.c.0.s8 %v419
        %v421 = vlaneseq
        %v422 = vshrl.u32 %v421, 7
        %v423 = vsub.s32 %v420, %v422
        %v424 = vrot.slane %v410, %v423
        %v425 = vcombine.low %v369, %v385
        %v426 = vcombine.high %v369, %v385
        %v428 = vunpack.c.l.s4 1934713408
        %v429 = vunpack.c.0.s8 %v428
        %v430 = vlaneseq
        %v431 = vshrl.u32 %v430, 7
        %v432 = vsub.s32 %v429, %v431
        %v433 = vrot.slane %v425, %v432
        %v435 = vunpack.c.l.s4 1934713408
        %v436 = vunpack.c.0.s8 %v435
        %v437 = vlaneseq
        %v438 = vshrl.u32 %v437, 7
        %v439 = vsub.s32 %v436, %v438
        %v440 = vrot.slane %v426, %v439
        %v441 = vcombine.low %v376, %v392
        %v442 = vcombine.high %v376, %v392
        %v444 = vunpack.c.l.s4 1934713408
        %v445 = vunpack.c.0.s8 %v444
        %v446 = vlaneseq
        %v447 = vshrl.u32 %v446, 7
        %v448 = vsub.s32 %v445, %v447
        %v449 = vrot.slane %v441, %v448
        %v451 = vunpack.c.l.s4 1934713408
        %v452 = vunpack.c.0.s8 %v451
        %v453 = vlaneseq
        %v454 = vshrl.u32 %v453, 7
        %v455 = vsub.s32 %v452, %v454
        %v456 = vrot.slane %v442, %v455
        %v457 = vcombine.low %v401, %v417
        %v458 = vcombine.high %v401, %v417
        %v460 = vunpack.c.l.s4 1934713408
        %v461 = vunpack.c.0.s8 %v460
        %v462 = vlaneseq
        %v463 = vshrl.u32 %v462, 7
        %v464 = vsub.s32 %v461, %v463
        %v465 = vrot.slane %v457, %v464
        %v467 = vunpack.c.l.s4 1934713408
        %v468 = vunpack.c.0.s8 %v467
        %v469 = vlaneseq
        %v470 = vshrl.u32 %v469, 7
        %v471 = vsub.s32 %v468, %v470
        %v472 = vrot.slane %v458, %v471
        %v473 = vcombine.low %v408, %v424
        %v474 = vcombine.high %v408, %v424
        %v476 = vunpack.c.l.s4 1934713408
        %v477 = vunpack.c.0.s8 %v476
        %v478 = vlaneseq
        %v479 = vshrl.u32 %v478, 7
        %v480 = vsub.s32 %v477, %v479
        %v481 = vrot.slane %v473, %v480
        %v483 = vunpack.c.l.s4 1934713408
        %v484 = vunpack.c.0.s8 %v483
        %v485 = vlaneseq
        %v486 = vshrl.u32 %v485, 7
        %v487 = vsub.s32 %v484, %v486
        %v488 = vrot.slane %v474, %v487
        %v489 = vcombine.low %v433, %v465
        %v490 = vcombine.high %v433, %v465
        %v491 = vcombine.low %v440, %v472
        %v492 = vcombine.high %v440, %v472
        %v493 = vcombine.low %v449, %v481
        %v494 = vcombine.high %v449, %v481
        %v495 = vcombine.low %v456, %v488
        %v496 = vcombine.high %v456, %v488
        %v497 = vcombine.low %v279, %v301
        %v498 = vcombine.high %v279, %v301
        %v500 = vunpack.c.l.s4 1983009808
        %v501 = vunpack.c.0.s8 %v500
        %v502 = vlaneseq
        %v503 = vshrl.u32 %v502, 7
        %v504 = vsub.s32 %v501, %v503
        %v505 = vrot.slane %v497, %v504
        %v507 = vunpack.c.l.s4 1983009808
        %v508 = vunpack.c.0.s8 %v507
        %v509 = vlaneseq
        %v510 = vshrl.u32 %v509, 7
        %v511 = vsub.s32 %v508, %v510
        %v512 = vrot.slane %v498, %v511
        %v513 = vcombine.low %v290, %v312
        %v514 = vcombine.high %v290, %v312
        %v516 = vunpack.c.l.s4 1983009808
        %v517 = vunpack.c.0.s8 %v516
        %v518 = vlaneseq
        %v519 = vshrl.u32 %v518, 7
        %v520 = vsub.s32 %v517, %v519
        %v521 = vrot.slane %v513, %v520
        %v523 = vunpack.c.l.s4 1983009808
        %v524 = vunpack.c.0.s8 %v523
        %v525 = vlaneseq
        %v526 = vshrl.u32 %v525, 7
        %v527 = vsub.s32 %v524, %v526
        %v528 = vrot.slane %v514, %v527
        %v529 = vcombine.low %v323, %v345
        %v530 = vcombine.high %v323, %v345
        %v532 = vunpack.c.l.s4 1983009808
        %v533 = vunpack.c.0.s8 %v532
        %v534 = vlaneseq
        %v535 = vshrl.u32 %v534, 7
        %v536 = vsub.s32 %v533, %v535
        %v537 = vrot.slane %v529, %v536
        %v539 = vunpack.c.l.s4 1983009808
        %v540 = vunpack.c.0.s8 %v539
        %v541 = vlaneseq
        %v542 = vshrl.u32 %v541, 7
        %v543 = vsub.s32 %v540, %v542
        %v544 = vrot.slane %v530, %v543
        %v545 = vcombine.low %v334, %v356
        %v546 = vcombine.high %v334, %v356
        %v548 = vunpack.c.l.s4 1983009808
        %v549 = vunpack.c.0.s8 %v548
        %v550 = vlaneseq
        %v551 = vshrl.u32 %v550, 7
        %v552 = vsub.s32 %v549, %v551
        %v553 = vrot.slane %v545, %v552
        %v555 = vunpack.c.l.s4 1983009808
        %v556 = vunpack.c.0.s8 %v555
        %v557 = vlaneseq
        %v558 = vshrl.u32 %v557, 7
        %v559 = vsub.s32 %v556, %v558
        %v560 = vrot.slane %v546, %v559
        %v561 = vcombine.low %v505, %v521
        %v562 = vcombine.high %v505, %v521
        %v564 = vunpack.c.l.s4 1934713408
        %v565 = vunpack.c.0.s8 %v564
        %v566 = vlaneseq
        %v567 = vshrl.u32 %v566, 7
        %v568 = vsub.s32 %v565, %v567
        %v569 = vrot.slane %v561, %v568
        %v571 = vunpack.c.l.s4 1934713408
        %v572 = vunpack.c.0.s8 %v571
        %v573 = vlaneseq
        %v574 = vshrl.u32 %v573, 7
        %v575 = vsub.s32 %v572, %v574
        %v576 = vrot.slane %v562, %v575
        %v577 = vcombine.low %v512, %v528
        %v578 = vcombine.high %v512, %v528
        %v580 = vunpack.c.l.s4 1934713408
        %v581 = vunpack.c.0.s8 %v580
        %v582 = vlaneseq
        %v583 = vshrl.u32 %v582, 7
        %v584 = vsub.s32 %v581, %v583
        %v585 = vrot.slane %v577, %v584
        %v587 = vunpack.c.l.s4 1934713408
        %v588 = vunpack.c.0.s8 %v587
        %v589 = vlaneseq
        %v590 = vshrl.u32 %v589, 7
        %v591 = vsub.s32 %v588, %v590
        %v592 = vrot.slane %v578, %v591
        %v593 = vcombine.low %v537, %v553
        %v594 = vcombine.high %v537, %v553
        %v596 = vunpack.c.l.s4 1934713408
        %v597 = vunpack.c.0.s8 %v596
        %v598 = vlaneseq
        %v599 = vshrl.u32 %v598, 7
        %v600 = vsub.s32 %v597, %v599
        %v601 = vrot.slane %v593, %v600
        %v603 = vunpack.c.l.s4 1934713408
        %v604 = vunpack.c.0.s8 %v603
        %v605 = vlaneseq
        %v606 = vshrl.u32 %v605, 7
        %v607 = vsub.s32 %v604, %v606
        %v608 = vrot.slane %v594, %v607
        %v609 = vcombine.low %v544, %v560
        %v610 = vcombine.high %v544, %v560
        %v612 = vunpack.c.l.s4 1934713408
        %v613 = vunpack.c.0.s8 %v612
        %v614 = vlaneseq
        %v615 = vshrl.u32 %v614, 7
        %v616 = vsub.s32 %v613, %v615
        %v617 = vrot.slane %v609, %v616
        %v619 = vunpack.c.l.s4 1934713408
        %v620 = vunpack.c.0.s8 %v619
        %v621 = vlaneseq
        %v622 = vshrl.u32 %v621, 7
        %v623 = vsub.s32 %v620, %v622
        %v624 = vrot.slane %v610, %v623
        %v625 = vcombine.low %v569, %v601
        %v626 = vcombine.high %v569, %v601
        %v627 = vcombine.low %v576, %v608
        %v628 = vcombine.high %v576, %v608
        %v629 = vcombine.low %v585, %v617
        %v630 = vcombine.high %v585, %v617
        %v631 = vcombine.low %v592, %v624
        %v632 = vcombine.high %v592, %v624
        %v633 = vcombine.low %v195, %v217
        %v634 = vcombine.high %v195, %v217
        %v636 = vunpack.c.l.s4 1983009808
        %v637 = vunpack.c.0.s8 %v636
        %v638 = vlaneseq
        %v639 = vshrl.u32 %v638, 7
        %v640 = vsub.s32 %v637, %v639
        %v641 = vrot.slane %v633, %v640
        %v643 = vunpack.c.l.s4 1983009808
        %v644 = vunpack.c.0.s8 %v643
        %v645 = vlaneseq
        %v646 = vshrl.u32 %v645, 7
        %v647 = vsub.s32 %v644, %v646
        %v648 = vrot.slane %v634, %v647
        %v649 = vcombine.low %v206, %v228
        %v650 = vcombine.high %v206, %v228
        %v652 = vunpack.c.l.s4 1983009808
        %v653 = vunpack.c.0.s8 %v652
        %v654 = vlaneseq
        %v655 = vshrl.u32 %v654, 7
        %v656 = vsub.s32 %v653, %v655
        %v657 = vrot.slane %v649, %v656
        %v659 = vunpack.c.l.s4 1983009808
        %v660 = vunpack.c.0.s8 %v659
        %v661 = vlaneseq
        %v662 = vshrl.u32 %v661, 7
        %v663 = vsub.s32 %v660, %v662
        %v664 = vrot.slane %v650, %v663
        %v665 = vcombine.low %v239, %v261
        %v666 = vcombine.high %v239, %v261
        %v668 = vunpack.c.l.s4 1983009808
        %v669 = vunpack.c.0.s8 %v668
        %v670 = vlaneseq
        %v671 = vshrl.u32 %v670, 7
        %v672 = vsub.s32 %v669, %v671
        %v673 = vrot.slane %v665, %v672
        %v675 = vunpack.c.l.s4 1983009808
        %v676 = vunpack.c.0.s8 %v675
        %v677 = vlaneseq
        %v678 = vshrl.u32 %v677, 7
        %v679 = vsub.s32 %v676, %v678
        %v680 = vrot.slane %v666, %v679
        %v681 = vcombine.low %v250, %v272
        %v682 = vcombine.high %v250, %v272
        %v684 = vunpack.c.l.s4 1983009808
        %v685 = vunpack.c.0.s8 %v684
        %v686 = vlaneseq
        %v687 = vshrl.u32 %v686, 7
        %v688 = vsub.s32 %v685, %v687
        %v689 = vrot.slane %v681, %v688
        %v691 = vunpack.c.l.s4 1983009808
        %v692 = vunpack.c.0.s8 %v691
        %v693 = vlaneseq
        %v694 = vshrl.u32 %v693, 7
        %v695 = vsub.s32 %v692, %v694
        %v696 = vrot.slane %v682, %v695
        %v697 = vcombine.low %v641, %v657
        %v698 = vcombine.high %v641, %v657
        %v700 = vunpack.c.l.s4 1934713408
        %v701 = vunpack.c.0.s8 %v700
        %v702 = vlaneseq
        %v703 = vshrl.u32 %v702, 7
        %v704 = vsub.s32 %v701, %v703
        %v705 = vrot.slane %v697, %v704
        %v707 = vunpack.c.l.s4 1934713408
        %v708 = vunpack.c.0.s8 %v707
        %v709 = vlaneseq
        %v710 = vshrl.u32 %v709, 7
        %v711 = vsub.s32 %v708, %v710
        %v712 = vrot.slane %v698, %v711
        %v713 = vcombine.low %v648, %v664
        %v714 = vcombine.high %v648, %v664
        %v716 = vunpack.c.l.s4 1934713408
        %v717 = vunpack.c.0.s8 %v716
        %v718 = vlaneseq
        %v719 = vshrl.u32 %v718, 7
        %v720 = vsub.s32 %v717, %v719
        %v721 = vrot.slane %v713, %v720
        %v723 = vunpack.c.l.s4 1934713408
        %v724 = vunpack.c.0.s8 %v723
        %v725 = vlaneseq
        %v726 = vshrl.u32 %v725, 7
        %v727 = vsub.s32 %v724, %v726
        %v728 = vrot.slane %v714, %v727
        %v729 = vcombine.low %v673, %v689
        %v730 = vcombine.high %v673, %v689
        %v732 = vunpack.c.l.s4 1934713408
        %v733 = vunpack.c.0.s8 %v732
        %v734 = vlaneseq
        %v735 = vshrl.u32 %v734, 7
        %v736 = vsub.s32 %v733, %v735
        %v737 = vrot.slane %v729, %v736
        %v739 = vunpack.c.l.s4 1934713408
        %v740 = vunpack.c.0.s8 %v739
        %v741 = vlaneseq
        %v742 = vshrl.u32 %v741, 7
        %v743 = vsub.s32 %v740, %v742
        %v744 = vrot.slane %v730, %v743
        %v745 = vcombine.low %v680, %v696
        %v746 = vcombine.high %v680, %v696
        %v748 = vunpack.c.l.s4 1934713408
        %v749 = vunpack.c.0.s8 %v748
        %v750 = vlaneseq
        %v751 = vshrl.u32 %v750, 7
        %v752 = vsub.s32 %v749, %v751
        %v753 = vrot.slane %v745, %v752
        %v755 = vunpack.c.l.s4 1934713408
        %v756 = vunpack.c.0.s8 %v755
        %v757 = vlaneseq
        %v758 = vshrl.u32 %v757, 7
        %v759 = vsub.s32 %v756, %v758
        %v760 = vrot.slane %v746, %v759
        %v761 = vcombine.low %v705, %v737
        %v762 = vcombine.high %v705, %v737
        %v763 = vcombine.low %v712, %v744
        %v764 = vcombine.high %v712, %v744
        %v765 = vcombine.low %v721, %v753
        %v766 = vcombine.high %v721, %v753
        %v767 = vcombine.low %v728, %v760
        %v768 = vcombine.high %v728, %v760
        %v769 = vcombine.low %v283, %v305
        %v770 = vcombine.high %v283, %v305
        %v772 = vunpack.c.l.s4 1983009808
        %v773 = vunpack.c.0.s8 %v772
        %v774 = vlaneseq
        %v775 = vshrl.u32 %v774, 7
        %v776 = vsub.s32 %v773, %v775
        %v777 = vrot.slane %v769, %v776
        %v779 = vunpack.c.l.s4 1983009808
        %v780 = vunpack.c.0.s8 %v779
        %v781 = vlaneseq
        %v782 = vshrl.u32 %v781, 7
        %v783 = vsub.s32 %v780, %v782
        %v784 = vrot.slane %v770, %v783
        %v785 = vcombine.low %v294, %v316
        %v786 = vcombine.high %v294, %v316
        %v788 = vunpack.c.l.s4 1983009808
        %v789 = vunpack.c.0.s8 %v788
        %v790 = vlaneseq
        %v791 = vshrl.u32 %v790, 7
        %v792 = vsub.s32 %v789, %v791
        %v793 = vrot.slane %v785, %v792
        %v795 = vunpack.c.l.s4 1983009808
        %v796 = vunpack.c.0.s8 %v795
        %v797 = vlaneseq
        %v798 = vshrl.u32 %v797, 7
        %v799 = vsub.s32 %v796, %v798
        %v800 = vrot.slane %v786, %v799
        %v801 = vcombine.low %v327, %v349
        %v802 = vcombine.high %v327, %v349
        %v804 = vunpack.c.l.s4 1983009808
        %v805 = vunpack.c.0.s8 %v804
        %v806 = vlaneseq
        %v807 = vshrl.u32 %v806, 7
        %v808 = vsub.s32 %v805, %v807
        %v809 = vrot.slane %v801, %v808
        %v811 = vunpack.c.l.s4 1983009808
        %v812 = vunpack.c.0.s8 %v811
        %v813 = vlaneseq
        %v814 = vshrl.u32 %v813, 7
        %v815 = vsub.s32 %v812, %v814
        %v816 = vrot.slane %v802, %v815
        %v817 = vcombine.low %v338, %v360
        %v818 = vcombine.high %v338, %v360
        %v820 = vunpack.c.l.s4 1983009808
        %v821 = vunpack.c.0.s8 %v820
        %v822 = vlaneseq
        %v823 = vshrl.u32 %v822, 7
        %v824 = vsub.s32 %v821, %v823
        %v825 = vrot.slane %v817, %v824
        %v827 = vunpack.c.l.s4 1983009808
        %v828 = vunpack.c.0.s8 %v827
        %v829 = vlaneseq
        %v830 = vshrl.u32 %v829, 7
        %v831 = vsub.s32 %v828, %v830
        %v832 = vrot.slane %v818, %v831
        %v833 = vcombine.low %v777, %v793
        %v834 = vcombine.high %v777, %v793
        %v836 = vunpack.c.l.s4 1934713408
        %v837 = vunpack.c.0.s8 %v836
        %v838 = vlaneseq
        %v839 = vshrl.u32 %v838, 7
        %v840 = vsub.s32 %v837, %v839
        %v841 = vrot.slane %v833, %v840
        %v843 = vunpack.c.l.s4 1934713408
        %v844 = vunpack.c.0.s8 %v843
        %v845 = vlaneseq
        %v846 = vshrl.u32 %v845, 7
        %v847 = vsub.s32 %v844, %v846
        %v848 = vrot.slane %v834, %v847
        %v849 = vcombine.low %v784, %v800
        %v850 = vcombine.high %v784, %v800
        %v852 = vunpack.c.l.s4 1934713408
        %v853 = vunpack.c.0.s8 %v852
        %v854 = vlaneseq
        %v855 = vshrl.u32 %v854, 7
        %v856 = vsub.s32 %v853, %v855
        %v857 = vrot.slane %v849, %v856
        %v859 = vunpack.c.l.s4 1934713408
        %v860 = vunpack.c.0.s8 %v859
        %v861 = vlaneseq
        %v862 = vshrl.u32 %v861, 7
        %v863 = vsub.s32 %v860, %v862
        %v864 = vrot.slane %v850, %v863
        %v865 = vcombine.low %v809, %v825
        %v866 = vcombine.high %v809, %v825
        %v868 = vunpack.c.l.s4 1934713408
        %v869 = vunpack.c.0.s8 %v868
        %v870 = vlaneseq
        %v871 = vshrl.u32 %v870, 7
        %v872 = vsub.s32 %v869, %v871
        %v873 = vrot.slane %v865, %v872
        %v875 = vunpack.c.l.s4 1934713408
        %v876 = vunpack.c.0.s8 %v875
        %v877 = vlaneseq
        %v878 = vshrl.u32 %v877, 7
        %v879 = vsub.s32 %v876, %v878
        %v880 = vrot.slane %v866, %v879
        %v881 = vcombine.low %v816, %v832
        %v882 = vcombine.high %v816, %v832
        %v884 = vunpack.c.l.s4 1934713408
        %v885 = vunpack.c.0.s8 %v884
        %v886 = vlaneseq
        %v887 = vshrl.u32 %v886, 7
        %v888 = vsub.s32 %v885, %v887
        %v889 = vrot.slane %v881, %v888
        %v891 = vunpack.c.l.s4 1934713408
        %v892 = vunpack.c.0.s8 %v891
        %v893 = vlaneseq
        %v894 = vshrl.u32 %v893, 7
        %v895 = vsub.s32 %v892, %v894
        %v896 = vrot.slane %v882, %v895
        %v897 = vcombine.low %v841, %v873
        %v898 = vcombine.high %v841, %v873
        %v899 = vcombine.low %v848, %v880
        %v900 = vcombine.high %v848, %v880
        %v901 = vcombine.low %v857, %v889
        %v902 = vcombine.high %v857, %v889
        %v903 = vcombine.low %v864, %v896
        %v904 = vcombine.high %v864, %v896
        %907 = vrot.lane.b32.xlu0 %v490, 2
        %v908 = vpop.permute.xlu0 %907
        %909 = vrot.lane.b32.xlu0 %v626, 2
        %v910 = vpop.permute.xlu0 %909
        %915 = vrot.lane.b32.xlu0 %v491, 4
        %v916 = vpop.permute.xlu0 %915
        %917 = vrot.lane.b32.xlu0 %v627, 4
        %v918 = vpop.permute.xlu0 %917
        %923 = vrot.lane.b32.xlu0 %v492, 6
        %v924 = vpop.permute.xlu0 %923
        %925 = vrot.lane.b32.xlu0 %v628, 6
        %v926 = vpop.permute.xlu0 %925
        %931 = vrot.lane.b32.xlu0 %v493, 8
        %v932 = vpop.permute.xlu0 %931
        %933 = vrot.lane.b32.xlu0 %v629, 8
        %v934 = vpop.permute.xlu0 %933
        %939 = vrot.lane.b32.xlu0 %v494, 10
        %v940 = vpop.permute.xlu0 %939
        %941 = vrot.lane.b32.xlu0 %v630, 10
        %v942 = vpop.permute.xlu0 %941
        %947 = vrot.lane.b32.xlu0 %v495, 12
        %v948 = vpop.permute.xlu0 %947
        %949 = vrot.lane.b32.xlu0 %v631, 12
        %v950 = vpop.permute.xlu0 %949
        %955 = vrot.lane.b32.xlu0 %v496, 14
        %v956 = vpop.permute.xlu0 %955
        %957 = vrot.lane.b32.xlu0 %v632, 14
        %v958 = vpop.permute.xlu0 %957
        %963 = vrot.lane.b32.xlu0 %v761, 16
        %v964 = vpop.permute.xlu0 %963
        %965 = vrot.lane.b32.xlu0 %v897, 16
        %v966 = vpop.permute.xlu0 %965
        %971 = vrot.lane.b32.xlu0 %v762, 18
        %v972 = vpop.permute.xlu0 %971
        %973 = vrot.lane.b32.xlu0 %v898, 18
        %v974 = vpop.permute.xlu0 %973
        %979 = vrot.lane.b32.xlu0 %v763, 20
        %v980 = vpop.permute.xlu0 %979
        %981 = vrot.lane.b32.xlu0 %v899, 20
        %v982 = vpop.permute.xlu0 %981
        %987 = vrot.lane.b32.xlu0 %v764, 22
        %v988 = vpop.permute.xlu0 %987
        %989 = vrot.lane.b32.xlu0 %v900, 22
        %v990 = vpop.permute.xlu0 %989
        %995 = vrot.lane.b32.xlu0 %v765, 24
        %v996 = vpop.permute.xlu0 %995
        %997 = vrot.lane.b32.xlu0 %v901, 24
        %v998 = vpop.permute.xlu0 %997
        %1003 = vrot.lane.b32.xlu0 %v766, 26
        %v1004 = vpop.permute.xlu0 %1003
        %1005 = vrot.lane.b32.xlu0 %v902, 26
        %v1006 = vpop.permute.xlu0 %1005
        %1011 = vrot.lane.b32.xlu0 %v767, 28
        %v1012 = vpop.permute.xlu0 %1011
        %1013 = vrot.lane.b32.xlu0 %v903, 28
        %v1014 = vpop.permute.xlu0 %1013
        %1019 = vrot.lane.b32.xlu0 %v768, 30
        %v1020 = vpop.permute.xlu0 %1019
        %1021 = vrot.lane.b32.xlu0 %v904, 30
        %v1022 = vpop.permute.xlu0 %1021
        %vm1025 = vcmask 15360
        %v1026 = vsel %vm1025, %v489, %v908
        %v1027 = vsel %vm1025, %v625, %v910
        %vm1028 = vcmask 31744
        %v1029 = vsel %vm1028, %v1026, %v916
        %v1030 = vsel %vm1028, %v1027, %v918
        %vm1031 = vcmask 48128
        %v1032 = vsel %vm1031, %v1029, %v924
        %v1033 = vsel %vm1031, %v1030, %v926
        %vm1034 = vcmask 64512
        %v1035 = vsel %vm1034, %v1032, %v932
        %v1036 = vsel %vm1034, %v1033, %v934
        %vm1037 = vcmask 80896
        %v1038 = vsel %vm1037, %v1035, %v940
        %v1039 = vsel %vm1037, %v1036, %v942
        %vm1040 = vcmask 97280
        %v1041 = vsel %vm1040, %v1038, %v948
        %v1042 = vsel %vm1040, %v1039, %v950
        %vm1043 = vcmask 113664
        %v1044 = vsel %vm1043, %v1041, %v956
        %v1045 = vsel %vm1043, %v1042, %v958
        %vm1046 = vcmask 130048
        %v1047 = vsel %vm1046, %v1044, %v964
        %v1048 = vsel %vm1046, %v1045, %v966
        %vm1049 = vcmask 146432
        %v1050 = vsel %vm1049, %v1047, %v972
        %v1051 = vsel %vm1049, %v1048, %v974
        %vm1052 = vcmask 162816
        %v1053 = vsel %vm1052, %v1050, %v980
        %v1054 = vsel %vm1052, %v1051, %v982
        %vm1055 = vcmask 179200
        %v1056 = vsel %vm1055, %v1053, %v988
        %v1057 = vsel %vm1055, %v1054, %v990
        %vm1058 = vcmask 195584
        %v1059 = vsel %vm1058, %v1056, %v996
        %v1060 = vsel %vm1058, %v1057, %v998
        %vm1061 = vcmask 211968
        %v1062 = vsel %vm1061, %v1059, %v1004
        %v1063 = vsel %vm1061, %v1060, %v1006
        %vm1064 = vcmask 228352
        %v1065 = vsel %vm1064, %v1062, %v1012
        %v1066 = vsel %vm1064, %v1063, %v1014
        %vm1067 = vcmask 244736
        %v1068 = vsel %vm1067, %v1065, %v1020
        %v1069 = vsel %vm1067, %v1066, %v1022
        %s1070 = scalar_lea.vmem %s147, 16 [#allocation2]
        %v1071 = vld [vmem:[%s1070] sm:$0xff]
        %v1072 = vld [vmem:[%s1070 + $0x8] sm:$0xff]
        %v1073 = vlaneseq
        %v1074 = vshrl.u32 %v1073, 7
        %v1075 = vsub.s32 0, %v1074
        %v1076 = vrot.slane %v1071, %v1075
        %1078 = vbcast.lane.b32.xlu0 %v1076, 256
        %v1079 = vpop.permute.xlu0 %1078
        %s1081 = sor.u32 256, 8
        %1082 = vbcast.lane.b32.xlu0 %v1076, %s1081
        %v1083 = vpop.permute.xlu0 %1082
        %v1084 = vlaneseq
        %v1085 = vshrl.u32 %v1084, 7
        %v1086 = vsub.s32 1, %v1085
        %v1087 = vrot.slane %v1071, %v1086
        %1089 = vbcast.lane.b32.xlu0 %v1087, 256
        %v1090 = vpop.permute.xlu0 %1089
        %s1092 = sor.u32 256, 8
        %1093 = vbcast.lane.b32.xlu0 %v1087, %s1092
        %v1094 = vpop.permute.xlu0 %1093
        %v1095 = vlaneseq
        %v1096 = vshrl.u32 %v1095, 7
        %v1097 = vsub.s32 2, %v1096
        %v1098 = vrot.slane %v1071, %v1097
        %1100 = vbcast.lane.b32.xlu0 %v1098, 256
        %v1101 = vpop.permute.xlu0 %1100
        %s1103 = sor.u32 256, 8
        %1104 = vbcast.lane.b32.xlu0 %v1098, %s1103
        %v1105 = vpop.permute.xlu0 %1104
        %v1106 = vlaneseq
        %v1107 = vshrl.u32 %v1106, 7
        %v1108 = vsub.s32 3, %v1107
        %v1109 = vrot.slane %v1071, %v1108
        %1111 = vbcast.lane.b32.xlu0 %v1109, 256
        %v1112 = vpop.permute.xlu0 %1111
        %s1114 = sor.u32 256, 8
        %1115 = vbcast.lane.b32.xlu0 %v1109, %s1114
        %v1116 = vpop.permute.xlu0 %1115
        %v1117 = vlaneseq
        %v1118 = vshrl.u32 %v1117, 7
        %v1119 = vsub.s32 4, %v1118
        %v1120 = vrot.slane %v1071, %v1119
        %1122 = vbcast.lane.b32.xlu0 %v1120, 256
        %v1123 = vpop.permute.xlu0 %1122
        %s1125 = sor.u32 256, 8
        %1126 = vbcast.lane.b32.xlu0 %v1120, %s1125
        %v1127 = vpop.permute.xlu0 %1126
        %v1128 = vlaneseq
        %v1129 = vshrl.u32 %v1128, 7
        %v1130 = vsub.s32 5, %v1129
        %v1131 = vrot.slane %v1071, %v1130
        %1133 = vbcast.lane.b32.xlu0 %v1131, 256
        %v1134 = vpop.permute.xlu0 %1133
        %s1136 = sor.u32 256, 8
        %1137 = vbcast.lane.b32.xlu0 %v1131, %s1136
        %v1138 = vpop.permute.xlu0 %1137
        %v1139 = vlaneseq
        %v1140 = vshrl.u32 %v1139, 7
        %v1141 = vsub.s32 6, %v1140
        %v1142 = vrot.slane %v1071, %v1141
        %1144 = vbcast.lane.b32.xlu0 %v1142, 256
        %v1145 = vpop.permute.xlu0 %1144
        %s1147 = sor.u32 256, 8
        %1148 = vbcast.lane.b32.xlu0 %v1142, %s1147
        %v1149 = vpop.permute.xlu0 %1148
        %v1150 = vlaneseq
        %v1151 = vshrl.u32 %v1150, 7
        %v1152 = vsub.s32 7, %v1151
        %v1153 = vrot.slane %v1071, %v1152
        %1155 = vbcast.lane.b32.xlu0 %v1153, 256
        %v1156 = vpop.permute.xlu0 %1155
        %s1158 = sor.u32 256, 8
        %1159 = vbcast.lane.b32.xlu0 %v1153, %s1158
        %v1160 = vpop.permute.xlu0 %1159
        %v1161 = vlaneseq
        %v1162 = vshrl.u32 %v1161, 7
        %v1163 = vsub.s32 0, %v1162
        %v1164 = vrot.slane %v1072, %v1163
        %1166 = vbcast.lane.b32.xlu0 %v1164, 256
        %v1167 = vpop.permute.xlu0 %1166
        %s1169 = sor.u32 256, 8
        %1170 = vbcast.lane.b32.xlu0 %v1164, %s1169
        %v1171 = vpop.permute.xlu0 %1170
        %v1172 = vlaneseq
        %v1173 = vshrl.u32 %v1172, 7
        %v1174 = vsub.s32 1, %v1173
        %v1175 = vrot.slane %v1072, %v1174
        %1177 = vbcast.lane.b32.xlu0 %v1175, 256
        %v1178 = vpop.permute.xlu0 %1177
        %s1180 = sor.u32 256, 8
        %1181 = vbcast.lane.b32.xlu0 %v1175, %s1180
        %v1182 = vpop.permute.xlu0 %1181
        %v1183 = vlaneseq
        %v1184 = vshrl.u32 %v1183, 7
        %v1185 = vsub.s32 2, %v1184
        %v1186 = vrot.slane %v1072, %v1185
        %1188 = vbcast.lane.b32.xlu0 %v1186, 256
        %v1189 = vpop.permute.xlu0 %1188
        %s1191 = sor.u32 256, 8
        %1192 = vbcast.lane.b32.xlu0 %v1186, %s1191
        %v1193 = vpop.permute.xlu0 %1192
        %v1194 = vlaneseq
        %v1195 = vshrl.u32 %v1194, 7
        %v1196 = vsub.s32 3, %v1195
        %v1197 = vrot.slane %v1072, %v1196
        %1199 = vbcast.lane.b32.xlu0 %v1197, 256
        %v1200 = vpop.permute.xlu0 %1199
        %s1202 = sor.u32 256, 8
        %1203 = vbcast.lane.b32.xlu0 %v1197, %s1202
        %v1204 = vpop.permute.xlu0 %1203
        %v1205 = vlaneseq
        %v1206 = vshrl.u32 %v1205, 7
        %v1207 = vsub.s32 4, %v1206
        %v1208 = vrot.slane %v1072, %v1207
        %1210 = vbcast.lane.b32.xlu0 %v1208, 256
        %v1211 = vpop.permute.xlu0 %1210
        %s1213 = sor.u32 256, 8
        %1214 = vbcast.lane.b32.xlu0 %v1208, %s1213
        %v1215 = vpop.permute.xlu0 %1214
        %v1216 = vlaneseq
        %v1217 = vshrl.u32 %v1216, 7
        %v1218 = vsub.s32 5, %v1217
        %v1219 = vrot.slane %v1072, %v1218
        %1221 = vbcast.lane.b32.xlu0 %v1219, 256
        %v1222 = vpop.permute.xlu0 %1221
        %s1224 = sor.u32 256, 8
        %1225 = vbcast.lane.b32.xlu0 %v1219, %s1224
        %v1226 = vpop.permute.xlu0 %1225
        %v1227 = vlaneseq
        %v1228 = vshrl.u32 %v1227, 7
        %v1229 = vsub.s32 6, %v1228
        %v1230 = vrot.slane %v1072, %v1229
        %1232 = vbcast.lane.b32.xlu0 %v1230, 256
        %v1233 = vpop.permute.xlu0 %1232
        %s1235 = sor.u32 256, 8
        %1236 = vbcast.lane.b32.xlu0 %v1230, %s1235
        %v1237 = vpop.permute.xlu0 %1236
        %v1238 = vlaneseq
        %v1239 = vshrl.u32 %v1238, 7
        %v1240 = vsub.s32 7, %v1239
        %v1241 = vrot.slane %v1072, %v1240
        %1243 = vbcast.lane.b32.xlu0 %v1241, 256
        %v1244 = vpop.permute.xlu0 %1243
        %s1246 = sor.u32 256, 8
        %1247 = vbcast.lane.b32.xlu0 %v1241, %s1246
        %v1248 = vpop.permute.xlu0 %1247
        %v1249 = vcombine.low %v1079, %v1101
        %v1250 = vcombine.high %v1079, %v1101
        %v1252 = vunpack.c.l.s4 1983009808
        %v1253 = vunpack.c.0.s8 %v1252
        %v1254 = vlaneseq
        %v1255 = vshrl.u32 %v1254, 7
        %v1256 = vsub.s32 %v1253, %v1255
        %v1257 = vrot.slane %v1249, %v1256
        %v1259 = vunpack.c.l.s4 1983009808
        %v1260 = vunpack.c.0.s8 %v1259
        %v1261 = vlaneseq
        %v1262 = vshrl.u32 %v1261, 7
        %v1263 = vsub.s32 %v1260, %v1262
        %v1264 = vrot.slane %v1250, %v1263
        %v1265 = vcombine.low %v1090, %v1112
        %v1266 = vcombine.high %v1090, %v1112
        %v1268 = vunpack.c.l.s4 1983009808
        %v1269 = vunpack.c.0.s8 %v1268
        %v1270 = vlaneseq
        %v1271 = vshrl.u32 %v1270, 7
        %v1272 = vsub.s32 %v1269, %v1271
        %v1273 = vrot.slane %v1265, %v1272
        %v1275 = vunpack.c.l.s4 1983009808
        %v1276 = vunpack.c.0.s8 %v1275
        %v1277 = vlaneseq
        %v1278 = vshrl.u32 %v1277, 7
        %v1279 = vsub.s32 %v1276, %v1278
        %v1280 = vrot.slane %v1266, %v1279
        %v1281 = vcombine.low %v1123, %v1145
        %v1282 = vcombine.high %v1123, %v1145
        %v1284 = vunpack.c.l.s4 1983009808
        %v1285 = vunpack.c.0.s8 %v1284
        %v1286 = vlaneseq
        %v1287 = vshrl.u32 %v1286, 7
        %v1288 = vsub.s32 %v1285, %v1287
        %v1289 = vrot.slane %v1281, %v1288
        %v1291 = vunpack.c.l.s4 1983009808
        %v1292 = vunpack.c.0.s8 %v1291
        %v1293 = vlaneseq
        %v1294 = vshrl.u32 %v1293, 7
        %v1295 = vsub.s32 %v1292, %v1294
        %v1296 = vrot.slane %v1282, %v1295
        %v1297 = vcombine.low %v1134, %v1156
        %v1298 = vcombine.high %v1134, %v1156
        %v1300 = vunpack.c.l.s4 1983009808
        %v1301 = vunpack.c.0.s8 %v1300
        %v1302 = vlaneseq
        %v1303 = vshrl.u32 %v1302, 7
        %v1304 = vsub.s32 %v1301, %v1303
        %v1305 = vrot.slane %v1297, %v1304
        %v1307 = vunpack.c.l.s4 1983009808
        %v1308 = vunpack.c.0.s8 %v1307
        %v1309 = vlaneseq
        %v1310 = vshrl.u32 %v1309, 7
        %v1311 = vsub.s32 %v1308, %v1310
        %v1312 = vrot.slane %v1298, %v1311
        %v1313 = vcombine.low %v1257, %v1273
        %v1314 = vcombine.high %v1257, %v1273
        %v1316 = vunpack.c.l.s4 1934713408
        %v1317 = vunpack.c.0.s8 %v1316
        %v1318 = vlaneseq
        %v1319 = vshrl.u32 %v1318, 7
        %v1320 = vsub.s32 %v1317, %v1319
        %v1321 = vrot.slane %v1313, %v1320
        %v1323 = vunpack.c.l.s4 1934713408
        %v1324 = vunpack.c.0.s8 %v1323
        %v1325 = vlaneseq
        %v1326 = vshrl.u32 %v1325, 7
        %v1327 = vsub.s32 %v1324, %v1326
        %v1328 = vrot.slane %v1314, %v1327
        %v1329 = vcombine.low %v1264, %v1280
        %v1330 = vcombine.high %v1264, %v1280
        %v1332 = vunpack.c.l.s4 1934713408
        %v1333 = vunpack.c.0.s8 %v1332
        %v1334 = vlaneseq
        %v1335 = vshrl.u32 %v1334, 7
        %v1336 = vsub.s32 %v1333, %v1335
        %v1337 = vrot.slane %v1329, %v1336
        %v1339 = vunpack.c.l.s4 1934713408
        %v1340 = vunpack.c.0.s8 %v1339
        %v1341 = vlaneseq
        %v1342 = vshrl.u32 %v1341, 7
        %v1343 = vsub.s32 %v1340, %v1342
        %v1344 = vrot.slane %v1330, %v1343
        %v1345 = vcombine.low %v1289, %v1305
        %v1346 = vcombine.high %v1289, %v1305
        %v1348 = vunpack.c.l.s4 1934713408
        %v1349 = vunpack.c.0.s8 %v1348
        %v1350 = vlaneseq
        %v1351 = vshrl.u32 %v1350, 7
        %v1352 = vsub.s32 %v1349, %v1351
        %v1353 = vrot.slane %v1345, %v1352
        %v1355 = vunpack.c.l.s4 1934713408
        %v1356 = vunpack.c.0.s8 %v1355
        %v1357 = vlaneseq
        %v1358 = vshrl.u32 %v1357, 7
        %v1359 = vsub.s32 %v1356, %v1358
        %v1360 = vrot.slane %v1346, %v1359
        %v1361 = vcombine.low %v1296, %v1312
        %v1362 = vcombine.high %v1296, %v1312
        %v1364 = vunpack.c.l.s4 1934713408
        %v1365 = vunpack.c.0.s8 %v1364
        %v1366 = vlaneseq
        %v1367 = vshrl.u32 %v1366, 7
        %v1368 = vsub.s32 %v1365, %v1367
        %v1369 = vrot.slane %v1361, %v1368
        %v1371 = vunpack.c.l.s4 1934713408
        %v1372 = vunpack.c.0.s8 %v1371
        %v1373 = vlaneseq
        %v1374 = vshrl.u32 %v1373, 7
        %v1375 = vsub.s32 %v1372, %v1374
        %v1376 = vrot.slane %v1362, %v1375
        %v1377 = vcombine.low %v1321, %v1353
        %v1378 = vcombine.high %v1321, %v1353
        %v1379 = vcombine.low %v1328, %v1360
        %v1380 = vcombine.high %v1328, %v1360
        %v1381 = vcombine.low %v1337, %v1369
        %v1382 = vcombine.high %v1337, %v1369
        %v1383 = vcombine.low %v1344, %v1376
        %v1384 = vcombine.high %v1344, %v1376
        %v1385 = vcombine.low %v1167, %v1189
        %v1386 = vcombine.high %v1167, %v1189
        %v1388 = vunpack.c.l.s4 1983009808
        %v1389 = vunpack.c.0.s8 %v1388
        %v1390 = vlaneseq
        %v1391 = vshrl.u32 %v1390, 7
        %v1392 = vsub.s32 %v1389, %v1391
        %v1393 = vrot.slane %v1385, %v1392
        %v1395 = vunpack.c.l.s4 1983009808
        %v1396 = vunpack.c.0.s8 %v1395
        %v1397 = vlaneseq
        %v1398 = vshrl.u32 %v1397, 7
        %v1399 = vsub.s32 %v1396, %v1398
        %v1400 = vrot.slane %v1386, %v1399
        %v1401 = vcombine.low %v1178, %v1200
        %v1402 = vcombine.high %v1178, %v1200
        %v1404 = vunpack.c.l.s4 1983009808
        %v1405 = vunpack.c.0.s8 %v1404
        %v1406 = vlaneseq
        %v1407 = vshrl.u32 %v1406, 7
        %v1408 = vsub.s32 %v1405, %v1407
        %v1409 = vrot.slane %v1401, %v1408
        %v1411 = vunpack.c.l.s4 1983009808
        %v1412 = vunpack.c.0.s8 %v1411
        %v1413 = vlaneseq
        %v1414 = vshrl.u32 %v1413, 7
        %v1415 = vsub.s32 %v1412, %v1414
        %v1416 = vrot.slane %v1402, %v1415
        %v1417 = vcombine.low %v1211, %v1233
        %v1418 = vcombine.high %v1211, %v1233
        %v1420 = vunpack.c.l.s4 1983009808
        %v1421 = vunpack.c.0.s8 %v1420
        %v1422 = vlaneseq
        %v1423 = vshrl.u32 %v1422, 7
        %v1424 = vsub.s32 %v1421, %v1423
        %v1425 = vrot.slane %v1417, %v1424
        %v1427 = vunpack.c.l.s4 1983009808
        %v1428 = vunpack.c.0.s8 %v1427
        %v1429 = vlaneseq
        %v1430 = vshrl.u32 %v1429, 7
        %v1431 = vsub.s32 %v1428, %v1430
        %v1432 = vrot.slane %v1418, %v1431
        %v1433 = vcombine.low %v1222, %v1244
        %v1434 = vcombine.high %v1222, %v1244
        %v1436 = vunpack.c.l.s4 1983009808
        %v1437 = vunpack.c.0.s8 %v1436
        %v1438 = vlaneseq
        %v1439 = vshrl.u32 %v1438, 7
        %v1440 = vsub.s32 %v1437, %v1439
        %v1441 = vrot.slane %v1433, %v1440
        %v1443 = vunpack.c.l.s4 1983009808
        %v1444 = vunpack.c.0.s8 %v1443
        %v1445 = vlaneseq
        %v1446 = vshrl.u32 %v1445, 7
        %v1447 = vsub.s32 %v1444, %v1446
        %v1448 = vrot.slane %v1434, %v1447
        %v1449 = vcombine.low %v1393, %v1409
        %v1450 = vcombine.high %v1393, %v1409
        %v1452 = vunpack.c.l.s4 1934713408
        %v1453 = vunpack.c.0.s8 %v1452
        %v1454 = vlaneseq
        %v1455 = vshrl.u32 %v1454, 7
        %v1456 = vsub.s32 %v1453, %v1455
        %v1457 = vrot.slane %v1449, %v1456
        %v1459 = vunpack.c.l.s4 1934713408
        %v1460 = vunpack.c.0.s8 %v1459
        %v1461 = vlaneseq
        %v1462 = vshrl.u32 %v1461, 7
        %v1463 = vsub.s32 %v1460, %v1462
        %v1464 = vrot.slane %v1450, %v1463
        %v1465 = vcombine.low %v1400, %v1416
        %v1466 = vcombine.high %v1400, %v1416
        %v1468 = vunpack.c.l.s4 1934713408
        %v1469 = vunpack.c.0.s8 %v1468
        %v1470 = vlaneseq
        %v1471 = vshrl.u32 %v1470, 7
        %v1472 = vsub.s32 %v1469, %v1471
        %v1473 = vrot.slane %v1465, %v1472
        %v1475 = vunpack.c.l.s4 1934713408
        %v1476 = vunpack.c.0.s8 %v1475
        %v1477 = vlaneseq
        %v1478 = vshrl.u32 %v1477, 7
        %v1479 = vsub.s32 %v1476, %v1478
        %v1480 = vrot.slane %v1466, %v1479
        %v1481 = vcombine.low %v1425, %v1441
        %v1482 = vcombine.high %v1425, %v1441
        %v1484 = vunpack.c.l.s4 1934713408
        %v1485 = vunpack.c.0.s8 %v1484
        %v1486 = vlaneseq
        %v1487 = vshrl.u32 %v1486, 7
        %v1488 = vsub.s32 %v1485, %v1487
        %v1489 = vrot.slane %v1481, %v1488
        %v1491 = vunpack.c.l.s4 1934713408
        %v1492 = vunpack.c.0.s8 %v1491
        %v1493 = vlaneseq
        %v1494 = vshrl.u32 %v1493, 7
        %v1495 = vsub.s32 %v1492, %v1494
        %v1496 = vrot.slane %v1482, %v1495
        %v1497 = vcombine.low %v1432, %v1448
        %v1498 = vcombine.high %v1432, %v1448
        %v1500 = vunpack.c.l.s4 1934713408
        %v1501 = vunpack.c.0.s8 %v1500
        %v1502 = vlaneseq
        %v1503 = vshrl.u32 %v1502, 7
        %v1504 = vsub.s32 %v1501, %v1503
        %v1505 = vrot.slane %v1497, %v1504
        %v1507 = vunpack.c.l.s4 1934713408
        %v1508 = vunpack.c.0.s8 %v1507
        %v1509 = vlaneseq
        %v1510 = vshrl.u32 %v1509, 7
        %v1511 = vsub.s32 %v1508, %v1510
        %v1512 = vrot.slane %v1498, %v1511
        %v1513 = vcombine.low %v1457, %v1489
        %v1514 = vcombine.high %v1457, %v1489
        %v1515 = vcombine.low %v1464, %v1496
        %v1516 = vcombine.high %v1464, %v1496
        %v1517 = vcombine.low %v1473, %v1505
        %v1518 = vcombine.high %v1473, %v1505
        %v1519 = vcombine.low %v1480, %v1512
        %v1520 = vcombine.high %v1480, %v1512
        %v1521 = vcombine.low %v1083, %v1105
        %v1522 = vcombine.high %v1083, %v1105
        %v1524 = vunpack.c.l.s4 1983009808
        %v1525 = vunpack.c.0.s8 %v1524
        %v1526 = vlaneseq
        %v1527 = vshrl.u32 %v1526, 7
        %v1528 = vsub.s32 %v1525, %v1527
        %v1529 = vrot.slane %v1521, %v1528
        %v1531 = vunpack.c.l.s4 1983009808
        %v1532 = vunpack.c.0.s8 %v1531
        %v1533 = vlaneseq
        %v1534 = vshrl.u32 %v1533, 7
        %v1535 = vsub.s32 %v1532, %v1534
        %v1536 = vrot.slane %v1522, %v1535
        %v1537 = vcombine.low %v1094, %v1116
        %v1538 = vcombine.high %v1094, %v1116
        %v1540 = vunpack.c.l.s4 1983009808
        %v1541 = vunpack.c.0.s8 %v1540
        %v1542 = vlaneseq
        %v1543 = vshrl.u32 %v1542, 7
        %v1544 = vsub.s32 %v1541, %v1543
        %v1545 = vrot.slane %v1537, %v1544
        %v1547 = vunpack.c.l.s4 1983009808
        %v1548 = vunpack.c.0.s8 %v1547
        %v1549 = vlaneseq
        %v1550 = vshrl.u32 %v1549, 7
        %v1551 = vsub.s32 %v1548, %v1550
        %v1552 = vrot.slane %v1538, %v1551
        %v1553 = vcombine.low %v1127, %v1149
        %v1554 = vcombine.high %v1127, %v1149
        %v1556 = vunpack.c.l.s4 1983009808
        %v1557 = vunpack.c.0.s8 %v1556
        %v1558 = vlaneseq
        %v1559 = vshrl.u32 %v1558, 7
        %v1560 = vsub.s32 %v1557, %v1559
        %v1561 = vrot.slane %v1553, %v1560
        %v1563 = vunpack.c.l.s4 1983009808
        %v1564 = vunpack.c.0.s8 %v1563
        %v1565 = vlaneseq
        %v1566 = vshrl.u32 %v1565, 7
        %v1567 = vsub.s32 %v1564, %v1566
        %v1568 = vrot.slane %v1554, %v1567
        %v1569 = vcombine.low %v1138, %v1160
        %v1570 = vcombine.high %v1138, %v1160
        %v1572 = vunpack.c.l.s4 1983009808
        %v1573 = vunpack.c.0.s8 %v1572
        %v1574 = vlaneseq
        %v1575 = vshrl.u32 %v1574, 7
        %v1576 = vsub.s32 %v1573, %v1575
        %v1577 = vrot.slane %v1569, %v1576
        %v1579 = vunpack.c.l.s4 1983009808
        %v1580 = vunpack.c.0.s8 %v1579
        %v1581 = vlaneseq
        %v1582 = vshrl.u32 %v1581, 7
        %v1583 = vsub.s32 %v1580, %v1582
        %v1584 = vrot.slane %v1570, %v1583
        %v1585 = vcombine.low %v1529, %v1545
        %v1586 = vcombine.high %v1529, %v1545
        %v1588 = vunpack.c.l.s4 1934713408
        %v1589 = vunpack.c.0.s8 %v1588
        %v1590 = vlaneseq
        %v1591 = vshrl.u32 %v1590, 7
        %v1592 = vsub.s32 %v1589, %v1591
        %v1593 = vrot.slane %v1585, %v1592
        %v1595 = vunpack.c.l.s4 1934713408
        %v1596 = vunpack.c.0.s8 %v1595
        %v1597 = vlaneseq
        %v1598 = vshrl.u32 %v1597, 7
        %v1599 = vsub.s32 %v1596, %v1598
        %v1600 = vrot.slane %v1586, %v1599
        %v1601 = vcombine.low %v1536, %v1552
        %v1602 = vcombine.high %v1536, %v1552
        %v1604 = vunpack.c.l.s4 1934713408
        %v1605 = vunpack.c.0.s8 %v1604
        %v1606 = vlaneseq
        %v1607 = vshrl.u32 %v1606, 7
        %v1608 = vsub.s32 %v1605, %v1607
        %v1609 = vrot.slane %v1601, %v1608
        %v1611 = vunpack.c.l.s4 1934713408
        %v1612 = vunpack.c.0.s8 %v1611
        %v1613 = vlaneseq
        %v1614 = vshrl.u32 %v1613, 7
        %v1615 = vsub.s32 %v1612, %v1614
        %v1616 = vrot.slane %v1602, %v1615
        %v1617 = vcombine.low %v1561, %v1577
        %v1618 = vcombine.high %v1561, %v1577
        %v1620 = vunpack.c.l.s4 1934713408
        %v1621 = vunpack.c.0.s8 %v1620
        %v1622 = vlaneseq
        %v1623 = vshrl.u32 %v1622, 7
        %v1624 = vsub.s32 %v1621, %v1623
        %v1625 = vrot.slane %v1617, %v1624
        %v1627 = vunpack.c.l.s4 1934713408
        %v1628 = vunpack.c.0.s8 %v1627
        %v1629 = vlaneseq
        %v1630 = vshrl.u32 %v1629, 7
        %v1631 = vsub.s32 %v1628, %v1630
        %v1632 = vrot.slane %v1618, %v1631
        %v1633 = vcombine.low %v1568, %v1584
        %v1634 = vcombine.high %v1568, %v1584
        %v1636 = vunpack.c.l.s4 1934713408
        %v1637 = vunpack.c.0.s8 %v1636
        %v1638 = vlaneseq
        %v1639 = vshrl.u32 %v1638, 7
        %v1640 = vsub.s32 %v1637, %v1639
        %v1641 = vrot.slane %v1633, %v1640
        %v1643 = vunpack.c.l.s4 1934713408
        %v1644 = vunpack.c.0.s8 %v1643
        %v1645 = vlaneseq
        %v1646 = vshrl.u32 %v1645, 7
        %v1647 = vsub.s32 %v1644, %v1646
        %v1648 = vrot.slane %v1634, %v1647
        %v1649 = vcombine.low %v1593, %v1625
        %v1650 = vcombine.high %v1593, %v1625
        %v1651 = vcombine.low %v1600, %v1632
        %v1652 = vcombine.high %v1600, %v1632
        %v1653 = vcombine.low %v1609, %v1641
        %v1654 = vcombine.high %v1609, %v1641
        %v1655 = vcombine.low %v1616, %v1648
        %v1656 = vcombine.high %v1616, %v1648
        %v1657 = vcombine.low %v1171, %v1193
        %v1658 = vcombine.high %v1171, %v1193
        %v1660 = vunpack.c.l.s4 1983009808
        %v1661 = vunpack.c.0.s8 %v1660
        %v1662 = vlaneseq
        %v1663 = vshrl.u32 %v1662, 7
        %v1664 = vsub.s32 %v1661, %v1663
        %v1665 = vrot.slane %v1657, %v1664
        %v1667 = vunpack.c.l.s4 1983009808
        %v1668 = vunpack.c.0.s8 %v1667
        %v1669 = vlaneseq
        %v1670 = vshrl.u32 %v1669, 7
        %v1671 = vsub.s32 %v1668, %v1670
        %v1672 = vrot.slane %v1658, %v1671
        %v1673 = vcombine.low %v1182, %v1204
        %v1674 = vcombine.high %v1182, %v1204
        %v1676 = vunpack.c.l.s4 1983009808
        %v1677 = vunpack.c.0.s8 %v1676
        %v1678 = vlaneseq
        %v1679 = vshrl.u32 %v1678, 7
        %v1680 = vsub.s32 %v1677, %v1679
        %v1681 = vrot.slane %v1673, %v1680
        %v1683 = vunpack.c.l.s4 1983009808
        %v1684 = vunpack.c.0.s8 %v1683
        %v1685 = vlaneseq
        %v1686 = vshrl.u32 %v1685, 7
        %v1687 = vsub.s32 %v1684, %v1686
        %v1688 = vrot.slane %v1674, %v1687
        %v1689 = vcombine.low %v1215, %v1237
        %v1690 = vcombine.high %v1215, %v1237
        %v1692 = vunpack.c.l.s4 1983009808
        %v1693 = vunpack.c.0.s8 %v1692
        %v1694 = vlaneseq
        %v1695 = vshrl.u32 %v1694, 7
        %v1696 = vsub.s32 %v1693, %v1695
        %v1697 = vrot.slane %v1689, %v1696
        %v1699 = vunpack.c.l.s4 1983009808
        %v1700 = vunpack.c.0.s8 %v1699
        %v1701 = vlaneseq
        %v1702 = vshrl.u32 %v1701, 7
        %v1703 = vsub.s32 %v1700, %v1702
        %v1704 = vrot.slane %v1690, %v1703
        %v1705 = vcombine.low %v1226, %v1248
        %v1706 = vcombine.high %v1226, %v1248
        %v1708 = vunpack.c.l.s4 1983009808
        %v1709 = vunpack.c.0.s8 %v1708
        %v1710 = vlaneseq
        %v1711 = vshrl.u32 %v1710, 7
        %v1712 = vsub.s32 %v1709, %v1711
        %v1713 = vrot.slane %v1705, %v1712
        %v1715 = vunpack.c.l.s4 1983009808
        %v1716 = vunpack.c.0.s8 %v1715
        %v1717 = vlaneseq
        %v1718 = vshrl.u32 %v1717, 7
        %v1719 = vsub.s32 %v1716, %v1718
        %v1720 = vrot.slane %v1706, %v1719
        %v1721 = vcombine.low %v1665, %v1681
        %v1722 = vcombine.high %v1665, %v1681
        %v1724 = vunpack.c.l.s4 1934713408
        %v1725 = vunpack.c.0.s8 %v1724
        %v1726 = vlaneseq
        %v1727 = vshrl.u32 %v1726, 7
        %v1728 = vsub.s32 %v1725, %v1727
        %v1729 = vrot.slane %v1721, %v1728
        %v1731 = vunpack.c.l.s4 1934713408
        %v1732 = vunpack.c.0.s8 %v1731
        %v1733 = vlaneseq
        %v1734 = vshrl.u32 %v1733, 7
        %v1735 = vsub.s32 %v1732, %v1734
        %v1736 = vrot.slane %v1722, %v1735
        %v1737 = vcombine.low %v1672, %v1688
        %v1738 = vcombine.high %v1672, %v1688
        %v1740 = vunpack.c.l.s4 1934713408
        %v1741 = vunpack.c.0.s8 %v1740
        %v1742 = vlaneseq
        %v1743 = vshrl.u32 %v1742, 7
        %v1744 = vsub.s32 %v1741, %v1743
        %v1745 = vrot.slane %v1737, %v1744
        %v1747 = vunpack.c.l.s4 1934713408
        %v1748 = vunpack.c.0.s8 %v1747
        %v1749 = vlaneseq
        %v1750 = vshrl.u32 %v1749, 7
        %v1751 = vsub.s32 %v1748, %v1750
        %v1752 = vrot.slane %v1738, %v1751
        %v1753 = vcombine.low %v1697, %v1713
        %v1754 = vcombine.high %v1697, %v1713
        %v1756 = vunpack.c.l.s4 1934713408
        %v1757 = vunpack.c.0.s8 %v1756
        %v1758 = vlaneseq
        %v1759 = vshrl.u32 %v1758, 7
        %v1760 = vsub.s32 %v1757, %v1759
        %v1761 = vrot.slane %v1753, %v1760
        %v1763 = vunpack.c.l.s4 1934713408
        %v1764 = vunpack.c.0.s8 %v1763
        %v1765 = vlaneseq
        %v1766 = vshrl.u32 %v1765, 7
        %v1767 = vsub.s32 %v1764, %v1766
        %v1768 = vrot.slane %v1754, %v1767
        %v1769 = vcombine.low %v1704, %v1720
        %v1770 = vcombine.high %v1704, %v1720
        %v1772 = vunpack.c.l.s4 1934713408
        %v1773 = vunpack.c.0.s8 %v1772
        %v1774 = vlaneseq
        %v1775 = vshrl.u32 %v1774, 7
        %v1776 = vsub.s32 %v1773, %v1775
        %v1777 = vrot.slane %v1769, %v1776
        %v1779 = vunpack.c.l.s4 1934713408
        %v1780 = vunpack.c.0.s8 %v1779
        %v1781 = vlaneseq
        %v1782 = vshrl.u32 %v1781, 7
        %v1783 = vsub.s32 %v1780, %v1782
        %v1784 = vrot.slane %v1770, %v1783
        %v1785 = vcombine.low %v1729, %v1761
        %v1786 = vcombine.high %v1729, %v1761
        %v1787 = vcombine.low %v1736, %v1768
        %v1788 = vcombine.high %v1736, %v1768
        %v1789 = vcombine.low %v1745, %v1777
        %v1790 = vcombine.high %v1745, %v1777
        %v1791 = vcombine.low %v1752, %v1784
        %v1792 = vcombine.high %v1752, %v1784
        %1795 = vrot.lane.b32.xlu0 %v1378, 2
        %v1796 = vpop.permute.xlu0 %1795
        %1797 = vrot.lane.b32.xlu0 %v1514, 2
        %v1798 = vpop.permute.xlu0 %1797
        %1803 = vrot.lane.b32.xlu0 %v1379, 4
        %v1804 = vpop.permute.xlu0 %1803
        %1805 = vrot.lane.b32.xlu0 %v1515, 4
        %v1806 = vpop.permute.xlu0 %1805
        %1811 = vrot.lane.b32.xlu0 %v1380, 6
        %v1812 = vpop.permute.xlu0 %1811
        %1813 = vrot.lane.b32.xlu0 %v1516, 6
        %v1814 = vpop.permute.xlu0 %1813
        %1819 = vrot.lane.b32.xlu0 %v1381, 8
        %v1820 = vpop.permute.xlu0 %1819
        %1821 = vrot.lane.b32.xlu0 %v1517, 8
        %v1822 = vpop.permute.xlu0 %1821
        %1827 = vrot.lane.b32.xlu0 %v1382, 10
        %v1828 = vpop.permute.xlu0 %1827
        %1829 = vrot.lane.b32.xlu0 %v1518, 10
        %v1830 = vpop.permute.xlu0 %1829
        %1835 = vrot.lane.b32.xlu0 %v1383, 12
        %v1836 = vpop.permute.xlu0 %1835
        %1837 = vrot.lane.b32.xlu0 %v1519, 12
        %v1838 = vpop.permute.xlu0 %1837
        %1843 = vrot.lane.b32.xlu0 %v1384, 14
        %v1844 = vpop.permute.xlu0 %1843
        %1845 = vrot.lane.b32.xlu0 %v1520, 14
        %v1846 = vpop.permute.xlu0 %1845
        %1851 = vrot.lane.b32.xlu0 %v1649, 16
        %v1852 = vpop.permute.xlu0 %1851
        %1853 = vrot.lane.b32.xlu0 %v1785, 16
        %v1854 = vpop.permute.xlu0 %1853
        %1859 = vrot.lane.b32.xlu0 %v1650, 18
        %v1860 = vpop.permute.xlu0 %1859
        %1861 = vrot.lane.b32.xlu0 %v1786, 18
        %v1862 = vpop.permute.xlu0 %1861
        %1867 = vrot.lane.b32.xlu0 %v1651, 20
        %v1868 = vpop.permute.xlu0 %1867
        %1869 = vrot.lane.b32.xlu0 %v1787, 20
        %v1870 = vpop.permute.xlu0 %1869
        %1875 = vrot.lane.b32.xlu0 %v1652, 22
        %v1876 = vpop.permute.xlu0 %1875
        %1877 = vrot.lane.b32.xlu0 %v1788, 22
        %v1878 = vpop.permute.xlu0 %1877
        %1883 = vrot.lane.b32.xlu0 %v1653, 24
        %v1884 = vpop.permute.xlu0 %1883
        %1885 = vrot.lane.b32.xlu0 %v1789, 24
        %v1886 = vpop.permute.xlu0 %1885
        %1891 = vrot.lane.b32.xlu0 %v1654, 26
        %v1892 = vpop.permute.xlu0 %1891
        %1893 = vrot.lane.b32.xlu0 %v1790, 26
        %v1894 = vpop.permute.xlu0 %1893
        %1899 = vrot.lane.b32.xlu0 %v1655, 28
        %v1900 = vpop.permute.xlu0 %1899
        %1901 = vrot.lane.b32.xlu0 %v1791, 28
        %v1902 = vpop.permute.xlu0 %1901
        %1907 = vrot.lane.b32.xlu0 %v1656, 30
        %v1908 = vpop.permute.xlu0 %1907
        %1909 = vrot.lane.b32.xlu0 %v1792, 30
        %v1910 = vpop.permute.xlu0 %1909
        %v1913 = vsel %vm1025, %v1377, %v1796
        %v1914 = vsel %vm1025, %v1513, %v1798
        %v1915 = vsel %vm1028, %v1913, %v1804
        %v1916 = vsel %vm1028, %v1914, %v1806
        %v1917 = vsel %vm1031, %v1915, %v1812
        %v1918 = vsel %vm1031, %v1916, %v1814
        %v1919 = vsel %vm1034, %v1917, %v1820
        %v1920 = vsel %vm1034, %v1918, %v1822
        %v1921 = vsel %vm1037, %v1919, %v1828
        %v1922 = vsel %vm1037, %v1920, %v1830
        %v1923 = vsel %vm1040, %v1921, %v1836
        %v1924 = vsel %vm1040, %v1922, %v1838
        %v1925 = vsel %vm1043, %v1923, %v1844
        %v1926 = vsel %vm1043, %v1924, %v1846
        %v1927 = vsel %vm1046, %v1925, %v1852
        %v1928 = vsel %vm1046, %v1926, %v1854
        %v1929 = vsel %vm1049, %v1927, %v1860
        %v1930 = vsel %vm1049, %v1928, %v1862
        %v1931 = vsel %vm1052, %v1929, %v1868
        %v1932 = vsel %vm1052, %v1930, %v1870
        %v1933 = vsel %vm1055, %v1931, %v1876
        %v1934 = vsel %vm1055, %v1932, %v1878
        %v1935 = vsel %vm1058, %v1933, %v1884
        %v1936 = vsel %vm1058, %v1934, %v1886
        %v1937 = vsel %vm1061, %v1935, %v1892
        %v1938 = vsel %vm1061, %v1936, %v1894
        %v1939 = vsel %vm1064, %v1937, %v1900
        %v1940 = vsel %vm1064, %v1938, %v1902
        %v1941 = vsel %vm1067, %v1939, %v1908
        %v1942 = vsel %vm1067, %v1940, %v1910
        %v1943 = vsel %vm182, %v1941, %v1068
        %v1944 = vsel %vm182, %v1942, %v1069
        %vm1945 = vcmask 261120
        %1946 = vst.msk [vmem:[%s165] sm:$0xff] %vm1945, %v1943
        %1947 = vst.msk [vmem:[%s165 + $0x8] sm:$0xff] %vm1945, %v1944
        %s1948 = scalar_lea.vmem %s147, 32 [#allocation2]
        %v1949 = vld [vmem:[%s1948] sm:$0xff]
        %v1950 = vld [vmem:[%s1948 + $0x8] sm:$0xff]
        %v1951 = vlaneseq
        %v1952 = vshrl.u32 %v1951, 7
        %v1953 = vsub.s32 0, %v1952
        %v1954 = vrot.slane %v1949, %v1953
        %1956 = vbcast.lane.b32.xlu0 %v1954, 256
        %v1957 = vpop.permute.xlu0 %1956
        %s1959 = sor.u32 256, 8
        %1960 = vbcast.lane.b32.xlu0 %v1954, %s1959
        %v1961 = vpop.permute.xlu0 %1960
        %v1962 = vlaneseq
        %v1963 = vshrl.u32 %v1962, 7
        %v1964 = vsub.s32 1, %v1963
        %v1965 = vrot.slane %v1949, %v1964
        %1967 = vbcast.lane.b32.xlu0 %v1965, 256
        %v1968 = vpop.permute.xlu0 %1967
        %s1970 = sor.u32 256, 8
        %1971 = vbcast.lane.b32.xlu0 %v1965, %s1970
        %v1972 = vpop.permute.xlu0 %1971
        %v1973 = vlaneseq
        %v1974 = vshrl.u32 %v1973, 7
        %v1975 = vsub.s32 2, %v1974
        %v1976 = vrot.slane %v1949, %v1975
        %1978 = vbcast.lane.b32.xlu0 %v1976, 256
        %v1979 = vpop.permute.xlu0 %1978
        %s1981 = sor.u32 256, 8
        %1982 = vbcast.lane.b32.xlu0 %v1976, %s1981
        %v1983 = vpop.permute.xlu0 %1982
        %v1984 = vlaneseq
        %v1985 = vshrl.u32 %v1984, 7
        %v1986 = vsub.s32 3, %v1985
        %v1987 = vrot.slane %v1949, %v1986
        %1989 = vbcast.lane.b32.xlu0 %v1987, 256
        %v1990 = vpop.permute.xlu0 %1989
        %s1992 = sor.u32 256, 8
        %1993 = vbcast.lane.b32.xlu0 %v1987, %s1992
        %v1994 = vpop.permute.xlu0 %1993
        %v1995 = vlaneseq
        %v1996 = vshrl.u32 %v1995, 7
        %v1997 = vsub.s32 4, %v1996
        %v1998 = vrot.slane %v1949, %v1997
        %2000 = vbcast.lane.b32.xlu0 %v1998, 256
        %v2001 = vpop.permute.xlu0 %2000
        %s2003 = sor.u32 256, 8
        %2004 = vbcast.lane.b32.xlu0 %v1998, %s2003
        %v2005 = vpop.permute.xlu0 %2004
        %v2006 = vlaneseq
        %v2007 = vshrl.u32 %v2006, 7
        %v2008 = vsub.s32 5, %v2007
        %v2009 = vrot.slane %v1949, %v2008
        %2011 = vbcast.lane.b32.xlu0 %v2009, 256
        %v2012 = vpop.permute.xlu0 %2011
        %s2014 = sor.u32 256, 8
        %2015 = vbcast.lane.b32.xlu0 %v2009, %s2014
        %v2016 = vpop.permute.xlu0 %2015
        %v2017 = vlaneseq
        %v2018 = vshrl.u32 %v2017, 7
        %v2019 = vsub.s32 6, %v2018
        %v2020 = vrot.slane %v1949, %v2019
        %2022 = vbcast.lane.b32.xlu0 %v2020, 256
        %v2023 = vpop.permute.xlu0 %2022
        %s2025 = sor.u32 256, 8
        %2026 = vbcast.lane.b32.xlu0 %v2020, %s2025
        %v2027 = vpop.permute.xlu0 %2026
        %v2028 = vlaneseq
        %v2029 = vshrl.u32 %v2028, 7
        %v2030 = vsub.s32 7, %v2029
        %v2031 = vrot.slane %v1949, %v2030
        %2033 = vbcast.lane.b32.xlu0 %v2031, 256
        %v2034 = vpop.permute.xlu0 %2033
        %s2036 = sor.u32 256, 8
        %2037 = vbcast.lane.b32.xlu0 %v2031, %s2036
        %v2038 = vpop.permute.xlu0 %2037
        %v2039 = vlaneseq
        %v2040 = vshrl.u32 %v2039, 7
        %v2041 = vsub.s32 0, %v2040
        %v2042 = vrot.slane %v1950, %v2041
        %2044 = vbcast.lane.b32.xlu0 %v2042, 256
        %v2045 = vpop.permute.xlu0 %2044
        %s2047 = sor.u32 256, 8
        %2048 = vbcast.lane.b32.xlu0 %v2042, %s2047
        %v2049 = vpop.permute.xlu0 %2048
        %v2050 = vlaneseq
        %v2051 = vshrl.u32 %v2050, 7
        %v2052 = vsub.s32 1, %v2051
        %v2053 = vrot.slane %v1950, %v2052
        %2055 = vbcast.lane.b32.xlu0 %v2053, 256
        %v2056 = vpop.permute.xlu0 %2055
        %s2058 = sor.u32 256, 8
        %2059 = vbcast.lane.b32.xlu0 %v2053, %s2058
        %v2060 = vpop.permute.xlu0 %2059
        %v2061 = vlaneseq
        %v2062 = vshrl.u32 %v2061, 7
        %v2063 = vsub.s32 2, %v2062
        %v2064 = vrot.slane %v1950, %v2063
        %2066 = vbcast.lane.b32.xlu0 %v2064, 256
        %v2067 = vpop.permute.xlu0 %2066
        %s2069 = sor.u32 256, 8
        %2070 = vbcast.lane.b32.xlu0 %v2064, %s2069
        %v2071 = vpop.permute.xlu0 %2070
        %v2072 = vlaneseq
        %v2073 = vshrl.u32 %v2072, 7
        %v2074 = vsub.s32 3, %v2073
        %v2075 = vrot.slane %v1950, %v2074
        %2077 = vbcast.lane.b32.xlu0 %v2075, 256
        %v2078 = vpop.permute.xlu0 %2077
        %s2080 = sor.u32 256, 8
        %2081 = vbcast.lane.b32.xlu0 %v2075, %s2080
        %v2082 = vpop.permute.xlu0 %2081
        %v2083 = vlaneseq
        %v2084 = vshrl.u32 %v2083, 7
        %v2085 = vsub.s32 4, %v2084
        %v2086 = vrot.slane %v1950, %v2085
        %2088 = vbcast.lane.b32.xlu0 %v2086, 256
        %v2089 = vpop.permute.xlu0 %2088
        %s2091 = sor.u32 256, 8
        %2092 = vbcast.lane.b32.xlu0 %v2086, %s2091
        %v2093 = vpop.permute.xlu0 %2092
        %v2094 = vlaneseq
        %v2095 = vshrl.u32 %v2094, 7
        %v2096 = vsub.s32 5, %v2095
        %v2097 = vrot.slane %v1950, %v2096
        %2099 = vbcast.lane.b32.xlu0 %v2097, 256
        %v2100 = vpop.permute.xlu0 %2099
        %s2102 = sor.u32 256, 8
        %2103 = vbcast.lane.b32.xlu0 %v2097, %s2102
        %v2104 = vpop.permute.xlu0 %2103
        %v2105 = vlaneseq
        %v2106 = vshrl.u32 %v2105, 7
        %v2107 = vsub.s32 6, %v2106
        %v2108 = vrot.slane %v1950, %v2107
        %2110 = vbcast.lane.b32.xlu0 %v2108, 256
        %v2111 = vpop.permute.xlu0 %2110
        %s2113 = sor.u32 256, 8
        %2114 = vbcast.lane.b32.xlu0 %v2108, %s2113
        %v2115 = vpop.permute.xlu0 %2114
        %v2116 = vlaneseq
        %v2117 = vshrl.u32 %v2116, 7
        %v2118 = vsub.s32 7, %v2117
        %v2119 = vrot.slane %v1950, %v2118
        %2121 = vbcast.lane.b32.xlu0 %v2119, 256
        %v2122 = vpop.permute.xlu0 %2121
        %s2124 = sor.u32 256, 8
        %2125 = vbcast.lane.b32.xlu0 %v2119, %s2124
        %v2126 = vpop.permute.xlu0 %2125
        %v2127 = vcombine.low %v1957, %v1979
        %v2128 = vcombine.high %v1957, %v1979
        %v2130 = vunpack.c.l.s4 1983009808
        %v2131 = vunpack.c.0.s8 %v2130
        %v2132 = vlaneseq
        %v2133 = vshrl.u32 %v2132, 7
        %v2134 = vsub.s32 %v2131, %v2133
        %v2135 = vrot.slane %v2127, %v2134
        %v2137 = vunpack.c.l.s4 1983009808
        %v2138 = vunpack.c.0.s8 %v2137
        %v2139 = vlaneseq
        %v2140 = vshrl.u32 %v2139, 7
        %v2141 = vsub.s32 %v2138, %v2140
        %v2142 = vrot.slane %v2128, %v2141
        %v2143 = vcombine.low %v1968, %v1990
        %v2144 = vcombine.high %v1968, %v1990
        %v2146 = vunpack.c.l.s4 1983009808
        %v2147 = vunpack.c.0.s8 %v2146
        %v2148 = vlaneseq
        %v2149 = vshrl.u32 %v2148, 7
        %v2150 = vsub.s32 %v2147, %v2149
        %v2151 = vrot.slane %v2143, %v2150
        %v2153 = vunpack.c.l.s4 1983009808
        %v2154 = vunpack.c.0.s8 %v2153
        %v2155 = vlaneseq
        %v2156 = vshrl.u32 %v2155, 7
        %v2157 = vsub.s32 %v2154, %v2156
        %v2158 = vrot.slane %v2144, %v2157
        %v2159 = vcombine.low %v2001, %v2023
        %v2160 = vcombine.high %v2001, %v2023
        %v2162 = vunpack.c.l.s4 1983009808
        %v2163 = vunpack.c.0.s8 %v2162
        %v2164 = vlaneseq
        %v2165 = vshrl.u32 %v2164, 7
        %v2166 = vsub.s32 %v2163, %v2165
        %v2167 = vrot.slane %v2159, %v2166
        %v2169 = vunpack.c.l.s4 1983009808
        %v2170 = vunpack.c.0.s8 %v2169
        %v2171 = vlaneseq
        %v2172 = vshrl.u32 %v2171, 7
        %v2173 = vsub.s32 %v2170, %v2172
        %v2174 = vrot.slane %v2160, %v2173
        %v2175 = vcombine.low %v2012, %v2034
        %v2176 = vcombine.high %v2012, %v2034
        %v2178 = vunpack.c.l.s4 1983009808
        %v2179 = vunpack.c.0.s8 %v2178
        %v2180 = vlaneseq
        %v2181 = vshrl.u32 %v2180, 7
        %v2182 = vsub.s32 %v2179, %v2181
        %v2183 = vrot.slane %v2175, %v2182
        %v2185 = vunpack.c.l.s4 1983009808
        %v2186 = vunpack.c.0.s8 %v2185
        %v2187 = vlaneseq
        %v2188 = vshrl.u32 %v2187, 7
        %v2189 = vsub.s32 %v2186, %v2188
        %v2190 = vrot.slane %v2176, %v2189
        %v2191 = vcombine.low %v2135, %v2151
        %v2192 = vcombine.high %v2135, %v2151
        %v2194 = vunpack.c.l.s4 1934713408
        %v2195 = vunpack.c.0.s8 %v2194
        %v2196 = vlaneseq
        %v2197 = vshrl.u32 %v2196, 7
        %v2198 = vsub.s32 %v2195, %v2197
        %v2199 = vrot.slane %v2191, %v2198
        %v2201 = vunpack.c.l.s4 1934713408
        %v2202 = vunpack.c.0.s8 %v2201
        %v2203 = vlaneseq
        %v2204 = vshrl.u32 %v2203, 7
        %v2205 = vsub.s32 %v2202, %v2204
        %v2206 = vrot.slane %v2192, %v2205
        %v2207 = vcombine.low %v2142, %v2158
        %v2208 = vcombine.high %v2142, %v2158
        %v2210 = vunpack.c.l.s4 1934713408
        %v2211 = vunpack.c.0.s8 %v2210
        %v2212 = vlaneseq
        %v2213 = vshrl.u32 %v2212, 7
        %v2214 = vsub.s32 %v2211, %v2213
        %v2215 = vrot.slane %v2207, %v2214
        %v2217 = vunpack.c.l.s4 1934713408
        %v2218 = vunpack.c.0.s8 %v2217
        %v2219 = vlaneseq
        %v2220 = vshrl.u32 %v2219, 7
        %v2221 = vsub.s32 %v2218, %v2220
        %v2222 = vrot.slane %v2208, %v2221
        %v2223 = vcombine.low %v2167, %v2183
        %v2224 = vcombine.high %v2167, %v2183
        %v2226 = vunpack.c.l.s4 1934713408
        %v2227 = vunpack.c.0.s8 %v2226
        %v2228 = vlaneseq
        %v2229 = vshrl.u32 %v2228, 7
        %v2230 = vsub.s32 %v2227, %v2229
        %v2231 = vrot.slane %v2223, %v2230
        %v2233 = vunpack.c.l.s4 1934713408
        %v2234 = vunpack.c.0.s8 %v2233
        %v2235 = vlaneseq
        %v2236 = vshrl.u32 %v2235, 7
        %v2237 = vsub.s32 %v2234, %v2236
        %v2238 = vrot.slane %v2224, %v2237
        %v2239 = vcombine.low %v2174, %v2190
        %v2240 = vcombine.high %v2174, %v2190
        %v2242 = vunpack.c.l.s4 1934713408
        %v2243 = vunpack.c.0.s8 %v2242
        %v2244 = vlaneseq
        %v2245 = vshrl.u32 %v2244, 7
        %v2246 = vsub.s32 %v2243, %v2245
        %v2247 = vrot.slane %v2239, %v2246
        %v2249 = vunpack.c.l.s4 1934713408
        %v2250 = vunpack.c.0.s8 %v2249
        %v2251 = vlaneseq
        %v2252 = vshrl.u32 %v2251, 7
        %v2253 = vsub.s32 %v2250, %v2252
        %v2254 = vrot.slane %v2240, %v2253
        %v2255 = vcombine.low %v2199, %v2231
        %v2256 = vcombine.high %v2199, %v2231
        %v2257 = vcombine.low %v2206, %v2238
        %v2258 = vcombine.high %v2206, %v2238
        %v2259 = vcombine.low %v2215, %v2247
        %v2260 = vcombine.high %v2215, %v2247
        %v2261 = vcombine.low %v2222, %v2254
        %v2262 = vcombine.high %v2222, %v2254
        %v2263 = vcombine.low %v2045, %v2067
        %v2264 = vcombine.high %v2045, %v2067
        %v2266 = vunpack.c.l.s4 1983009808
        %v2267 = vunpack.c.0.s8 %v2266
        %v2268 = vlaneseq
        %v2269 = vshrl.u32 %v2268, 7
        %v2270 = vsub.s32 %v2267, %v2269
        %v2271 = vrot.slane %v2263, %v2270
        %v2273 = vunpack.c.l.s4 1983009808
        %v2274 = vunpack.c.0.s8 %v2273
        %v2275 = vlaneseq
        %v2276 = vshrl.u32 %v2275, 7
        %v2277 = vsub.s32 %v2274, %v2276
        %v2278 = vrot.slane %v2264, %v2277
        %v2279 = vcombine.low %v2056, %v2078
        %v2280 = vcombine.high %v2056, %v2078
        %v2282 = vunpack.c.l.s4 1983009808
        %v2283 = vunpack.c.0.s8 %v2282
        %v2284 = vlaneseq
        %v2285 = vshrl.u32 %v2284, 7
        %v2286 = vsub.s32 %v2283, %v2285
        %v2287 = vrot.slane %v2279, %v2286
        %v2289 = vunpack.c.l.s4 1983009808
        %v2290 = vunpack.c.0.s8 %v2289
        %v2291 = vlaneseq
        %v2292 = vshrl.u32 %v2291, 7
        %v2293 = vsub.s32 %v2290, %v2292
        %v2294 = vrot.slane %v2280, %v2293
        %v2295 = vcombine.low %v2089, %v2111
        %v2296 = vcombine.high %v2089, %v2111
        %v2298 = vunpack.c.l.s4 1983009808
        %v2299 = vunpack.c.0.s8 %v2298
        %v2300 = vlaneseq
        %v2301 = vshrl.u32 %v2300, 7
        %v2302 = vsub.s32 %v2299, %v2301
        %v2303 = vrot.slane %v2295, %v2302
        %v2305 = vunpack.c.l.s4 1983009808
        %v2306 = vunpack.c.0.s8 %v2305
        %v2307 = vlaneseq
        %v2308 = vshrl.u32 %v2307, 7
        %v2309 = vsub.s32 %v2306, %v2308
        %v2310 = vrot.slane %v2296, %v2309
        %v2311 = vcombine.low %v2100, %v2122
        %v2312 = vcombine.high %v2100, %v2122
        %v2314 = vunpack.c.l.s4 1983009808
        %v2315 = vunpack.c.0.s8 %v2314
        %v2316 = vlaneseq
        %v2317 = vshrl.u32 %v2316, 7
        %v2318 = vsub.s32 %v2315, %v2317
        %v2319 = vrot.slane %v2311, %v2318
        %v2321 = vunpack.c.l.s4 1983009808
        %v2322 = vunpack.c.0.s8 %v2321
        %v2323 = vlaneseq
        %v2324 = vshrl.u32 %v2323, 7
        %v2325 = vsub.s32 %v2322, %v2324
        %v2326 = vrot.slane %v2312, %v2325
        %v2327 = vcombine.low %v2271, %v2287
        %v2328 = vcombine.high %v2271, %v2287
        %v2330 = vunpack.c.l.s4 1934713408
        %v2331 = vunpack.c.0.s8 %v2330
        %v2332 = vlaneseq
        %v2333 = vshrl.u32 %v2332, 7
        %v2334 = vsub.s32 %v2331, %v2333
        %v2335 = vrot.slane %v2327, %v2334
        %v2337 = vunpack.c.l.s4 1934713408
        %v2338 = vunpack.c.0.s8 %v2337
        %v2339 = vlaneseq
        %v2340 = vshrl.u32 %v2339, 7
        %v2341 = vsub.s32 %v2338, %v2340
        %v2342 = vrot.slane %v2328, %v2341
        %v2343 = vcombine.low %v2278, %v2294
        %v2344 = vcombine.high %v2278, %v2294
        %v2346 = vunpack.c.l.s4 1934713408
        %v2347 = vunpack.c.0.s8 %v2346
        %v2348 = vlaneseq
        %v2349 = vshrl.u32 %v2348, 7
        %v2350 = vsub.s32 %v2347, %v2349
        %v2351 = vrot.slane %v2343, %v2350
        %v2353 = vunpack.c.l.s4 1934713408
        %v2354 = vunpack.c.0.s8 %v2353
        %v2355 = vlaneseq
        %v2356 = vshrl.u32 %v2355, 7
        %v2357 = vsub.s32 %v2354, %v2356
        %v2358 = vrot.slane %v2344, %v2357
        %v2359 = vcombine.low %v2303, %v2319
        %v2360 = vcombine.high %v2303, %v2319
        %v2362 = vunpack.c.l.s4 1934713408
        %v2363 = vunpack.c.0.s8 %v2362
        %v2364 = vlaneseq
        %v2365 = vshrl.u32 %v2364, 7
        %v2366 = vsub.s32 %v2363, %v2365
        %v2367 = vrot.slane %v2359, %v2366
        %v2369 = vunpack.c.l.s4 1934713408
        %v2370 = vunpack.c.0.s8 %v2369
        %v2371 = vlaneseq
        %v2372 = vshrl.u32 %v2371, 7
        %v2373 = vsub.s32 %v2370, %v2372
        %v2374 = vrot.slane %v2360, %v2373
        %v2375 = vcombine.low %v2310, %v2326
        %v2376 = vcombine.high %v2310, %v2326
        %v2378 = vunpack.c.l.s4 1934713408
        %v2379 = vunpack.c.0.s8 %v2378
        %v2380 = vlaneseq
        %v2381 = vshrl.u32 %v2380, 7
        %v2382 = vsub.s32 %v2379, %v2381
        %v2383 = vrot.slane %v2375, %v2382
        %v2385 = vunpack.c.l.s4 1934713408
        %v2386 = vunpack.c.0.s8 %v2385
        %v2387 = vlaneseq
        %v2388 = vshrl.u32 %v2387, 7
        %v2389 = vsub.s32 %v2386, %v2388
        %v2390 = vrot.slane %v2376, %v2389
        %v2391 = vcombine.low %v2335, %v2367
        %v2392 = vcombine.high %v2335, %v2367
        %v2393 = vcombine.low %v2342, %v2374
        %v2394 = vcombine.high %v2342, %v2374
        %v2395 = vcombine.low %v2351, %v2383
        %v2396 = vcombine.high %v2351, %v2383
        %v2397 = vcombine.low %v2358, %v2390
        %v2398 = vcombine.high %v2358, %v2390
        %v2399 = vcombine.low %v1961, %v1983
        %v2400 = vcombine.high %v1961, %v1983
        %v2402 = vunpack.c.l.s4 1983009808
        %v2403 = vunpack.c.0.s8 %v2402
        %v2404 = vlaneseq
        %v2405 = vshrl.u32 %v2404, 7
        %v2406 = vsub.s32 %v2403, %v2405
        %v2407 = vrot.slane %v2399, %v2406
        %v2409 = vunpack.c.l.s4 1983009808
        %v2410 = vunpack.c.0.s8 %v2409
        %v2411 = vlaneseq
        %v2412 = vshrl.u32 %v2411, 7
        %v2413 = vsub.s32 %v2410, %v2412
        %v2414 = vrot.slane %v2400, %v2413
        %v2415 = vcombine.low %v1972, %v1994
        %v2416 = vcombine.high %v1972, %v1994
        %v2418 = vunpack.c.l.s4 1983009808
        %v2419 = vunpack.c.0.s8 %v2418
        %v2420 = vlaneseq
        %v2421 = vshrl.u32 %v2420, 7
        %v2422 = vsub.s32 %v2419, %v2421
        %v2423 = vrot.slane %v2415, %v2422
        %v2425 = vunpack.c.l.s4 1983009808
        %v2426 = vunpack.c.0.s8 %v2425
        %v2427 = vlaneseq
        %v2428 = vshrl.u32 %v2427, 7
        %v2429 = vsub.s32 %v2426, %v2428
        %v2430 = vrot.slane %v2416, %v2429
        %v2431 = vcombine.low %v2005, %v2027
        %v2432 = vcombine.high %v2005, %v2027
        %v2434 = vunpack.c.l.s4 1983009808
        %v2435 = vunpack.c.0.s8 %v2434
        %v2436 = vlaneseq
        %v2437 = vshrl.u32 %v2436, 7
        %v2438 = vsub.s32 %v2435, %v2437
        %v2439 = vrot.slane %v2431, %v2438
        %v2441 = vunpack.c.l.s4 1983009808
        %v2442 = vunpack.c.0.s8 %v2441
        %v2443 = vlaneseq
        %v2444 = vshrl.u32 %v2443, 7
        %v2445 = vsub.s32 %v2442, %v2444
        %v2446 = vrot.slane %v2432, %v2445
        %v2447 = vcombine.low %v2016, %v2038
        %v2448 = vcombine.high %v2016, %v2038
        %v2450 = vunpack.c.l.s4 1983009808
        %v2451 = vunpack.c.0.s8 %v2450
        %v2452 = vlaneseq
        %v2453 = vshrl.u32 %v2452, 7
        %v2454 = vsub.s32 %v2451, %v2453
        %v2455 = vrot.slane %v2447, %v2454
        %v2457 = vunpack.c.l.s4 1983009808
        %v2458 = vunpack.c.0.s8 %v2457
        %v2459 = vlaneseq
        %v2460 = vshrl.u32 %v2459, 7
        %v2461 = vsub.s32 %v2458, %v2460
        %v2462 = vrot.slane %v2448, %v2461
        %v2463 = vcombine.low %v2407, %v2423
        %v2464 = vcombine.high %v2407, %v2423
        %v2466 = vunpack.c.l.s4 1934713408
        %v2467 = vunpack.c.0.s8 %v2466
        %v2468 = vlaneseq
        %v2469 = vshrl.u32 %v2468, 7
        %v2470 = vsub.s32 %v2467, %v2469
        %v2471 = vrot.slane %v2463, %v2470
        %v2473 = vunpack.c.l.s4 1934713408
        %v2474 = vunpack.c.0.s8 %v2473
        %v2475 = vlaneseq
        %v2476 = vshrl.u32 %v2475, 7
        %v2477 = vsub.s32 %v2474, %v2476
        %v2478 = vrot.slane %v2464, %v2477
        %v2479 = vcombine.low %v2414, %v2430
        %v2480 = vcombine.high %v2414, %v2430
        %v2482 = vunpack.c.l.s4 1934713408
        %v2483 = vunpack.c.0.s8 %v2482
        %v2484 = vlaneseq
        %v2485 = vshrl.u32 %v2484, 7
        %v2486 = vsub.s32 %v2483, %v2485
        %v2487 = vrot.slane %v2479, %v2486
        %v2489 = vunpack.c.l.s4 1934713408
        %v2490 = vunpack.c.0.s8 %v2489
        %v2491 = vlaneseq
        %v2492 = vshrl.u32 %v2491, 7
        %v2493 = vsub.s32 %v2490, %v2492
        %v2494 = vrot.slane %v2480, %v2493
        %v2495 = vcombine.low %v2439, %v2455
        %v2496 = vcombine.high %v2439, %v2455
        %v2498 = vunpack.c.l.s4 1934713408
        %v2499 = vunpack.c.0.s8 %v2498
        %v2500 = vlaneseq
        %v2501 = vshrl.u32 %v2500, 7
        %v2502 = vsub.s32 %v2499, %v2501
        %v2503 = vrot.slane %v2495, %v2502
        %v2505 = vunpack.c.l.s4 1934713408
        %v2506 = vunpack.c.0.s8 %v2505
        %v2507 = vlaneseq
        %v2508 = vshrl.u32 %v2507, 7
        %v2509 = vsub.s32 %v2506, %v2508
        %v2510 = vrot.slane %v2496, %v2509
        %v2511 = vcombine.low %v2446, %v2462
        %v2512 = vcombine.high %v2446, %v2462
        %v2514 = vunpack.c.l.s4 1934713408
        %v2515 = vunpack.c.0.s8 %v2514
        %v2516 = vlaneseq
        %v2517 = vshrl.u32 %v2516, 7
        %v2518 = vsub.s32 %v2515, %v2517
        %v2519 = vrot.slane %v2511, %v2518
        %v2521 = vunpack.c.l.s4 1934713408
        %v2522 = vunpack.c.0.s8 %v2521
        %v2523 = vlaneseq
        %v2524 = vshrl.u32 %v2523, 7
        %v2525 = vsub.s32 %v2522, %v2524
        %v2526 = vrot.slane %v2512, %v2525
        %v2527 = vcombine.low %v2471, %v2503
        %v2528 = vcombine.high %v2471, %v2503
        %v2529 = vcombine.low %v2478, %v2510
        %v2530 = vcombine.high %v2478, %v2510
        %v2531 = vcombine.low %v2487, %v2519
        %v2532 = vcombine.high %v2487, %v2519
        %v2533 = vcombine.low %v2494, %v2526
        %v2534 = vcombine.high %v2494, %v2526
        %v2535 = vcombine.low %v2049, %v2071
        %v2536 = vcombine.high %v2049, %v2071
        %v2538 = vunpack.c.l.s4 1983009808
        %v2539 = vunpack.c.0.s8 %v2538
        %v2540 = vlaneseq
        %v2541 = vshrl.u32 %v2540, 7
        %v2542 = vsub.s32 %v2539, %v2541
        %v2543 = vrot.slane %v2535, %v2542
        %v2545 = vunpack.c.l.s4 1983009808
        %v2546 = vunpack.c.0.s8 %v2545
        %v2547 = vlaneseq
        %v2548 = vshrl.u32 %v2547, 7
        %v2549 = vsub.s32 %v2546, %v2548
        %v2550 = vrot.slane %v2536, %v2549
        %v2551 = vcombine.low %v2060, %v2082
        %v2552 = vcombine.high %v2060, %v2082
        %v2554 = vunpack.c.l.s4 1983009808
        %v2555 = vunpack.c.0.s8 %v2554
        %v2556 = vlaneseq
        %v2557 = vshrl.u32 %v2556, 7
        %v2558 = vsub.s32 %v2555, %v2557
        %v2559 = vrot.slane %v2551, %v2558
        %v2561 = vunpack.c.l.s4 1983009808
        %v2562 = vunpack.c.0.s8 %v2561
        %v2563 = vlaneseq
        %v2564 = vshrl.u32 %v2563, 7
        %v2565 = vsub.s32 %v2562, %v2564
        %v2566 = vrot.slane %v2552, %v2565
        %v2567 = vcombine.low %v2093, %v2115
        %v2568 = vcombine.high %v2093, %v2115
        %v2570 = vunpack.c.l.s4 1983009808
        %v2571 = vunpack.c.0.s8 %v2570
        %v2572 = vlaneseq
        %v2573 = vshrl.u32 %v2572, 7
        %v2574 = vsub.s32 %v2571, %v2573
        %v2575 = vrot.slane %v2567, %v2574
        %v2577 = vunpack.c.l.s4 1983009808
        %v2578 = vunpack.c.0.s8 %v2577
        %v2579 = vlaneseq
        %v2580 = vshrl.u32 %v2579, 7
        %v2581 = vsub.s32 %v2578, %v2580
        %v2582 = vrot.slane %v2568, %v2581
        %v2583 = vcombine.low %v2104, %v2126
        %v2584 = vcombine.high %v2104, %v2126
        %v2586 = vunpack.c.l.s4 1983009808
        %v2587 = vunpack.c.0.s8 %v2586
        %v2588 = vlaneseq
        %v2589 = vshrl.u32 %v2588, 7
        %v2590 = vsub.s32 %v2587, %v2589
        %v2591 = vrot.slane %v2583, %v2590
        %v2593 = vunpack.c.l.s4 1983009808
        %v2594 = vunpack.c.0.s8 %v2593
        %v2595 = vlaneseq
        %v2596 = vshrl.u32 %v2595, 7
        %v2597 = vsub.s32 %v2594, %v2596
        %v2598 = vrot.slane %v2584, %v2597
        %v2599 = vcombine.low %v2543, %v2559
        %v2600 = vcombine.high %v2543, %v2559
        %v2602 = vunpack.c.l.s4 1934713408
        %v2603 = vunpack.c.0.s8 %v2602
        %v2604 = vlaneseq
        %v2605 = vshrl.u32 %v2604, 7
        %v2606 = vsub.s32 %v2603, %v2605
        %v2607 = vrot.slane %v2599, %v2606
        %v2609 = vunpack.c.l.s4 1934713408
        %v2610 = vunpack.c.0.s8 %v2609
        %v2611 = vlaneseq
        %v2612 = vshrl.u32 %v2611, 7
        %v2613 = vsub.s32 %v2610, %v2612
        %v2614 = vrot.slane %v2600, %v2613
        %v2615 = vcombine.low %v2550, %v2566
        %v2616 = vcombine.high %v2550, %v2566
        %v2618 = vunpack.c.l.s4 1934713408
        %v2619 = vunpack.c.0.s8 %v2618
        %v2620 = vlaneseq
        %v2621 = vshrl.u32 %v2620, 7
        %v2622 = vsub.s32 %v2619, %v2621
        %v2623 = vrot.slane %v2615, %v2622
        %v2625 = vunpack.c.l.s4 1934713408
        %v2626 = vunpack.c.0.s8 %v2625
        %v2627 = vlaneseq
        %v2628 = vshrl.u32 %v2627, 7
        %v2629 = vsub.s32 %v2626, %v2628
        %v2630 = vrot.slane %v2616, %v2629
        %v2631 = vcombine.low %v2575, %v2591
        %v2632 = vcombine.high %v2575, %v2591
        %v2634 = vunpack.c.l.s4 1934713408
        %v2635 = vunpack.c.0.s8 %v2634
        %v2636 = vlaneseq
        %v2637 = vshrl.u32 %v2636, 7
        %v2638 = vsub.s32 %v2635, %v2637
        %v2639 = vrot.slane %v2631, %v2638
        %v2641 = vunpack.c.l.s4 1934713408
        %v2642 = vunpack.c.0.s8 %v2641
        %v2643 = vlaneseq
        %v2644 = vshrl.u32 %v2643, 7
        %v2645 = vsub.s32 %v2642, %v2644
        %v2646 = vrot.slane %v2632, %v2645
        %v2647 = vcombine.low %v2582, %v2598
        %v2648 = vcombine.high %v2582, %v2598
        %v2650 = vunpack.c.l.s4 1934713408
        %v2651 = vunpack.c.0.s8 %v2650
        %v2652 = vlaneseq
        %v2653 = vshrl.u32 %v2652, 7
        %v2654 = vsub.s32 %v2651, %v2653
        %v2655 = vrot.slane %v2647, %v2654
        %v2657 = vunpack.c.l.s4 1934713408
        %v2658 = vunpack.c.0.s8 %v2657
        %v2659 = vlaneseq
        %v2660 = vshrl.u32 %v2659, 7
        %v2661 = vsub.s32 %v2658, %v2660
        %v2662 = vrot.slane %v2648, %v2661
        %v2663 = vcombine.low %v2607, %v2639
        %v2664 = vcombine.high %v2607, %v2639
        %v2665 = vcombine.low %v2614, %v2646
        %v2666 = vcombine.high %v2614, %v2646
        %v2667 = vcombine.low %v2623, %v2655
        %v2668 = vcombine.high %v2623, %v2655
        %v2669 = vcombine.low %v2630, %v2662
        %v2670 = vcombine.high %v2630, %v2662
        %2673 = vrot.lane.b32.xlu0 %v2256, 2
        %v2674 = vpop.permute.xlu0 %2673
        %2675 = vrot.lane.b32.xlu0 %v2392, 2
        %v2676 = vpop.permute.xlu0 %2675
        %2681 = vrot.lane.b32.xlu0 %v2257, 4
        %v2682 = vpop.permute.xlu0 %2681
        %2683 = vrot.lane.b32.xlu0 %v2393, 4
        %v2684 = vpop.permute.xlu0 %2683
        %2689 = vrot.lane.b32.xlu0 %v2258, 6
        %v2690 = vpop.permute.xlu0 %2689
        %2691 = vrot.lane.b32.xlu0 %v2394, 6
        %v2692 = vpop.permute.xlu0 %2691
        %2697 = vrot.lane.b32.xlu0 %v2259, 8
        %v2698 = vpop.permute.xlu0 %2697
        %2699 = vrot.lane.b32.xlu0 %v2395, 8
        %v2700 = vpop.permute.xlu0 %2699
        %2705 = vrot.lane.b32.xlu0 %v2260, 10
        %v2706 = vpop.permute.xlu0 %2705
        %2707 = vrot.lane.b32.xlu0 %v2396, 10
        %v2708 = vpop.permute.xlu0 %2707
        %2713 = vrot.lane.b32.xlu0 %v2261, 12
        %v2714 = vpop.permute.xlu0 %2713
        %2715 = vrot.lane.b32.xlu0 %v2397, 12
        %v2716 = vpop.permute.xlu0 %2715
        %2721 = vrot.lane.b32.xlu0 %v2262, 14
        %v2722 = vpop.permute.xlu0 %2721
        %2723 = vrot.lane.b32.xlu0 %v2398, 14
        %v2724 = vpop.permute.xlu0 %2723
        %2729 = vrot.lane.b32.xlu0 %v2527, 16
        %v2730 = vpop.permute.xlu0 %2729
        %2731 = vrot.lane.b32.xlu0 %v2663, 16
        %v2732 = vpop.permute.xlu0 %2731
        %2737 = vrot.lane.b32.xlu0 %v2528, 18
        %v2738 = vpop.permute.xlu0 %2737
        %2739 = vrot.lane.b32.xlu0 %v2664, 18
        %v2740 = vpop.permute.xlu0 %2739
        %2745 = vrot.lane.b32.xlu0 %v2529, 20
        %v2746 = vpop.permute.xlu0 %2745
        %2747 = vrot.lane.b32.xlu0 %v2665, 20
        %v2748 = vpop.permute.xlu0 %2747
        %2753 = vrot.lane.b32.xlu0 %v2530, 22
        %v2754 = vpop.permute.xlu0 %2753
        %2755 = vrot.lane.b32.xlu0 %v2666, 22
        %v2756 = vpop.permute.xlu0 %2755
        %2761 = vrot.lane.b32.xlu0 %v2531, 24
        %v2762 = vpop.permute.xlu0 %2761
        %2763 = vrot.lane.b32.xlu0 %v2667, 24
        %v2764 = vpop.permute.xlu0 %2763
        %2769 = vrot.lane.b32.xlu0 %v2532, 26
        %v2770 = vpop.permute.xlu0 %2769
        %2771 = vrot.lane.b32.xlu0 %v2668, 26
        %v2772 = vpop.permute.xlu0 %2771
        %2777 = vrot.lane.b32.xlu0 %v2533, 28
        %v2778 = vpop.permute.xlu0 %2777
        %2779 = vrot.lane.b32.xlu0 %v2669, 28
        %v2780 = vpop.permute.xlu0 %2779
        %2785 = vrot.lane.b32.xlu0 %v2534, 30
        %v2786 = vpop.permute.xlu0 %2785
        %2787 = vrot.lane.b32.xlu0 %v2670, 30
        %v2788 = vpop.permute.xlu0 %2787
        %v2791 = vsel %vm1025, %v2255, %v2674
        %v2792 = vsel %vm1025, %v2391, %v2676
        %v2793 = vsel %vm1028, %v2791, %v2682
        %v2794 = vsel %vm1028, %v2792, %v2684
        %v2795 = vsel %vm1031, %v2793, %v2690
        %v2796 = vsel %vm1031, %v2794, %v2692
        %v2797 = vsel %vm1034, %v2795, %v2698
        %v2798 = vsel %vm1034, %v2796, %v2700
        %v2799 = vsel %vm1037, %v2797, %v2706
        %v2800 = vsel %vm1037, %v2798, %v2708
        %v2801 = vsel %vm1040, %v2799, %v2714
        %v2802 = vsel %vm1040, %v2800, %v2716
        %v2803 = vsel %vm1043, %v2801, %v2722
        %v2804 = vsel %vm1043, %v2802, %v2724
        %v2805 = vsel %vm1046, %v2803, %v2730
        %v2806 = vsel %vm1046, %v2804, %v2732
        %v2807 = vsel %vm1049, %v2805, %v2738
        %v2808 = vsel %vm1049, %v2806, %v2740
        %v2809 = vsel %vm1052, %v2807, %v2746
        %v2810 = vsel %vm1052, %v2808, %v2748
        %v2811 = vsel %vm1055, %v2809, %v2754
        %v2812 = vsel %vm1055, %v2810, %v2756
        %v2813 = vsel %vm1058, %v2811, %v2762
        %v2814 = vsel %vm1058, %v2812, %v2764
        %v2815 = vsel %vm1061, %v2813, %v2770
        %v2816 = vsel %vm1061, %v2814, %v2772
        %v2817 = vsel %vm1064, %v2815, %v2778
        %v2818 = vsel %vm1064, %v2816, %v2780
        %v2819 = vsel %vm1067, %v2817, %v2786
        %v2820 = vsel %vm1067, %v2818, %v2788
        %s2821 = scalar_lea.vmem %s147, 48 [#allocation2]
        %v2822 = vld [vmem:[%s2821] sm:$0xff]
        %v2823 = vld [vmem:[%s2821 + $0x8] sm:$0xff]
        %v2824 = vlaneseq
        %v2825 = vshrl.u32 %v2824, 7
        %v2826 = vsub.s32 0, %v2825
        %v2827 = vrot.slane %v2822, %v2826
        %2829 = vbcast.lane.b32.xlu0 %v2827, 256
        %v2830 = vpop.permute.xlu0 %2829
        %s2832 = sor.u32 256, 8
        %2833 = vbcast.lane.b32.xlu0 %v2827, %s2832
        %v2834 = vpop.permute.xlu0 %2833
        %v2835 = vlaneseq
        %v2836 = vshrl.u32 %v2835, 7
        %v2837 = vsub.s32 1, %v2836
        %v2838 = vrot.slane %v2822, %v2837
        %2840 = vbcast.lane.b32.xlu0 %v2838, 256
        %v2841 = vpop.permute.xlu0 %2840
        %s2843 = sor.u32 256, 8
        %2844 = vbcast.lane.b32.xlu0 %v2838, %s2843
        %v2845 = vpop.permute.xlu0 %2844
        %v2846 = vlaneseq
        %v2847 = vshrl.u32 %v2846, 7
        %v2848 = vsub.s32 2, %v2847
        %v2849 = vrot.slane %v2822, %v2848
        %2851 = vbcast.lane.b32.xlu0 %v2849, 256
        %v2852 = vpop.permute.xlu0 %2851
        %s2854 = sor.u32 256, 8
        %2855 = vbcast.lane.b32.xlu0 %v2849, %s2854
        %v2856 = vpop.permute.xlu0 %2855
        %v2857 = vlaneseq
        %v2858 = vshrl.u32 %v2857, 7
        %v2859 = vsub.s32 3, %v2858
        %v2860 = vrot.slane %v2822, %v2859
        %2862 = vbcast.lane.b32.xlu0 %v2860, 256
        %v2863 = vpop.permute.xlu0 %2862
        %s2865 = sor.u32 256, 8
        %2866 = vbcast.lane.b32.xlu0 %v2860, %s2865
        %v2867 = vpop.permute.xlu0 %2866
        %v2868 = vlaneseq
        %v2869 = vshrl.u32 %v2868, 7
        %v2870 = vsub.s32 4, %v2869
        %v2871 = vrot.slane %v2822, %v2870
        %2873 = vbcast.lane.b32.xlu0 %v2871, 256
        %v2874 = vpop.permute.xlu0 %2873
        %s2876 = sor.u32 256, 8
        %2877 = vbcast.lane.b32.xlu0 %v2871, %s2876
        %v2878 = vpop.permute.xlu0 %2877
        %v2879 = vlaneseq
        %v2880 = vshrl.u32 %v2879, 7
        %v2881 = vsub.s32 5, %v2880
        %v2882 = vrot.slane %v2822, %v2881
        %2884 = vbcast.lane.b32.xlu0 %v2882, 256
        %v2885 = vpop.permute.xlu0 %2884
        %s2887 = sor.u32 256, 8
        %2888 = vbcast.lane.b32.xlu0 %v2882, %s2887
        %v2889 = vpop.permute.xlu0 %2888
        %v2890 = vlaneseq
        %v2891 = vshrl.u32 %v2890, 7
        %v2892 = vsub.s32 6, %v2891
        %v2893 = vrot.slane %v2822, %v2892
        %2895 = vbcast.lane.b32.xlu0 %v2893, 256
        %v2896 = vpop.permute.xlu0 %2895
        %s2898 = sor.u32 256, 8
        %2899 = vbcast.lane.b32.xlu0 %v2893, %s2898
        %v2900 = vpop.permute.xlu0 %2899
        %v2901 = vlaneseq
        %v2902 = vshrl.u32 %v2901, 7
        %v2903 = vsub.s32 7, %v2902
        %v2904 = vrot.slane %v2822, %v2903
        %2906 = vbcast.lane.b32.xlu0 %v2904, 256
        %v2907 = vpop.permute.xlu0 %2906
        %s2909 = sor.u32 256, 8
        %2910 = vbcast.lane.b32.xlu0 %v2904, %s2909
        %v2911 = vpop.permute.xlu0 %2910
        %v2912 = vlaneseq
        %v2913 = vshrl.u32 %v2912, 7
        %v2914 = vsub.s32 0, %v2913
        %v2915 = vrot.slane %v2823, %v2914
        %2917 = vbcast.lane.b32.xlu0 %v2915, 256
        %v2918 = vpop.permute.xlu0 %2917
        %s2920 = sor.u32 256, 8
        %2921 = vbcast.lane.b32.xlu0 %v2915, %s2920
        %v2922 = vpop.permute.xlu0 %2921
        %v2923 = vlaneseq
        %v2924 = vshrl.u32 %v2923, 7
        %v2925 = vsub.s32 1, %v2924
        %v2926 = vrot.slane %v2823, %v2925
        %2928 = vbcast.lane.b32.xlu0 %v2926, 256
        %v2929 = vpop.permute.xlu0 %2928
        %s2931 = sor.u32 256, 8
        %2932 = vbcast.lane.b32.xlu0 %v2926, %s2931
        %v2933 = vpop.permute.xlu0 %2932
        %v2934 = vlaneseq
        %v2935 = vshrl.u32 %v2934, 7
        %v2936 = vsub.s32 2, %v2935
        %v2937 = vrot.slane %v2823, %v2936
        %2939 = vbcast.lane.b32.xlu0 %v2937, 256
        %v2940 = vpop.permute.xlu0 %2939
        %s2942 = sor.u32 256, 8
        %2943 = vbcast.lane.b32.xlu0 %v2937, %s2942
        %v2944 = vpop.permute.xlu0 %2943
        %v2945 = vlaneseq
        %v2946 = vshrl.u32 %v2945, 7
        %v2947 = vsub.s32 3, %v2946
        %v2948 = vrot.slane %v2823, %v2947
        %2950 = vbcast.lane.b32.xlu0 %v2948, 256
        %v2951 = vpop.permute.xlu0 %2950
        %s2953 = sor.u32 256, 8
        %2954 = vbcast.lane.b32.xlu0 %v2948, %s2953
        %v2955 = vpop.permute.xlu0 %2954
        %v2956 = vlaneseq
        %v2957 = vshrl.u32 %v2956, 7
        %v2958 = vsub.s32 4, %v2957
        %v2959 = vrot.slane %v2823, %v2958
        %2961 = vbcast.lane.b32.xlu0 %v2959, 256
        %v2962 = vpop.permute.xlu0 %2961
        %s2964 = sor.u32 256, 8
        %2965 = vbcast.lane.b32.xlu0 %v2959, %s2964
        %v2966 = vpop.permute.xlu0 %2965
        %v2967 = vlaneseq
        %v2968 = vshrl.u32 %v2967, 7
        %v2969 = vsub.s32 5, %v2968
        %v2970 = vrot.slane %v2823, %v2969
        %2972 = vbcast.lane.b32.xlu0 %v2970, 256
        %v2973 = vpop.permute.xlu0 %2972
        %s2975 = sor.u32 256, 8
        %2976 = vbcast.lane.b32.xlu0 %v2970, %s2975
        %v2977 = vpop.permute.xlu0 %2976
        %v2978 = vlaneseq
        %v2979 = vshrl.u32 %v2978, 7
        %v2980 = vsub.s32 6, %v2979
        %v2981 = vrot.slane %v2823, %v2980
        %2983 = vbcast.lane.b32.xlu0 %v2981, 256
        %v2984 = vpop.permute.xlu0 %2983
        %s2986 = sor.u32 256, 8
        %2987 = vbcast.lane.b32.xlu0 %v2981, %s2986
        %v2988 = vpop.permute.xlu0 %2987
        %v2989 = vlaneseq
        %v2990 = vshrl.u32 %v2989, 7
        %v2991 = vsub.s32 7, %v2990
        %v2992 = vrot.slane %v2823, %v2991
        %2994 = vbcast.lane.b32.xlu0 %v2992, 256
        %v2995 = vpop.permute.xlu0 %2994
        %s2997 = sor.u32 256, 8
        %2998 = vbcast.lane.b32.xlu0 %v2992, %s2997
        %v2999 = vpop.permute.xlu0 %2998
        %v3000 = vcombine.low %v2830, %v2852
        %v3001 = vcombine.high %v2830, %v2852
        %v3003 = vunpack.c.l.s4 1983009808
        %v3004 = vunpack.c.0.s8 %v3003
        %v3005 = vlaneseq
        %v3006 = vshrl.u32 %v3005, 7
        %v3007 = vsub.s32 %v3004, %v3006
        %v3008 = vrot.slane %v3000, %v3007
        %v3010 = vunpack.c.l.s4 1983009808
        %v3011 = vunpack.c.0.s8 %v3010
        %v3012 = vlaneseq
        %v3013 = vshrl.u32 %v3012, 7
        %v3014 = vsub.s32 %v3011, %v3013
        %v3015 = vrot.slane %v3001, %v3014
        %v3016 = vcombine.low %v2841, %v2863
        %v3017 = vcombine.high %v2841, %v2863
        %v3019 = vunpack.c.l.s4 1983009808
        %v3020 = vunpack.c.0.s8 %v3019
        %v3021 = vlaneseq
        %v3022 = vshrl.u32 %v3021, 7
        %v3023 = vsub.s32 %v3020, %v3022
        %v3024 = vrot.slane %v3016, %v3023
        %v3026 = vunpack.c.l.s4 1983009808
        %v3027 = vunpack.c.0.s8 %v3026
        %v3028 = vlaneseq
        %v3029 = vshrl.u32 %v3028, 7
        %v3030 = vsub.s32 %v3027, %v3029
        %v3031 = vrot.slane %v3017, %v3030
        %v3032 = vcombine.low %v2874, %v2896
        %v3033 = vcombine.high %v2874, %v2896
        %v3035 = vunpack.c.l.s4 1983009808
        %v3036 = vunpack.c.0.s8 %v3035
        %v3037 = vlaneseq
        %v3038 = vshrl.u32 %v3037, 7
        %v3039 = vsub.s32 %v3036, %v3038
        %v3040 = vrot.slane %v3032, %v3039
        %v3042 = vunpack.c.l.s4 1983009808
        %v3043 = vunpack.c.0.s8 %v3042
        %v3044 = vlaneseq
        %v3045 = vshrl.u32 %v3044, 7
        %v3046 = vsub.s32 %v3043, %v3045
        %v3047 = vrot.slane %v3033, %v3046
        %v3048 = vcombine.low %v2885, %v2907
        %v3049 = vcombine.high %v2885, %v2907
        %v3051 = vunpack.c.l.s4 1983009808
        %v3052 = vunpack.c.0.s8 %v3051
        %v3053 = vlaneseq
        %v3054 = vshrl.u32 %v3053, 7
        %v3055 = vsub.s32 %v3052, %v3054
        %v3056 = vrot.slane %v3048, %v3055
        %v3058 = vunpack.c.l.s4 1983009808
        %v3059 = vunpack.c.0.s8 %v3058
        %v3060 = vlaneseq
        %v3061 = vshrl.u32 %v3060, 7
        %v3062 = vsub.s32 %v3059, %v3061
        %v3063 = vrot.slane %v3049, %v3062
        %v3064 = vcombine.low %v3008, %v3024
        %v3065 = vcombine.high %v3008, %v3024
        %v3067 = vunpack.c.l.s4 1934713408
        %v3068 = vunpack.c.0.s8 %v3067
        %v3069 = vlaneseq
        %v3070 = vshrl.u32 %v3069, 7
        %v3071 = vsub.s32 %v3068, %v3070
        %v3072 = vrot.slane %v3064, %v3071
        %v3074 = vunpack.c.l.s4 1934713408
        %v3075 = vunpack.c.0.s8 %v3074
        %v3076 = vlaneseq
        %v3077 = vshrl.u32 %v3076, 7
        %v3078 = vsub.s32 %v3075, %v3077
        %v3079 = vrot.slane %v3065, %v3078
        %v3080 = vcombine.low %v3015, %v3031
        %v3081 = vcombine.high %v3015, %v3031
        %v3083 = vunpack.c.l.s4 1934713408
        %v3084 = vunpack.c.0.s8 %v3083
        %v3085 = vlaneseq
        %v3086 = vshrl.u32 %v3085, 7
        %v3087 = vsub.s32 %v3084, %v3086
        %v3088 = vrot.slane %v3080, %v3087
        %v3090 = vunpack.c.l.s4 1934713408
        %v3091 = vunpack.c.0.s8 %v3090
        %v3092 = vlaneseq
        %v3093 = vshrl.u32 %v3092, 7
        %v3094 = vsub.s32 %v3091, %v3093
        %v3095 = vrot.slane %v3081, %v3094
        %v3096 = vcombine.low %v3040, %v3056
        %v3097 = vcombine.high %v3040, %v3056
        %v3099 = vunpack.c.l.s4 1934713408
        %v3100 = vunpack.c.0.s8 %v3099
        %v3101 = vlaneseq
        %v3102 = vshrl.u32 %v3101, 7
        %v3103 = vsub.s32 %v3100, %v3102
        %v3104 = vrot.slane %v3096, %v3103
        %v3106 = vunpack.c.l.s4 1934713408
        %v3107 = vunpack.c.0.s8 %v3106
        %v3108 = vlaneseq
        %v3109 = vshrl.u32 %v3108, 7
        %v3110 = vsub.s32 %v3107, %v3109
        %v3111 = vrot.slane %v3097, %v3110
        %v3112 = vcombine.low %v3047, %v3063
        %v3113 = vcombine.high %v3047, %v3063
        %v3115 = vunpack.c.l.s4 1934713408
        %v3116 = vunpack.c.0.s8 %v3115
        %v3117 = vlaneseq
        %v3118 = vshrl.u32 %v3117, 7
        %v3119 = vsub.s32 %v3116, %v3118
        %v3120 = vrot.slane %v3112, %v3119
        %v3122 = vunpack.c.l.s4 1934713408
        %v3123 = vunpack.c.0.s8 %v3122
        %v3124 = vlaneseq
        %v3125 = vshrl.u32 %v3124, 7
        %v3126 = vsub.s32 %v3123, %v3125
        %v3127 = vrot.slane %v3113, %v3126
        %v3128 = vcombine.low %v3072, %v3104
        %v3129 = vcombine.high %v3072, %v3104
        %v3130 = vcombine.low %v3079, %v3111
        %v3131 = vcombine.high %v3079, %v3111
        %v3132 = vcombine.low %v3088, %v3120
        %v3133 = vcombine.high %v3088, %v3120
        %v3134 = vcombine.low %v3095, %v3127
        %v3135 = vcombine.high %v3095, %v3127
        %v3136 = vcombine.low %v2918, %v2940
        %v3137 = vcombine.high %v2918, %v2940
        %v3139 = vunpack.c.l.s4 1983009808
        %v3140 = vunpack.c.0.s8 %v3139
        %v3141 = vlaneseq
        %v3142 = vshrl.u32 %v3141, 7
        %v3143 = vsub.s32 %v3140, %v3142
        %v3144 = vrot.slane %v3136, %v3143
        %v3146 = vunpack.c.l.s4 1983009808
        %v3147 = vunpack.c.0.s8 %v3146
        %v3148 = vlaneseq
        %v3149 = vshrl.u32 %v3148, 7
        %v3150 = vsub.s32 %v3147, %v3149
        %v3151 = vrot.slane %v3137, %v3150
        %v3152 = vcombine.low %v2929, %v2951
        %v3153 = vcombine.high %v2929, %v2951
        %v3155 = vunpack.c.l.s4 1983009808
        %v3156 = vunpack.c.0.s8 %v3155
        %v3157 = vlaneseq
        %v3158 = vshrl.u32 %v3157, 7
        %v3159 = vsub.s32 %v3156, %v3158
        %v3160 = vrot.slane %v3152, %v3159
        %v3162 = vunpack.c.l.s4 1983009808
        %v3163 = vunpack.c.0.s8 %v3162
        %v3164 = vlaneseq
        %v3165 = vshrl.u32 %v3164, 7
        %v3166 = vsub.s32 %v3163, %v3165
        %v3167 = vrot.slane %v3153, %v3166
        %v3168 = vcombine.low %v2962, %v2984
        %v3169 = vcombine.high %v2962, %v2984
        %v3171 = vunpack.c.l.s4 1983009808
        %v3172 = vunpack.c.0.s8 %v3171
        %v3173 = vlaneseq
        %v3174 = vshrl.u32 %v3173, 7
        %v3175 = vsub.s32 %v3172, %v3174
        %v3176 = vrot.slane %v3168, %v3175
        %v3178 = vunpack.c.l.s4 1983009808
        %v3179 = vunpack.c.0.s8 %v3178
        %v3180 = vlaneseq
        %v3181 = vshrl.u32 %v3180, 7
        %v3182 = vsub.s32 %v3179, %v3181
        %v3183 = vrot.slane %v3169, %v3182
        %v3184 = vcombine.low %v2973, %v2995
        %v3185 = vcombine.high %v2973, %v2995
        %v3187 = vunpack.c.l.s4 1983009808
        %v3188 = vunpack.c.0.s8 %v3187
        %v3189 = vlaneseq
        %v3190 = vshrl.u32 %v3189, 7
        %v3191 = vsub.s32 %v3188, %v3190
        %v3192 = vrot.slane %v3184, %v3191
        %v3194 = vunpack.c.l.s4 1983009808
        %v3195 = vunpack.c.0.s8 %v3194
        %v3196 = vlaneseq
        %v3197 = vshrl.u32 %v3196, 7
        %v3198 = vsub.s32 %v3195, %v3197
        %v3199 = vrot.slane %v3185, %v3198
        %v3200 = vcombine.low %v3144, %v3160
        %v3201 = vcombine.high %v3144, %v3160
        %v3203 = vunpack.c.l.s4 1934713408
        %v3204 = vunpack.c.0.s8 %v3203
        %v3205 = vlaneseq
        %v3206 = vshrl.u32 %v3205, 7
        %v3207 = vsub.s32 %v3204, %v3206
        %v3208 = vrot.slane %v3200, %v3207
        %v3210 = vunpack.c.l.s4 1934713408
        %v3211 = vunpack.c.0.s8 %v3210
        %v3212 = vlaneseq
        %v3213 = vshrl.u32 %v3212, 7
        %v3214 = vsub.s32 %v3211, %v3213
        %v3215 = vrot.slane %v3201, %v3214
        %v3216 = vcombine.low %v3151, %v3167
        %v3217 = vcombine.high %v3151, %v3167
        %v3219 = vunpack.c.l.s4 1934713408
        %v3220 = vunpack.c.0.s8 %v3219
        %v3221 = vlaneseq
        %v3222 = vshrl.u32 %v3221, 7
        %v3223 = vsub.s32 %v3220, %v3222
        %v3224 = vrot.slane %v3216, %v3223
        %v3226 = vunpack.c.l.s4 1934713408
        %v3227 = vunpack.c.0.s8 %v3226
        %v3228 = vlaneseq
        %v3229 = vshrl.u32 %v3228, 7
        %v3230 = vsub.s32 %v3227, %v3229
        %v3231 = vrot.slane %v3217, %v3230
        %v3232 = vcombine.low %v3176, %v3192
        %v3233 = vcombine.high %v3176, %v3192
        %v3235 = vunpack.c.l.s4 1934713408
        %v3236 = vunpack.c.0.s8 %v3235
        %v3237 = vlaneseq
        %v3238 = vshrl.u32 %v3237, 7
        %v3239 = vsub.s32 %v3236, %v3238
        %v3240 = vrot.slane %v3232, %v3239
        %v3242 = vunpack.c.l.s4 1934713408
        %v3243 = vunpack.c.0.s8 %v3242
        %v3244 = vlaneseq
        %v3245 = vshrl.u32 %v3244, 7
        %v3246 = vsub.s32 %v3243, %v3245
        %v3247 = vrot.slane %v3233, %v3246
        %v3248 = vcombine.low %v3183, %v3199
        %v3249 = vcombine.high %v3183, %v3199
        %v3251 = vunpack.c.l.s4 1934713408
        %v3252 = vunpack.c.0.s8 %v3251
        %v3253 = vlaneseq
        %v3254 = vshrl.u32 %v3253, 7
        %v3255 = vsub.s32 %v3252, %v3254
        %v3256 = vrot.slane %v3248, %v3255
        %v3258 = vunpack.c.l.s4 1934713408
        %v3259 = vunpack.c.0.s8 %v3258
        %v3260 = vlaneseq
        %v3261 = vshrl.u32 %v3260, 7
        %v3262 = vsub.s32 %v3259, %v3261
        %v3263 = vrot.slane %v3249, %v3262
        %v3264 = vcombine.low %v3208, %v3240
        %v3265 = vcombine.high %v3208, %v3240
        %v3266 = vcombine.low %v3215, %v3247
        %v3267 = vcombine.high %v3215, %v3247
        %v3268 = vcombine.low %v3224, %v3256
        %v3269 = vcombine.high %v3224, %v3256
        %v3270 = vcombine.low %v3231, %v3263
        %v3271 = vcombine.high %v3231, %v3263
        %v3272 = vcombine.low %v2834, %v2856
        %v3273 = vcombine.high %v2834, %v2856
        %v3275 = vunpack.c.l.s4 1983009808
        %v3276 = vunpack.c.0.s8 %v3275
        %v3277 = vlaneseq
        %v3278 = vshrl.u32 %v3277, 7
        %v3279 = vsub.s32 %v3276, %v3278
        %v3280 = vrot.slane %v3272, %v3279
        %v3282 = vunpack.c.l.s4 1983009808
        %v3283 = vunpack.c.0.s8 %v3282
        %v3284 = vlaneseq
        %v3285 = vshrl.u32 %v3284, 7
        %v3286 = vsub.s32 %v3283, %v3285
        %v3287 = vrot.slane %v3273, %v3286
        %v3288 = vcombine.low %v2845, %v2867
        %v3289 = vcombine.high %v2845, %v2867
        %v3291 = vunpack.c.l.s4 1983009808
        %v3292 = vunpack.c.0.s8 %v3291
        %v3293 = vlaneseq
        %v3294 = vshrl.u32 %v3293, 7
        %v3295 = vsub.s32 %v3292, %v3294
        %v3296 = vrot.slane %v3288, %v3295
        %v3298 = vunpack.c.l.s4 1983009808
        %v3299 = vunpack.c.0.s8 %v3298
        %v3300 = vlaneseq
        %v3301 = vshrl.u32 %v3300, 7
        %v3302 = vsub.s32 %v3299, %v3301
        %v3303 = vrot.slane %v3289, %v3302
        %v3304 = vcombine.low %v2878, %v2900
        %v3305 = vcombine.high %v2878, %v2900
        %v3307 = vunpack.c.l.s4 1983009808
        %v3308 = vunpack.c.0.s8 %v3307
        %v3309 = vlaneseq
        %v3310 = vshrl.u32 %v3309, 7
        %v3311 = vsub.s32 %v3308, %v3310
        %v3312 = vrot.slane %v3304, %v3311
        %v3314 = vunpack.c.l.s4 1983009808
        %v3315 = vunpack.c.0.s8 %v3314
        %v3316 = vlaneseq
        %v3317 = vshrl.u32 %v3316, 7
        %v3318 = vsub.s32 %v3315, %v3317
        %v3319 = vrot.slane %v3305, %v3318
        %v3320 = vcombine.low %v2889, %v2911
        %v3321 = vcombine.high %v2889, %v2911
        %v3323 = vunpack.c.l.s4 1983009808
        %v3324 = vunpack.c.0.s8 %v3323
        %v3325 = vlaneseq
        %v3326 = vshrl.u32 %v3325, 7
        %v3327 = vsub.s32 %v3324, %v3326
        %v3328 = vrot.slane %v3320, %v3327
        %v3330 = vunpack.c.l.s4 1983009808
        %v3331 = vunpack.c.0.s8 %v3330
        %v3332 = vlaneseq
        %v3333 = vshrl.u32 %v3332, 7
        %v3334 = vsub.s32 %v3331, %v3333
        %v3335 = vrot.slane %v3321, %v3334
        %v3336 = vcombine.low %v3280, %v3296
        %v3337 = vcombine.high %v3280, %v3296
        %v3339 = vunpack.c.l.s4 1934713408
        %v3340 = vunpack.c.0.s8 %v3339
        %v3341 = vlaneseq
        %v3342 = vshrl.u32 %v3341, 7
        %v3343 = vsub.s32 %v3340, %v3342
        %v3344 = vrot.slane %v3336, %v3343
        %v3346 = vunpack.c.l.s4 1934713408
        %v3347 = vunpack.c.0.s8 %v3346
        %v3348 = vlaneseq
        %v3349 = vshrl.u32 %v3348, 7
        %v3350 = vsub.s32 %v3347, %v3349
        %v3351 = vrot.slane %v3337, %v3350
        %v3352 = vcombine.low %v3287, %v3303
        %v3353 = vcombine.high %v3287, %v3303
        %v3355 = vunpack.c.l.s4 1934713408
        %v3356 = vunpack.c.0.s8 %v3355
        %v3357 = vlaneseq
        %v3358 = vshrl.u32 %v3357, 7
        %v3359 = vsub.s32 %v3356, %v3358
        %v3360 = vrot.slane %v3352, %v3359
        %v3362 = vunpack.c.l.s4 1934713408
        %v3363 = vunpack.c.0.s8 %v3362
        %v3364 = vlaneseq
        %v3365 = vshrl.u32 %v3364, 7
        %v3366 = vsub.s32 %v3363, %v3365
        %v3367 = vrot.slane %v3353, %v3366
        %v3368 = vcombine.low %v3312, %v3328
        %v3369 = vcombine.high %v3312, %v3328
        %v3371 = vunpack.c.l.s4 1934713408
        %v3372 = vunpack.c.0.s8 %v3371
        %v3373 = vlaneseq
        %v3374 = vshrl.u32 %v3373, 7
        %v3375 = vsub.s32 %v3372, %v3374
        %v3376 = vrot.slane %v3368, %v3375
        %v3378 = vunpack.c.l.s4 1934713408
        %v3379 = vunpack.c.0.s8 %v3378
        %v3380 = vlaneseq
        %v3381 = vshrl.u32 %v3380, 7
        %v3382 = vsub.s32 %v3379, %v3381
        %v3383 = vrot.slane %v3369, %v3382
        %v3384 = vcombine.low %v3319, %v3335
        %v3385 = vcombine.high %v3319, %v3335
        %v3387 = vunpack.c.l.s4 1934713408
        %v3388 = vunpack.c.0.s8 %v3387
        %v3389 = vlaneseq
        %v3390 = vshrl.u32 %v3389, 7
        %v3391 = vsub.s32 %v3388, %v3390
        %v3392 = vrot.slane %v3384, %v3391
        %v3394 = vunpack.c.l.s4 1934713408
        %v3395 = vunpack.c.0.s8 %v3394
        %v3396 = vlaneseq
        %v3397 = vshrl.u32 %v3396, 7
        %v3398 = vsub.s32 %v3395, %v3397
        %v3399 = vrot.slane %v3385, %v3398
        %v3400 = vcombine.low %v3344, %v3376
        %v3401 = vcombine.high %v3344, %v3376
        %v3402 = vcombine.low %v3351, %v3383
        %v3403 = vcombine.high %v3351, %v3383
        %v3404 = vcombine.low %v3360, %v3392
        %v3405 = vcombine.high %v3360, %v3392
        %v3406 = vcombine.low %v3367, %v3399
        %v3407 = vcombine.high %v3367, %v3399
        %v3408 = vcombine.low %v2922, %v2944
        %v3409 = vcombine.high %v2922, %v2944
        %v3411 = vunpack.c.l.s4 1983009808
        %v3412 = vunpack.c.0.s8 %v3411
        %v3413 = vlaneseq
        %v3414 = vshrl.u32 %v3413, 7
        %v3415 = vsub.s32 %v3412, %v3414
        %v3416 = vrot.slane %v3408, %v3415
        %v3418 = vunpack.c.l.s4 1983009808
        %v3419 = vunpack.c.0.s8 %v3418
        %v3420 = vlaneseq
        %v3421 = vshrl.u32 %v3420, 7
        %v3422 = vsub.s32 %v3419, %v3421
        %v3423 = vrot.slane %v3409, %v3422
        %v3424 = vcombine.low %v2933, %v2955
        %v3425 = vcombine.high %v2933, %v2955
        %v3427 = vunpack.c.l.s4 1983009808
        %v3428 = vunpack.c.0.s8 %v3427
        %v3429 = vlaneseq
        %v3430 = vshrl.u32 %v3429, 7
        %v3431 = vsub.s32 %v3428, %v3430
        %v3432 = vrot.slane %v3424, %v3431
        %v3434 = vunpack.c.l.s4 1983009808
        %v3435 = vunpack.c.0.s8 %v3434
        %v3436 = vlaneseq
        %v3437 = vshrl.u32 %v3436, 7
        %v3438 = vsub.s32 %v3435, %v3437
        %v3439 = vrot.slane %v3425, %v3438
        %v3440 = vcombine.low %v2966, %v2988
        %v3441 = vcombine.high %v2966, %v2988
        %v3443 = vunpack.c.l.s4 1983009808
        %v3444 = vunpack.c.0.s8 %v3443
        %v3445 = vlaneseq
        %v3446 = vshrl.u32 %v3445, 7
        %v3447 = vsub.s32 %v3444, %v3446
        %v3448 = vrot.slane %v3440, %v3447
        %v3450 = vunpack.c.l.s4 1983009808
        %v3451 = vunpack.c.0.s8 %v3450
        %v3452 = vlaneseq
        %v3453 = vshrl.u32 %v3452, 7
        %v3454 = vsub.s32 %v3451, %v3453
        %v3455 = vrot.slane %v3441, %v3454
        %v3456 = vcombine.low %v2977, %v2999
        %v3457 = vcombine.high %v2977, %v2999
        %v3459 = vunpack.c.l.s4 1983009808
        %v3460 = vunpack.c.0.s8 %v3459
        %v3461 = vlaneseq
        %v3462 = vshrl.u32 %v3461, 7
        %v3463 = vsub.s32 %v3460, %v3462
        %v3464 = vrot.slane %v3456, %v3463
        %v3466 = vunpack.c.l.s4 1983009808
        %v3467 = vunpack.c.0.s8 %v3466
        %v3468 = vlaneseq
        %v3469 = vshrl.u32 %v3468, 7
        %v3470 = vsub.s32 %v3467, %v3469
        %v3471 = vrot.slane %v3457, %v3470
        %v3472 = vcombine.low %v3416, %v3432
        %v3473 = vcombine.high %v3416, %v3432
        %v3475 = vunpack.c.l.s4 1934713408
        %v3476 = vunpack.c.0.s8 %v3475
        %v3477 = vlaneseq
        %v3478 = vshrl.u32 %v3477, 7
        %v3479 = vsub.s32 %v3476, %v3478
        %v3480 = vrot.slane %v3472, %v3479
        %v3482 = vunpack.c.l.s4 1934713408
        %v3483 = vunpack.c.0.s8 %v3482
        %v3484 = vlaneseq
        %v3485 = vshrl.u32 %v3484, 7
        %v3486 = vsub.s32 %v3483, %v3485
        %v3487 = vrot.slane %v3473, %v3486
        %v3488 = vcombine.low %v3423, %v3439
        %v3489 = vcombine.high %v3423, %v3439
        %v3491 = vunpack.c.l.s4 1934713408
        %v3492 = vunpack.c.0.s8 %v3491
        %v3493 = vlaneseq
        %v3494 = vshrl.u32 %v3493, 7
        %v3495 = vsub.s32 %v3492, %v3494
        %v3496 = vrot.slane %v3488, %v3495
        %v3498 = vunpack.c.l.s4 1934713408
        %v3499 = vunpack.c.0.s8 %v3498
        %v3500 = vlaneseq
        %v3501 = vshrl.u32 %v3500, 7
        %v3502 = vsub.s32 %v3499, %v3501
        %v3503 = vrot.slane %v3489, %v3502
        %v3504 = vcombine.low %v3448, %v3464
        %v3505 = vcombine.high %v3448, %v3464
        %v3507 = vunpack.c.l.s4 1934713408
        %v3508 = vunpack.c.0.s8 %v3507
        %v3509 = vlaneseq
        %v3510 = vshrl.u32 %v3509, 7
        %v3511 = vsub.s32 %v3508, %v3510
        %v3512 = vrot.slane %v3504, %v3511
        %v3514 = vunpack.c.l.s4 1934713408
        %v3515 = vunpack.c.0.s8 %v3514
        %v3516 = vlaneseq
        %v3517 = vshrl.u32 %v3516, 7
        %v3518 = vsub.s32 %v3515, %v3517
        %v3519 = vrot.slane %v3505, %v3518
        %v3520 = vcombine.low %v3455, %v3471
        %v3521 = vcombine.high %v3455, %v3471
        %v3523 = vunpack.c.l.s4 1934713408
        %v3524 = vunpack.c.0.s8 %v3523
        %v3525 = vlaneseq
        %v3526 = vshrl.u32 %v3525, 7
        %v3527 = vsub.s32 %v3524, %v3526
        %v3528 = vrot.slane %v3520, %v3527
        %v3530 = vunpack.c.l.s4 1934713408
        %v3531 = vunpack.c.0.s8 %v3530
        %v3532 = vlaneseq
        %v3533 = vshrl.u32 %v3532, 7
        %v3534 = vsub.s32 %v3531, %v3533
        %v3535 = vrot.slane %v3521, %v3534
        %v3536 = vcombine.low %v3480, %v3512
        %v3537 = vcombine.high %v3480, %v3512
        %v3538 = vcombine.low %v3487, %v3519
        %v3539 = vcombine.high %v3487, %v3519
        %v3540 = vcombine.low %v3496, %v3528
        %v3541 = vcombine.high %v3496, %v3528
        %v3542 = vcombine.low %v3503, %v3535
        %v3543 = vcombine.high %v3503, %v3535
        %3546 = vrot.lane.b32.xlu0 %v3129, 2
        %v3547 = vpop.permute.xlu0 %3546
        %3548 = vrot.lane.b32.xlu0 %v3265, 2
        %v3549 = vpop.permute.xlu0 %3548
        %3554 = vrot.lane.b32.xlu0 %v3130, 4
        %v3555 = vpop.permute.xlu0 %3554
        %3556 = vrot.lane.b32.xlu0 %v3266, 4
        %v3557 = vpop.permute.xlu0 %3556
        %3562 = vrot.lane.b32.xlu0 %v3131, 6
        %v3563 = vpop.permute.xlu0 %3562
        %3564 = vrot.lane.b32.xlu0 %v3267, 6
        %v3565 = vpop.permute.xlu0 %3564
        %3570 = vrot.lane.b32.xlu0 %v3132, 8
        %v3571 = vpop.permute.xlu0 %3570
        %3572 = vrot.lane.b32.xlu0 %v3268, 8
        %v3573 = vpop.permute.xlu0 %3572
        %3578 = vrot.lane.b32.xlu0 %v3133, 10
        %v3579 = vpop.permute.xlu0 %3578
        %3580 = vrot.lane.b32.xlu0 %v3269, 10
        %v3581 = vpop.permute.xlu0 %3580
        %3586 = vrot.lane.b32.xlu0 %v3134, 12
        %v3587 = vpop.permute.xlu0 %3586
        %3588 = vrot.lane.b32.xlu0 %v3270, 12
        %v3589 = vpop.permute.xlu0 %3588
        %3594 = vrot.lane.b32.xlu0 %v3135, 14
        %v3595 = vpop.permute.xlu0 %3594
        %3596 = vrot.lane.b32.xlu0 %v3271, 14
        %v3597 = vpop.permute.xlu0 %3596
        %3602 = vrot.lane.b32.xlu0 %v3400, 16
        %v3603 = vpop.permute.xlu0 %3602
        %3604 = vrot.lane.b32.xlu0 %v3536, 16
        %v3605 = vpop.permute.xlu0 %3604
        %3610 = vrot.lane.b32.xlu0 %v3401, 18
        %v3611 = vpop.permute.xlu0 %3610
        %3612 = vrot.lane.b32.xlu0 %v3537, 18
        %v3613 = vpop.permute.xlu0 %3612
        %3618 = vrot.lane.b32.xlu0 %v3402, 20
        %v3619 = vpop.permute.xlu0 %3618
        %3620 = vrot.lane.b32.xlu0 %v3538, 20
        %v3621 = vpop.permute.xlu0 %3620
        %3626 = vrot.lane.b32.xlu0 %v3403, 22
        %v3627 = vpop.permute.xlu0 %3626
        %3628 = vrot.lane.b32.xlu0 %v3539, 22
        %v3629 = vpop.permute.xlu0 %3628
        %3634 = vrot.lane.b32.xlu0 %v3404, 24
        %v3635 = vpop.permute.xlu0 %3634
        %3636 = vrot.lane.b32.xlu0 %v3540, 24
        %v3637 = vpop.permute.xlu0 %3636
        %3642 = vrot.lane.b32.xlu0 %v3405, 26
        %v3643 = vpop.permute.xlu0 %3642
        %3644 = vrot.lane.b32.xlu0 %v3541, 26
        %v3645 = vpop.permute.xlu0 %3644
        %3650 = vrot.lane.b32.xlu0 %v3406, 28
        %v3651 = vpop.permute.xlu0 %3650
        %3652 = vrot.lane.b32.xlu0 %v3542, 28
        %v3653 = vpop.permute.xlu0 %3652
        %3658 = vrot.lane.b32.xlu0 %v3407, 30
        %v3659 = vpop.permute.xlu0 %3658
        %3660 = vrot.lane.b32.xlu0 %v3543, 30
        %v3661 = vpop.permute.xlu0 %3660
        %v3664 = vsel %vm1025, %v3128, %v3547
        %v3665 = vsel %vm1025, %v3264, %v3549
        %v3666 = vsel %vm1028, %v3664, %v3555
        %v3667 = vsel %vm1028, %v3665, %v3557
        %v3668 = vsel %vm1031, %v3666, %v3563
        %v3669 = vsel %vm1031, %v3667, %v3565
        %v3670 = vsel %vm1034, %v3668, %v3571
        %v3671 = vsel %vm1034, %v3669, %v3573
        %v3672 = vsel %vm1037, %v3670, %v3579
        %v3673 = vsel %vm1037, %v3671, %v3581
        %v3674 = vsel %vm1040, %v3672, %v3587
        %v3675 = vsel %vm1040, %v3673, %v3589
        %v3676 = vsel %vm1043, %v3674, %v3595
        %v3677 = vsel %vm1043, %v3675, %v3597
        %v3678 = vsel %vm1046, %v3676, %v3603
        %v3679 = vsel %vm1046, %v3677, %v3605
        %v3680 = vsel %vm1049, %v3678, %v3611
        %v3681 = vsel %vm1049, %v3679, %v3613
        %v3682 = vsel %vm1052, %v3680, %v3619
        %v3683 = vsel %vm1052, %v3681, %v3621
        %v3684 = vsel %vm1055, %v3682, %v3627
        %v3685 = vsel %vm1055, %v3683, %v3629
        %v3686 = vsel %vm1058, %v3684, %v3635
        %v3687 = vsel %vm1058, %v3685, %v3637
        %v3688 = vsel %vm1061, %v3686, %v3643
        %v3689 = vsel %vm1061, %v3687, %v3645
        %v3690 = vsel %vm1064, %v3688, %v3651
        %v3691 = vsel %vm1064, %v3689, %v3653
        %v3692 = vsel %vm1067, %v3690, %v3659
        %v3693 = vsel %vm1067, %v3691, %v3661
        %v3694 = vsel %vm182, %v3692, %v2819
        %v3695 = vsel %vm182, %v3693, %v2820
        %3698 = vrot.lane.b32.xlu0 %v3694, 32
        %v3699 = vpop.permute.xlu0 %3698
        %3700 = vrot.lane.b32.xlu0 %v3695, 32
        %v3701 = vpop.permute.xlu0 %3700
        %vm3704 = vcmask 523520
        %3705 = vst.msk [vmem:[%s165] sm:$0xff] %vm3704, %v3699
        %3706 = vst.msk [vmem:[%s165 + $0x8] sm:$0xff] %vm3704, %v3701
        %s3707 = sand.u32 %s79, 1
        %s3708 = scalar_lea.sflag [#allocation4], %s3707
        %s3709 = sand.u32 %s79, 1
        %s3710 = smul.addr %s3709, 16
        %s3711 = scalar_lea.vmem [#allocation5], %s3710
        // Predicated region
        $region29: #{tpu_custom_call.1} parent=23 // pred_check
          %p3712 = pneg %p89
        $region30: #{tpu_custom_call.1} parent=23 // pred_check_branch
          %3714 = sbr.rel (%p3712) target = $region32
        $region31: #{tpu_custom_call.1} parent=23 // pred_region
          %s3715 = smul.u32 2, %s25
          %s3717 = ssub.s32 256, 256
          %3718 = vsyncadd %s3708, %s3717
          %s3719 = smul.addr %s24, 2
          %s3720 = sadd.s32 %s3715, %s3719
          %s3721 = smul.addr %s23, 2
          %s3722 = sadd.s32 %s3720, %s3721
          %s3723 = smul.addr %s3722, 128
          %s3724 = scalar_lea.hbm %s1, %s3723
          %s3725 = sshll.u32 %s3711, 4
          %s3726 = int_to_ptr.vmem [resolvable:$true] %s3725
          %3731 = dma.vmem_to_hbm [thread:$0]  %s3726, 256, %s3724, %s3708, 128, 128, 8
        $region32: #{tpu_custom_call.1} parent=23 // pred_fallthru
          _
      $region24: #{tpu_custom_call.1} parent=5 // pred_fallthru
        _
      %p3732 = scmp.le.s32.totalorder 2, %s13
      // Predicated region
      $region33: #{tpu_custom_call.1} parent=5 // pred_check
        %p3733 = pneg %p3732
      $region34: #{tpu_custom_call.1} parent=5 // pred_check_branch
        %3735 = sbr.rel (%p3733) target = $region36
      $region35: #{tpu_custom_call.1} parent=5 // pred_region
        %s3736 = ssub.s32 %s13, 2
        // Predicated region
        $region37: #{tpu_custom_call.1} parent=35 // pred_check
          %p3737 = pneg %p95
        $region38: #{tpu_custom_call.1} parent=35 // pred_check_branch
          %3739 = sbr.rel (%p3737) target = $region40
        $region39: #{tpu_custom_call.1} parent=35 // pred_region
          %s3740 = sand.u32 %s80, 1
          %s3741 = scalar_lea.sflag [#allocation4], %s3740
          %s3742 = sand.u32 %s80, 1
          %s3743 = smul.addr %s3742, 16
          %s3744 = scalar_lea.vmem [#allocation5], %s3743
          %3745 = dma.done %s3741, 256
        $region40: #{tpu_custom_call.1} parent=35 // pred_fallthru
          _
      $region36: #{tpu_custom_call.1} parent=5 // pred_fallthru
        _
    $region6: #{tpu_custom_call.1} parent=1 // loop_footer
      %s17 = sadd.s32 1, %s13
    $region7: #{tpu_custom_call.1} parent=1 // loop_footer_branch
      %12 = sbr.rel target = $region3
    $region8: #{tpu_custom_call.1} parent=1 // loop_exit
      _
    %3746 = vsyncpa [#allocation3], 1
    %s3747 = scalar_lea.sflag [#allocation3], 1
    %3748 = vsyncpa %s3747, 1
    %3749 = vsyncpa [#allocation4], 1
    %s3750 = scalar_lea.sflag [#allocation4], 1
    %3751 = vsyncpa %s3750, 1

// kernel: tpu_custom_call.1
$region0: #{tpu_custom_call.1}
  #allocation0 [shape = 'u32[]', space=smem, size = 0x4, offset = 0x4, fixed_abs, tag = 'smem constant byte address 0x4 - core index']
  #allocation1 [shape = 'u32[144,128]{1,0:T(1,128)}', space=vmem, size = 0x12000, scoped, tag = 'internal scratch']
  %s0 = inlined_call_operand.hbm [shape: f32[2,1,4,16,16], index: 0, kind: input, shape index: {}]
  %s1 = inlined_call_operand.hbm [shape: f32[2,1,16,64], index: 1, kind: output, shape index: {}]
  %s2 = sld [smem:[#allocation0]]
  $region41: #{tpu_custom_call.1} parent=0
    _
  %s4 = ssub.s32 1, %s2
  %s5 = scalar_select 0, %s4, %s2
  $region1: #{tpu_custom_call.1} parent=0
    #allocation2 [shape = 'u8[65536]{0}', space=vmem, size = 0x10000, scoped, tag = 'input window, operand 0']
    #allocation3 [shape = 's32[2]{0}', space=sflag, size = 0x8, scoped, tag = 'scoped memory for tpu_custom_call.1']
    #allocation4 [shape = 's32[2]{0}', space=sflag, size = 0x8, scoped, tag = 'scoped memory for tpu_custom_call.1']
    #allocation5 [shape = 'u8[16384]{0}', space=vmem, size = 0x4000, scoped, tag = 'output window, operand 0']
    %6 = vsyncpa [#allocation3], 0
    %s7 = scalar_lea.sflag [#allocation3], 1
    %8 = vsyncpa %s7, 0
    %9 = vsyncpa [#allocation4], 0
    %s10 = scalar_lea.sflag [#allocation4], 1
    %11 = vsyncpa %s10, 0
    loop: start=0, step=1, limit=4
    $region2: #{tpu_custom_call.1} parent=1 // loop_pre_header
      _
    $region3: #{tpu_custom_call.1} parent=1 // loop_header
      %s13 = sphi 0, %s17
      %p14 = scmp.ge.s32.totalorder %s13, 4
      %s20 = sphi 0, %s39
      %s21 = sphi 0, %s35
      %s22 = sphi 0, %s31
      %s23 = sphi 0, %s20
      %s24 = sphi 0, %s21
      %s25 = sphi 0, %s22
      %s26 = sphi 0, %s23
      %s27 = sphi 0, %s24
      %s28 = sphi 0, %s25
      %s46 = sphi 0, %s48
      %s49 = sphi 0, %s46
      %s50 = sphi 0, %s49
      %s66 = sphi 0, %s50
      %s76 = sphi 0, %s78
      %s79 = sphi 0, %s76
      %s80 = sphi 0, %s79
      %s96 = sphi 0, %s80
    $region4: #{tpu_custom_call.1} parent=1 // loop_header_branch
      %16 = sbr.rel (%p14) target = $region8
    $region5: #{tpu_custom_call.1} parent=1 // loop_body
      %s18 = ssub.s32 %s13, 1
      %s19 = ssub.s32 %s13, 2
      %s29 = sadd.s32 1, %s22
      %p30 = scmp.ge.s32.totalorder %s29, 1
      %s31 = scalar_select %p30, 0, %s29
      %s32 = sadd.s32 1, %s21
      %s33 = scalar_select %p30, %s32, %s21
      %p34 = scmp.ge.s32.totalorder %s33, 1
      %s35 = scalar_select %p34, 0, %s33
      %s36 = sadd.s32 1, %s20
      %s37 = scalar_select %p34, %s36, %s20
      %p38 = scmp.ge.s32.totalorder %s37, 2
      %s39 = scalar_select %p38, 0, %s37
      %s40 = ssub.s32 %s20, %s39
      %s41 = ssub.s32 %s21, %s35
      %s42 = sor.u32 %s40, %s41
      %s43 = ssub.s32 %s22, %s31
      %s44 = sor.u32 %s42, %s43
      %p45 = scmp.eq.s32.totalorder %s44, 0
      %s47 = sadd.s32 %s46, 1
      %s48 = scalar_select %p45, %s46, %s47
      %p51 = pneg %p45
      %p52 = scmp.eq.s32.totalorder %s13, 1
      %p53 = por %p51, %p52
      %p54 = scmp.ne.s32.totalorder %s46, %s49
      %p55 = scmp.eq.s32.totalorder %s13, 0
      %p56 = por %p54, %p55
      %p57 = scmp.ne.s32.totalorder %s46, %s49
      %p58 = scmp.eq.s32.totalorder %s18, 1
      %p59 = por %p57, %p58
      %p60 = scmp.ne.s32.totalorder %s49, %s50
      %p61 = scmp.eq.s32.totalorder %s18, 0
      %p62 = por %p60, %p61
      %p63 = scmp.ne.s32.totalorder %s49, %s50
      %p64 = scmp.eq.s32.totalorder %s19, 1
      %p65 = por %p63, %p64
      %p67 = scmp.ne.s32.totalorder %s50, %s66
      %p68 = scmp.eq.s32.totalorder %s19, 0
      %p69 = por %p67, %p68
      %s70 = ssub.s32 %s20, %s39
      %s71 = ssub.s32 %s21, %s35
      %s72 = sor.u32 %s70, %s71
      %s73 = ssub.s32 %s22, %s31
      %s74 = sor.u32 %s72, %s73
      %p75 = scmp.eq.s32.totalorder %s74, 0
      %s77 = sadd.s32 %s76, 1
      %s78 = scalar_select %p75, %s76, %s77
      %p81 = pneg %p75
      %p82 = scmp.eq.s32.totalorder %s13, 1
      %p83 = por %p81, %p82
      %p84 = scmp.ne.s32.totalorder %s76, %s79
      %p85 = scmp.eq.s32.totalorder %s13, 0
      %p86 = por %p84, %p85
      %p87 = scmp.ne.s32.totalorder %s76, %s79
      %p88 = scmp.eq.s32.totalorder %s18, 1
      %p89 = por %p87, %p88
      %p90 = scmp.ne.s32.totalorder %s79, %s80
      %p91 = scmp.eq.s32.totalorder %s18, 0
      %p92 = por %p90, %p91
      %p93 = scmp.ne.s32.totalorder %s79, %s80
      %p94 = scmp.eq.s32.totalorder %s19, 1
      %p95 = por %p93, %p94
      %p97 = scmp.ne.s32.totalorder %s80, %s96
      %p98 = scmp.eq.s32.totalorder %s19, 0
      %p99 = por %p97, %p98
      %p100 = scmp.le.s32.totalorder 1, %s13
      %p101 = scmp.lt.s32.totalorder %s13, 3
      %p102 = pnand %p100, %p101
      %p103 = pneg %p102
      // Predicated region
      $region9: #{tpu_custom_call.1} parent=5 // pred_check
        _
      $region10: #{tpu_custom_call.1} parent=5 // pred_check_branch
        %105 = sbr.rel (%p102) target = $region12
      $region11: #{tpu_custom_call.1} parent=5 // pred_region
        %s106 = ssub.s32 %s13, 1
      $region12: #{tpu_custom_call.1} parent=5 // pred_fallthru
        _
      %p107 = scmp.lt.s32.totalorder %s13, 2
      // Predicated region
      $region13: #{tpu_custom_call.1} parent=5 // pred_check
        %p108 = pneg %p107
      $region14: #{tpu_custom_call.1} parent=5 // pred_check_branch
        %110 = sbr.rel (%p108) target = $region16
      $region15: #{tpu_custom_call.1} parent=5 // pred_region
        // Predicated region
        $region17: #{tpu_custom_call.1} parent=15 // pred_check
          %p111 = pneg %p56
        $region18: #{tpu_custom_call.1} parent=15 // pred_check_branch
          %113 = sbr.rel (%p111) target = $region20
        $region19: #{tpu_custom_call.1} parent=15 // pred_region
          %s114 = sand.u32 %s46, 1
          %s115 = scalar_lea.sflag [#allocation3], %s114
          %s116 = sand.u32 %s46, 1
          %s117 = smul.addr %s116, 64
          %s118 = scalar_lea.vmem [#allocation2], %s117
          %s119 = smul.u32 2, %s22
          %s121 = ssub.s32 1024, 1024
          %122 = vsyncadd %s115, %s121
          %s123 = smul.addr %s21, 8
          %s124 = sadd.s32 %s119, %s123
          %s125 = smul.addr %s20, 8
          %s126 = sadd.s32 %s124, %s125
          %s127 = smul.addr %s126, 128
          %s128 = scalar_lea.hbm %s0, %s127
          %s129 = sshll.u32 %s118, 4
          %s130 = int_to_ptr.vmem [resolvable:$true] %s129
          %135 = dma.hbm_to_vmem [thread:$0]  %s128, 1024, %s130, %s115, 128, 128, 8
        $region20: #{tpu_custom_call.1} parent=15 // pred_fallthru
          _
      $region16: #{tpu_custom_call.1} parent=5 // pred_fallthru
        _
      %p136 = scmp.le.s32.totalorder 1, %s13
      %p137 = scmp.lt.s32.totalorder %s13, 3
      %p138 = pnand %p136, %p137
      %p139 = pneg %p138
      // Predicated region
      $region21: #{tpu_custom_call.1} parent=5 // pred_check
        _
      $region22: #{tpu_custom_call.1} parent=5 // pred_check_branch
        %141 = sbr.rel (%p138) target = $region24
      $region23: #{tpu_custom_call.1} parent=5 // pred_region
        %s142 = ssub.s32 %s13, 1
        %s143 = sand.u32 %s49, 1
        %s144 = scalar_lea.sflag [#allocation3], %s143
        %s145 = sand.u32 %s49, 1
        %s146 = smul.addr %s145, 64
        %s147 = scalar_lea.vmem [#allocation2], %s146
        // Predicated region
        $region25: #{tpu_custom_call.1} parent=23 // pred_check
          %p148 = pneg %p62
        $region26: #{tpu_custom_call.1} parent=23 // pred_check_branch
          %150 = sbr.rel (%p148) target = $region28
        $region27: #{tpu_custom_call.1} parent=23 // pred_region
          %151 = dma.done %s144, 1024
        $region28: #{tpu_custom_call.1} parent=23 // pred_fallthru
          _
        %s152 = sand.u32 %s49, 1
        %s153 = scalar_lea.sflag [#allocation3], %s152
        %s154 = sand.u32 %s49, 1
        %s155 = smul.addr %s154, 64
        %s156 = scalar_lea.vmem [#allocation2], %s155
        %p157 = pneg %p62
        %p158 = pneg %p59
        %p159 = pneg %p92
        %p160 = pneg %p89
        %s161 = sand.u32 %s79, 1
        %s162 = scalar_lea.sflag [#allocation4], %s161
        %s163 = sand.u32 %s79, 1
        %s164 = smul.addr %s163, 16
        %s165 = scalar_lea.vmem [#allocation5], %s164
        %s166 = smul.u32 2, %s25
        %s167 = smul.u32 2, %s25
        %v168 = vld [vmem:[%s147] sm:$0xff]
        %v169 = vld [vmem:[%s147 + $0x8] sm:$0xff]
        %vm170 = vcmask 7168
        %171 = vst.msk [vmem:[%s165] sm:$0xff] %vm170, %v168
        %172 = vst.msk [vmem:[%s165 + $0x8] sm:$0xff] %vm170, %v169
        %v173 = vld [vmem:[%s147] sm:$0xff]
        %v174 = vld [vmem:[%s147 + $0x8] sm:$0xff]
        %177 = vrot.lane.b32.xlu0 %v173, 1
        %v178 = vpop.permute.xlu0 %177
        %179 = vrot.lane.b32.xlu0 %v174, 1
        %v180 = vpop.permute.xlu0 %179
        %vm183 = vcmask 23568
        %184 = vst.msk [vmem:[%s165] sm:$0xff] %vm183, %v178
        %185 = vst.msk [vmem:[%s165 + $0x8] sm:$0xff] %vm183, %v180
        %v186 = vld [vmem:[%s147] sm:$0xff]
        %v187 = vld [vmem:[%s147 + $0x8] sm:$0xff]
        %190 = vrot.lane.b32.xlu0 %v186, 2
        %v191 = vpop.permute.xlu0 %190
        %192 = vrot.lane.b32.xlu0 %v187, 2
        %v193 = vpop.permute.xlu0 %192
        %vm196 = vcmask 39968
        %197 = vst.msk [vmem:[%s165] sm:$0xff] %vm196, %v191
        %198 = vst.msk [vmem:[%s165 + $0x8] sm:$0xff] %vm196, %v193
        %v199 = vld [vmem:[%s147] sm:$0xff]
        %v200 = vld [vmem:[%s147 + $0x8] sm:$0xff]
        %203 = vrot.lane.b32.xlu0 %v199, 3
        %v204 = vpop.permute.xlu0 %203
        %205 = vrot.lane.b32.xlu0 %v200, 3
        %v206 = vpop.permute.xlu0 %205
        %vm209 = vcmask 56368
        %210 = vst.msk [vmem:[%s165] sm:$0xff] %vm209, %v204
        %211 = vst.msk [vmem:[%s165 + $0x8] sm:$0xff] %vm209, %v206
        %v212 = vld [vmem:[%s147] sm:$0xff]
        %v213 = vld [vmem:[%s147 + $0x8] sm:$0xff]
        %216 = vrot.lane.b32.xlu0 %v212, 4
        %v217 = vpop.permute.xlu0 %216
        %218 = vrot.lane.b32.xlu0 %v213, 4
        %v219 = vpop.permute.xlu0 %218
        %vm222 = vcmask 72768
        %223 = vst.msk [vmem:[%s165] sm:$0xff] %vm222, %v217
        %224 = vst.msk [vmem:[%s165 + $0x8] sm:$0xff] %vm222, %v219
        %v225 = vld [vmem:[%s147] sm:$0xff]
        %v226 = vld [vmem:[%s147 + $0x8] sm:$0xff]
        %229 = vrot.lane.b32.xlu0 %v225, 5
        %v230 = vpop.permute.xlu0 %229
        %231 = vrot.lane.b32.xlu0 %v226, 5
        %v232 = vpop.permute.xlu0 %231
        %vm235 = vcmask 89168
        %236 = vst.msk [vmem:[%s165] sm:$0xff] %vm235, %v230
        %237 = vst.msk [vmem:[%s165 + $0x8] sm:$0xff] %vm235, %v232
        %v238 = vld [vmem:[%s147] sm:$0xff]
        %v239 = vld [vmem:[%s147 + $0x8] sm:$0xff]
        %242 = vrot.lane.b32.xlu0 %v238, 6
        %v243 = vpop.permute.xlu0 %242
        %244 = vrot.lane.b32.xlu0 %v239, 6
        %v245 = vpop.permute.xlu0 %244
        %vm248 = vcmask 105568
        %249 = vst.msk [vmem:[%s165] sm:$0xff] %vm248, %v243
        %250 = vst.msk [vmem:[%s165 + $0x8] sm:$0xff] %vm248, %v245
        %v251 = vld [vmem:[%s147] sm:$0xff]
        %v252 = vld [vmem:[%s147 + $0x8] sm:$0xff]
        %255 = vrot.lane.b32.xlu0 %v251, 7
        %v256 = vpop.permute.xlu0 %255
        %257 = vrot.lane.b32.xlu0 %v252, 7
        %v258 = vpop.permute.xlu0 %257
        %vm261 = vcmask 121968
        %262 = vst.msk [vmem:[%s165] sm:$0xff] %vm261, %v256
        %263 = vst.msk [vmem:[%s165 + $0x8] sm:$0xff] %vm261, %v258
        %v264 = vld [vmem:[%s147] sm:$0xff]
        %v265 = vld [vmem:[%s147 + $0x8] sm:$0xff]
        %268 = vrot.lane.b32.xlu0 %v264, 8
        %v269 = vpop.permute.xlu0 %268
        %270 = vrot.lane.b32.xlu0 %v265, 8
        %v271 = vpop.permute.xlu0 %270
        %vm274 = vcmask 138368
        %275 = vst.msk [vmem:[%s165] sm:$0xff] %vm274, %v269
        %276 = vst.msk [vmem:[%s165 + $0x8] sm:$0xff] %vm274, %v271
        %v277 = vld [vmem:[%s147] sm:$0xff]
        %v278 = vld [vmem:[%s147 + $0x8] sm:$0xff]
        %281 = vrot.lane.b32.xlu0 %v277, 9
        %v282 = vpop.permute.xlu0 %281
        %283 = vrot.lane.b32.xlu0 %v278, 9
        %v284 = vpop.permute.xlu0 %283
        %vm287 = vcmask 154768
        %288 = vst.msk [vmem:[%s165] sm:$0xff] %vm287, %v282
        %289 = vst.msk [vmem:[%s165 + $0x8] sm:$0xff] %vm287, %v284
        %v290 = vld [vmem:[%s147] sm:$0xff]
        %v291 = vld [vmem:[%s147 + $0x8] sm:$0xff]
        %294 = vrot.lane.b32.xlu0 %v290, 10
        %v295 = vpop.permute.xlu0 %294
        %296 = vrot.lane.b32.xlu0 %v291, 10
        %v297 = vpop.permute.xlu0 %296
        %vm300 = vcmask 171168
        %301 = vst.msk [vmem:[%s165] sm:$0xff] %vm300, %v295
        %302 = vst.msk [vmem:[%s165 + $0x8] sm:$0xff] %vm300, %v297
        %v303 = vld [vmem:[%s147] sm:$0xff]
        %v304 = vld [vmem:[%s147 + $0x8] sm:$0xff]
        %307 = vrot.lane.b32.xlu0 %v303, 11
        %v308 = vpop.permute.xlu0 %307
        %309 = vrot.lane.b32.xlu0 %v304, 11
        %v310 = vpop.permute.xlu0 %309
        %vm313 = vcmask 187568
        %314 = vst.msk [vmem:[%s165] sm:$0xff] %vm313, %v308
        %315 = vst.msk [vmem:[%s165 + $0x8] sm:$0xff] %vm313, %v310
        %v316 = vld [vmem:[%s147] sm:$0xff]
        %v317 = vld [vmem:[%s147 + $0x8] sm:$0xff]
        %320 = vrot.lane.b32.xlu0 %v316, 12
        %v321 = vpop.permute.xlu0 %320
        %322 = vrot.lane.b32.xlu0 %v317, 12
        %v323 = vpop.permute.xlu0 %322
        %vm326 = vcmask 203968
        %327 = vst.msk [vmem:[%s165] sm:$0xff] %vm326, %v321
        %328 = vst.msk [vmem:[%s165 + $0x8] sm:$0xff] %vm326, %v323
        %v329 = vld [vmem:[%s147] sm:$0xff]
        %v330 = vld [vmem:[%s147 + $0x8] sm:$0xff]
        %333 = vrot.lane.b32.xlu0 %v329, 13
        %v334 = vpop.permute.xlu0 %333
        %335 = vrot.lane.b32.xlu0 %v330, 13
        %v336 = vpop.permute.xlu0 %335
        %vm339 = vcmask 220368
        %340 = vst.msk [vmem:[%s165] sm:$0xff] %vm339, %v334
        %341 = vst.msk [vmem:[%s165 + $0x8] sm:$0xff] %vm339, %v336
        %v342 = vld [vmem:[%s147] sm:$0xff]
        %v343 = vld [vmem:[%s147 + $0x8] sm:$0xff]
        %346 = vrot.lane.b32.xlu0 %v342, 14
        %v347 = vpop.permute.xlu0 %346
        %348 = vrot.lane.b32.xlu0 %v343, 14
        %v349 = vpop.permute.xlu0 %348
        %vm352 = vcmask 236768
        %353 = vst.msk [vmem:[%s165] sm:$0xff] %vm352, %v347
        %354 = vst.msk [vmem:[%s165 + $0x8] sm:$0xff] %vm352, %v349
        %v355 = vld [vmem:[%s147] sm:$0xff]
        %v356 = vld [vmem:[%s147 + $0x8] sm:$0xff]
        %359 = vrot.lane.b32.xlu0 %v355, 15
        %v360 = vpop.permute.xlu0 %359
        %361 = vrot.lane.b32.xlu0 %v356, 15
        %v362 = vpop.permute.xlu0 %361
        %vm365 = vcmask 253168
        %366 = vst.msk [vmem:[%s165] sm:$0xff] %vm365, %v360
        %367 = vst.msk [vmem:[%s165 + $0x8] sm:$0xff] %vm365, %v362
        %s368 = scalar_lea.vmem %s147, 16 [#allocation2]
        %v369 = vld [vmem:[%s368] sm:$0xff]
        %v370 = vld [vmem:[%s368 + $0x8] sm:$0xff]
        %373 = vrot.lane.b32.xlu0 %v369, 1
        %v374 = vpop.permute.xlu0 %373
        %375 = vrot.lane.b32.xlu0 %v370, 1
        %v376 = vpop.permute.xlu0 %375
        %vm379 = vcmask 15368
        %380 = vst.msk [vmem:[%s165] sm:$0xff] %vm379, %v374
        %381 = vst.msk [vmem:[%s165 + $0x8] sm:$0xff] %vm379, %v376
        %v382 = vld [vmem:[%s368] sm:$0xff]
        %v383 = vld [vmem:[%s368 + $0x8] sm:$0xff]
        %386 = vrot.lane.b32.xlu0 %v382, 2
        %v387 = vpop.permute.xlu0 %386
        %388 = vrot.lane.b32.xlu0 %v383, 2
        %v389 = vpop.permute.xlu0 %388
        %vm392 = vcmask 31768
        %393 = vst.msk [vmem:[%s165] sm:$0xff] %vm392, %v387
        %394 = vst.msk [vmem:[%s165 + $0x8] sm:$0xff] %vm392, %v389
        %v395 = vld [vmem:[%s368] sm:$0xff]
        %v396 = vld [vmem:[%s368 + $0x8] sm:$0xff]
        %399 = vrot.lane.b32.xlu0 %v395, 3
        %v400 = vpop.permute.xlu0 %399
        %401 = vrot.lane.b32.xlu0 %v396, 3
        %v402 = vpop.permute.xlu0 %401
        %vm405 = vcmask 48168
        %406 = vst.msk [vmem:[%s165] sm:$0xff] %vm405, %v400
        %407 = vst.msk [vmem:[%s165 + $0x8] sm:$0xff] %vm405, %v402
        %v408 = vld [vmem:[%s368] sm:$0xff]
        %v409 = vld [vmem:[%s368 + $0x8] sm:$0xff]
        %412 = vrot.lane.b32.xlu0 %v408, 4
        %v413 = vpop.permute.xlu0 %412
        %414 = vrot.lane.b32.xlu0 %v409, 4
        %v415 = vpop.permute.xlu0 %414
        %vm418 = vcmask 64568
        %419 = vst.msk [vmem:[%s165] sm:$0xff] %vm418, %v413
        %420 = vst.msk [vmem:[%s165 + $0x8] sm:$0xff] %vm418, %v415
        %v421 = vld [vmem:[%s368] sm:$0xff]
        %v422 = vld [vmem:[%s368 + $0x8] sm:$0xff]
        %425 = vrot.lane.b32.xlu0 %v421, 5
        %v426 = vpop.permute.xlu0 %425
        %427 = vrot.lane.b32.xlu0 %v422, 5
        %v428 = vpop.permute.xlu0 %427
        %vm431 = vcmask 80968
        %432 = vst.msk [vmem:[%s165] sm:$0xff] %vm431, %v426
        %433 = vst.msk [vmem:[%s165 + $0x8] sm:$0xff] %vm431, %v428
        %v434 = vld [vmem:[%s368] sm:$0xff]
        %v435 = vld [vmem:[%s368 + $0x8] sm:$0xff]
        %438 = vrot.lane.b32.xlu0 %v434, 6
        %v439 = vpop.permute.xlu0 %438
        %440 = vrot.lane.b32.xlu0 %v435, 6
        %v441 = vpop.permute.xlu0 %440
        %vm444 = vcmask 97368
        %445 = vst.msk [vmem:[%s165] sm:$0xff] %vm444, %v439
        %446 = vst.msk [vmem:[%s165 + $0x8] sm:$0xff] %vm444, %v441
        %v447 = vld [vmem:[%s368] sm:$0xff]
        %v448 = vld [vmem:[%s368 + $0x8] sm:$0xff]
        %451 = vrot.lane.b32.xlu0 %v447, 7
        %v452 = vpop.permute.xlu0 %451
        %453 = vrot.lane.b32.xlu0 %v448, 7
        %v454 = vpop.permute.xlu0 %453
        %vm457 = vcmask 113768
        %458 = vst.msk [vmem:[%s165] sm:$0xff] %vm457, %v452
        %459 = vst.msk [vmem:[%s165 + $0x8] sm:$0xff] %vm457, %v454
        %v460 = vld [vmem:[%s368] sm:$0xff]
        %v461 = vld [vmem:[%s368 + $0x8] sm:$0xff]
        %464 = vrot.lane.b32.xlu0 %v460, 8
        %v465 = vpop.permute.xlu0 %464
        %466 = vrot.lane.b32.xlu0 %v461, 8
        %v467 = vpop.permute.xlu0 %466
        %vm470 = vcmask 130168
        %471 = vst.msk [vmem:[%s165] sm:$0xff] %vm470, %v465
        %472 = vst.msk [vmem:[%s165 + $0x8] sm:$0xff] %vm470, %v467
        %v473 = vld [vmem:[%s368] sm:$0xff]
        %v474 = vld [vmem:[%s368 + $0x8] sm:$0xff]
        %477 = vrot.lane.b32.xlu0 %v473, 9
        %v478 = vpop.permute.xlu0 %477
        %479 = vrot.lane.b32.xlu0 %v474, 9
        %v480 = vpop.permute.xlu0 %479
        %vm483 = vcmask 146568
        %484 = vst.msk [vmem:[%s165] sm:$0xff] %vm483, %v478
        %485 = vst.msk [vmem:[%s165 + $0x8] sm:$0xff] %vm483, %v480
        %v486 = vld [vmem:[%s368] sm:$0xff]
        %v487 = vld [vmem:[%s368 + $0x8] sm:$0xff]
        %490 = vrot.lane.b32.xlu0 %v486, 10
        %v491 = vpop.permute.xlu0 %490
        %492 = vrot.lane.b32.xlu0 %v487, 10
        %v493 = vpop.permute.xlu0 %492
        %vm496 = vcmask 162968
        %497 = vst.msk [vmem:[%s165] sm:$0xff] %vm496, %v491
        %498 = vst.msk [vmem:[%s165 + $0x8] sm:$0xff] %vm496, %v493
        %v499 = vld [vmem:[%s368] sm:$0xff]
        %v500 = vld [vmem:[%s368 + $0x8] sm:$0xff]
        %503 = vrot.lane.b32.xlu0 %v499, 11
        %v504 = vpop.permute.xlu0 %503
        %505 = vrot.lane.b32.xlu0 %v500, 11
        %v506 = vpop.permute.xlu0 %505
        %vm509 = vcmask 179368
        %510 = vst.msk [vmem:[%s165] sm:$0xff] %vm509, %v504
        %511 = vst.msk [vmem:[%s165 + $0x8] sm:$0xff] %vm509, %v506
        %v512 = vld [vmem:[%s368] sm:$0xff]
        %v513 = vld [vmem:[%s368 + $0x8] sm:$0xff]
        %516 = vrot.lane.b32.xlu0 %v512, 12
        %v517 = vpop.permute.xlu0 %516
        %518 = vrot.lane.b32.xlu0 %v513, 12
        %v519 = vpop.permute.xlu0 %518
        %vm522 = vcmask 195768
        %523 = vst.msk [vmem:[%s165] sm:$0xff] %vm522, %v517
        %524 = vst.msk [vmem:[%s165 + $0x8] sm:$0xff] %vm522, %v519
        %v525 = vld [vmem:[%s368] sm:$0xff]
        %v526 = vld [vmem:[%s368 + $0x8] sm:$0xff]
        %529 = vrot.lane.b32.xlu0 %v525, 13
        %v530 = vpop.permute.xlu0 %529
        %531 = vrot.lane.b32.xlu0 %v526, 13
        %v532 = vpop.permute.xlu0 %531
        %vm535 = vcmask 212168
        %536 = vst.msk [vmem:[%s165] sm:$0xff] %vm535, %v530
        %537 = vst.msk [vmem:[%s165 + $0x8] sm:$0xff] %vm535, %v532
        %v538 = vld [vmem:[%s368] sm:$0xff]
        %v539 = vld [vmem:[%s368 + $0x8] sm:$0xff]
        %542 = vrot.lane.b32.xlu0 %v538, 14
        %v543 = vpop.permute.xlu0 %542
        %544 = vrot.lane.b32.xlu0 %v539, 14
        %v545 = vpop.permute.xlu0 %544
        %vm548 = vcmask 228568
        %549 = vst.msk [vmem:[%s165] sm:$0xff] %vm548, %v543
        %550 = vst.msk [vmem:[%s165 + $0x8] sm:$0xff] %vm548, %v545
        %v551 = vld [vmem:[%s368] sm:$0xff]
        %v552 = vld [vmem:[%s368 + $0x8] sm:$0xff]
        %555 = vrot.lane.b32.xlu0 %v551, 15
        %v556 = vpop.permute.xlu0 %555
        %557 = vrot.lane.b32.xlu0 %v552, 15
        %v558 = vpop.permute.xlu0 %557
        %vm561 = vcmask 244968
        %562 = vst.msk [vmem:[%s165] sm:$0xff] %vm561, %v556
        %563 = vst.msk [vmem:[%s165 + $0x8] sm:$0xff] %vm561, %v558
        %v564 = vld [vmem:[%s368] sm:$0xff]
        %v565 = vld [vmem:[%s368 + $0x8] sm:$0xff]
        %568 = vrot.lane.b32.xlu0 %v564, 16
        %v569 = vpop.permute.xlu0 %568
        %570 = vrot.lane.b32.xlu0 %v565, 16
        %v571 = vpop.permute.xlu0 %570
        %vm574 = vcmask 261368
        %575 = vst.msk [vmem:[%s165] sm:$0xff] %vm574, %v569
        %576 = vst.msk [vmem:[%s165 + $0x8] sm:$0xff] %vm574, %v571
        %s577 = scalar_lea.vmem %s147, 32 [#allocation2]
        %v578 = vld [vmem:[%s577] sm:$0xff]
        %v579 = vld [vmem:[%s577 + $0x8] sm:$0xff]
        %582 = vrot.lane.b32.xlu0 %v578, 32
        %v583 = vpop.permute.xlu0 %582
        %584 = vrot.lane.b32.xlu0 %v579, 32
        %v585 = vpop.permute.xlu0 %584
        %vm588 = vcmask 269568
        %589 = vst.msk [vmem:[%s165] sm:$0xff] %vm588, %v583
        %590 = vst.msk [vmem:[%s165 + $0x8] sm:$0xff] %vm588, %v585
        %v591 = vld [vmem:[%s577] sm:$0xff]
        %v592 = vld [vmem:[%s577 + $0x8] sm:$0xff]
        %595 = vrot.lane.b32.xlu0 %v591, 33
        %v596 = vpop.permute.xlu0 %595
        %597 = vrot.lane.b32.xlu0 %v592, 33
        %v598 = vpop.permute.xlu0 %597
        %vm601 = vcmask 285968
        %602 = vst.msk [vmem:[%s165] sm:$0xff] %vm601, %v596
        %603 = vst.msk [vmem:[%s165 + $0x8] sm:$0xff] %vm601, %v598
        %v604 = vld [vmem:[%s577] sm:$0xff]
        %v605 = vld [vmem:[%s577 + $0x8] sm:$0xff]
        %608 = vrot.lane.b32.xlu0 %v604, 34
        %v609 = vpop.permute.xlu0 %608
        %610 = vrot.lane.b32.xlu0 %v605, 34
        %v611 = vpop.permute.xlu0 %610
        %vm614 = vcmask 302368
        %615 = vst.msk [vmem:[%s165] sm:$0xff] %vm614, %v609
        %616 = vst.msk [vmem:[%s165 + $0x8] sm:$0xff] %vm614, %v611
        %v617 = vld [vmem:[%s577] sm:$0xff]
        %v618 = vld [vmem:[%s577 + $0x8] sm:$0xff]
        %621 = vrot.lane.b32.xlu0 %v617, 35
        %v622 = vpop.permute.xlu0 %621
        %623 = vrot.lane.b32.xlu0 %v618, 35
        %v624 = vpop.permute.xlu0 %623
        %vm627 = vcmask 318768
        %628 = vst.msk [vmem:[%s165] sm:$0xff] %vm627, %v622
        %629 = vst.msk [vmem:[%s165 + $0x8] sm:$0xff] %vm627, %v624
        %v630 = vld [vmem:[%s577] sm:$0xff]
        %v631 = vld [vmem:[%s577 + $0x8] sm:$0xff]
        %634 = vrot.lane.b32.xlu0 %v630, 36
        %v635 = vpop.permute.xlu0 %634
        %636 = vrot.lane.b32.xlu0 %v631, 36
        %v637 = vpop.permute.xlu0 %636
        %vm640 = vcmask 335168
        %641 = vst.msk [vmem:[%s165] sm:$0xff] %vm640, %v635
        %642 = vst.msk [vmem:[%s165 + $0x8] sm:$0xff] %vm640, %v637
        %v643 = vld [vmem:[%s577] sm:$0xff]
        %v644 = vld [vmem:[%s577 + $0x8] sm:$0xff]
        %647 = vrot.lane.b32.xlu0 %v643, 37
        %v648 = vpop.permute.xlu0 %647
        %649 = vrot.lane.b32.xlu0 %v644, 37
        %v650 = vpop.permute.xlu0 %649
        %vm653 = vcmask 351568
        %654 = vst.msk [vmem:[%s165] sm:$0xff] %vm653, %v648
        %655 = vst.msk [vmem:[%s165 + $0x8] sm:$0xff] %vm653, %v650
        %v656 = vld [vmem:[%s577] sm:$0xff]
        %v657 = vld [vmem:[%s577 + $0x8] sm:$0xff]
        %660 = vrot.lane.b32.xlu0 %v656, 38
        %v661 = vpop.permute.xlu0 %660
        %662 = vrot.lane.b32.xlu0 %v657, 38
        %v663 = vpop.permute.xlu0 %662
        %vm666 = vcmask 367968
        %667 = vst.msk [vmem:[%s165] sm:$0xff] %vm666, %v661
        %668 = vst.msk [vmem:[%s165 + $0x8] sm:$0xff] %vm666, %v663
        %v669 = vld [vmem:[%s577] sm:$0xff]
        %v670 = vld [vmem:[%s577 + $0x8] sm:$0xff]
        %673 = vrot.lane.b32.xlu0 %v669, 39
        %v674 = vpop.permute.xlu0 %673
        %675 = vrot.lane.b32.xlu0 %v670, 39
        %v676 = vpop.permute.xlu0 %675
        %vm679 = vcmask 384368
        %680 = vst.msk [vmem:[%s165] sm:$0xff] %vm679, %v674
        %681 = vst.msk [vmem:[%s165 + $0x8] sm:$0xff] %vm679, %v676
        %v682 = vld [vmem:[%s577] sm:$0xff]
        %v683 = vld [vmem:[%s577 + $0x8] sm:$0xff]
        %686 = vrot.lane.b32.xlu0 %v682, 40
        %v687 = vpop.permute.xlu0 %686
        %688 = vrot.lane.b32.xlu0 %v683, 40
        %v689 = vpop.permute.xlu0 %688
        %vm692 = vcmask 400768
        %693 = vst.msk [vmem:[%s165] sm:$0xff] %vm692, %v687
        %694 = vst.msk [vmem:[%s165 + $0x8] sm:$0xff] %vm692, %v689
        %v695 = vld [vmem:[%s577] sm:$0xff]
        %v696 = vld [vmem:[%s577 + $0x8] sm:$0xff]
        %699 = vrot.lane.b32.xlu0 %v695, 41
        %v700 = vpop.permute.xlu0 %699
        %701 = vrot.lane.b32.xlu0 %v696, 41
        %v702 = vpop.permute.xlu0 %701
        %vm705 = vcmask 417168
        %706 = vst.msk [vmem:[%s165] sm:$0xff] %vm705, %v700
        %707 = vst.msk [vmem:[%s165 + $0x8] sm:$0xff] %vm705, %v702
        %v708 = vld [vmem:[%s577] sm:$0xff]
        %v709 = vld [vmem:[%s577 + $0x8] sm:$0xff]
        %712 = vrot.lane.b32.xlu0 %v708, 42
        %v713 = vpop.permute.xlu0 %712
        %714 = vrot.lane.b32.xlu0 %v709, 42
        %v715 = vpop.permute.xlu0 %714
        %vm718 = vcmask 433568
        %719 = vst.msk [vmem:[%s165] sm:$0xff] %vm718, %v713
        %720 = vst.msk [vmem:[%s165 + $0x8] sm:$0xff] %vm718, %v715
        %v721 = vld [vmem:[%s577] sm:$0xff]
        %v722 = vld [vmem:[%s577 + $0x8] sm:$0xff]
        %725 = vrot.lane.b32.xlu0 %v721, 43
        %v726 = vpop.permute.xlu0 %725
        %727 = vrot.lane.b32.xlu0 %v722, 43
        %v728 = vpop.permute.xlu0 %727
        %vm731 = vcmask 449968
        %732 = vst.msk [vmem:[%s165] sm:$0xff] %vm731, %v726
        %733 = vst.msk [vmem:[%s165 + $0x8] sm:$0xff] %vm731, %v728
        %v734 = vld [vmem:[%s577] sm:$0xff]
        %v735 = vld [vmem:[%s577 + $0x8] sm:$0xff]
        %738 = vrot.lane.b32.xlu0 %v734, 44
        %v739 = vpop.permute.xlu0 %738
        %740 = vrot.lane.b32.xlu0 %v735, 44
        %v741 = vpop.permute.xlu0 %740
        %vm744 = vcmask 466368
        %745 = vst.msk [vmem:[%s165] sm:$0xff] %vm744, %v739
        %746 = vst.msk [vmem:[%s165 + $0x8] sm:$0xff] %vm744, %v741
        %v747 = vld [vmem:[%s577] sm:$0xff]
        %v748 = vld [vmem:[%s577 + $0x8] sm:$0xff]
        %751 = vrot.lane.b32.xlu0 %v747, 45
        %v752 = vpop.permute.xlu0 %751
        %753 = vrot.lane.b32.xlu0 %v748, 45
        %v754 = vpop.permute.xlu0 %753
        %vm757 = vcmask 482768
        %758 = vst.msk [vmem:[%s165] sm:$0xff] %vm757, %v752
        %759 = vst.msk [vmem:[%s165 + $0x8] sm:$0xff] %vm757, %v754
        %v760 = vld [vmem:[%s577] sm:$0xff]
        %v761 = vld [vmem:[%s577 + $0x8] sm:$0xff]
        %764 = vrot.lane.b32.xlu0 %v760, 46
        %v765 = vpop.permute.xlu0 %764
        %766 = vrot.lane.b32.xlu0 %v761, 46
        %v767 = vpop.permute.xlu0 %766
        %vm770 = vcmask 499168
        %771 = vst.msk [vmem:[%s165] sm:$0xff] %vm770, %v765
        %772 = vst.msk [vmem:[%s165 + $0x8] sm:$0xff] %vm770, %v767
        %v773 = vld [vmem:[%s577] sm:$0xff]
        %v774 = vld [vmem:[%s577 + $0x8] sm:$0xff]
        %777 = vrot.lane.b32.xlu0 %v773, 47
        %v778 = vpop.permute.xlu0 %777
        %779 = vrot.lane.b32.xlu0 %v774, 47
        %v780 = vpop.permute.xlu0 %779
        %vm783 = vcmask 515568
        %784 = vst.msk [vmem:[%s165] sm:$0xff] %vm783, %v778
        %785 = vst.msk [vmem:[%s165 + $0x8] sm:$0xff] %vm783, %v780
        %s786 = scalar_lea.vmem %s147, 48 [#allocation2]
        %v787 = vld [vmem:[%s786] sm:$0xff]
        %v788 = vld [vmem:[%s786 + $0x8] sm:$0xff]
        %791 = vrot.lane.b32.xlu0 %v787, 33
        %v792 = vpop.permute.xlu0 %791
        %793 = vrot.lane.b32.xlu0 %v788, 33
        %v794 = vpop.permute.xlu0 %793
        %vm797 = vcmask 277768
        %798 = vst.msk [vmem:[%s165] sm:$0xff] %vm797, %v792
        %799 = vst.msk [vmem:[%s165 + $0x8] sm:$0xff] %vm797, %v794
        %v800 = vld [vmem:[%s786] sm:$0xff]
        %v801 = vld [vmem:[%s786 + $0x8] sm:$0xff]
        %804 = vrot.lane.b32.xlu0 %v800, 34
        %v805 = vpop.permute.xlu0 %804
        %806 = vrot.lane.b32.xlu0 %v801, 34
        %v807 = vpop.permute.xlu0 %806
        %vm810 = vcmask 294168
        %811 = vst.msk [vmem:[%s165] sm:$0xff] %vm810, %v805
        %812 = vst.msk [vmem:[%s165 + $0x8] sm:$0xff] %vm810, %v807
        %v813 = vld [vmem:[%s786] sm:$0xff]
        %v814 = vld [vmem:[%s786 + $0x8] sm:$0xff]
        %817 = vrot.lane.b32.xlu0 %v813, 35
        %v818 = vpop.permute.xlu0 %817
        %819 = vrot.lane.b32.xlu0 %v814, 35
        %v820 = vpop.permute.xlu0 %819
        %vm823 = vcmask 310568
        %824 = vst.msk [vmem:[%s165] sm:$0xff] %vm823, %v818
        %825 = vst.msk [vmem:[%s165 + $0x8] sm:$0xff] %vm823, %v820
        %v826 = vld [vmem:[%s786] sm:$0xff]
        %v827 = vld [vmem:[%s786 + $0x8] sm:$0xff]
        %830 = vrot.lane.b32.xlu0 %v826, 36
        %v831 = vpop.permute.xlu0 %830
        %832 = vrot.lane.b32.xlu0 %v827, 36
        %v833 = vpop.permute.xlu0 %832
        %vm836 = vcmask 326968
        %837 = vst.msk [vmem:[%s165] sm:$0xff] %vm836, %v831
        %838 = vst.msk [vmem:[%s165 + $0x8] sm:$0xff] %vm836, %v833
        %v839 = vld [vmem:[%s786] sm:$0xff]
        %v840 = vld [vmem:[%s786 + $0x8] sm:$0xff]
        %843 = vrot.lane.b32.xlu0 %v839, 37
        %v844 = vpop.permute.xlu0 %843
        %845 = vrot.lane.b32.xlu0 %v840, 37
        %v846 = vpop.permute.xlu0 %845
        %vm849 = vcmask 343368
        %850 = vst.msk [vmem:[%s165] sm:$0xff] %vm849, %v844
        %851 = vst.msk [vmem:[%s165 + $0x8] sm:$0xff] %vm849, %v846
        %v852 = vld [vmem:[%s786] sm:$0xff]
        %v853 = vld [vmem:[%s786 + $0x8] sm:$0xff]
        %856 = vrot.lane.b32.xlu0 %v852, 38
        %v857 = vpop.permute.xlu0 %856
        %858 = vrot.lane.b32.xlu0 %v853, 38
        %v859 = vpop.permute.xlu0 %858
        %vm862 = vcmask 359768
        %863 = vst.msk [vmem:[%s165] sm:$0xff] %vm862, %v857
        %864 = vst.msk [vmem:[%s165 + $0x8] sm:$0xff] %vm862, %v859
        %v865 = vld [vmem:[%s786] sm:$0xff]
        %v866 = vld [vmem:[%s786 + $0x8] sm:$0xff]
        %869 = vrot.lane.b32.xlu0 %v865, 39
        %v870 = vpop.permute.xlu0 %869
        %871 = vrot.lane.b32.xlu0 %v866, 39
        %v872 = vpop.permute.xlu0 %871
        %vm875 = vcmask 376168
        %876 = vst.msk [vmem:[%s165] sm:$0xff] %vm875, %v870
        %877 = vst.msk [vmem:[%s165 + $0x8] sm:$0xff] %vm875, %v872
        %v878 = vld [vmem:[%s786] sm:$0xff]
        %v879 = vld [vmem:[%s786 + $0x8] sm:$0xff]
        %882 = vrot.lane.b32.xlu0 %v878, 40
        %v883 = vpop.permute.xlu0 %882
        %884 = vrot.lane.b32.xlu0 %v879, 40
        %v885 = vpop.permute.xlu0 %884
        %vm888 = vcmask 392568
        %889 = vst.msk [vmem:[%s165] sm:$0xff] %vm888, %v883
        %890 = vst.msk [vmem:[%s165 + $0x8] sm:$0xff] %vm888, %v885
        %v891 = vld [vmem:[%s786] sm:$0xff]
        %v892 = vld [vmem:[%s786 + $0x8] sm:$0xff]
        %895 = vrot.lane.b32.xlu0 %v891, 41
        %v896 = vpop.permute.xlu0 %895
        %897 = vrot.lane.b32.xlu0 %v892, 41
        %v898 = vpop.permute.xlu0 %897
        %vm901 = vcmask 408968
        %902 = vst.msk [vmem:[%s165] sm:$0xff] %vm901, %v896
        %903 = vst.msk [vmem:[%s165 + $0x8] sm:$0xff] %vm901, %v898
        %v904 = vld [vmem:[%s786] sm:$0xff]
        %v905 = vld [vmem:[%s786 + $0x8] sm:$0xff]
        %908 = vrot.lane.b32.xlu0 %v904, 42
        %v909 = vpop.permute.xlu0 %908
        %910 = vrot.lane.b32.xlu0 %v905, 42
        %v911 = vpop.permute.xlu0 %910
        %vm914 = vcmask 425368
        %915 = vst.msk [vmem:[%s165] sm:$0xff] %vm914, %v909
        %916 = vst.msk [vmem:[%s165 + $0x8] sm:$0xff] %vm914, %v911
        %v917 = vld [vmem:[%s786] sm:$0xff]
        %v918 = vld [vmem:[%s786 + $0x8] sm:$0xff]
        %921 = vrot.lane.b32.xlu0 %v917, 43
        %v922 = vpop.permute.xlu0 %921
        %923 = vrot.lane.b32.xlu0 %v918, 43
        %v924 = vpop.permute.xlu0 %923
        %vm927 = vcmask 441768
        %928 = vst.msk [vmem:[%s165] sm:$0xff] %vm927, %v922
        %929 = vst.msk [vmem:[%s165 + $0x8] sm:$0xff] %vm927, %v924
        %v930 = vld [vmem:[%s786] sm:$0xff]
        %v931 = vld [vmem:[%s786 + $0x8] sm:$0xff]
        %934 = vrot.lane.b32.xlu0 %v930, 44
        %v935 = vpop.permute.xlu0 %934
        %936 = vrot.lane.b32.xlu0 %v931, 44
        %v937 = vpop.permute.xlu0 %936
        %vm940 = vcmask 458168
        %941 = vst.msk [vmem:[%s165] sm:$0xff] %vm940, %v935
        %942 = vst.msk [vmem:[%s165 + $0x8] sm:$0xff] %vm940, %v937
        %v943 = vld [vmem:[%s786] sm:$0xff]
        %v944 = vld [vmem:[%s786 + $0x8] sm:$0xff]
        %947 = vrot.lane.b32.xlu0 %v943, 45
        %v948 = vpop.permute.xlu0 %947
        %949 = vrot.lane.b32.xlu0 %v944, 45
        %v950 = vpop.permute.xlu0 %949
        %vm953 = vcmask 474568
        %954 = vst.msk [vmem:[%s165] sm:$0xff] %vm953, %v948
        %955 = vst.msk [vmem:[%s165 + $0x8] sm:$0xff] %vm953, %v950
        %v956 = vld [vmem:[%s786] sm:$0xff]
        %v957 = vld [vmem:[%s786 + $0x8] sm:$0xff]
        %960 = vrot.lane.b32.xlu0 %v956, 46
        %v961 = vpop.permute.xlu0 %960
        %962 = vrot.lane.b32.xlu0 %v957, 46
        %v963 = vpop.permute.xlu0 %962
        %vm966 = vcmask 490968
        %967 = vst.msk [vmem:[%s165] sm:$0xff] %vm966, %v961
        %968 = vst.msk [vmem:[%s165 + $0x8] sm:$0xff] %vm966, %v963
        %v969 = vld [vmem:[%s786] sm:$0xff]
        %v970 = vld [vmem:[%s786 + $0x8] sm:$0xff]
        %973 = vrot.lane.b32.xlu0 %v969, 47
        %v974 = vpop.permute.xlu0 %973
        %975 = vrot.lane.b32.xlu0 %v970, 47
        %v976 = vpop.permute.xlu0 %975
        %vm979 = vcmask 507368
        %980 = vst.msk [vmem:[%s165] sm:$0xff] %vm979, %v974
        %981 = vst.msk [vmem:[%s165 + $0x8] sm:$0xff] %vm979, %v976
        %v982 = vld [vmem:[%s786] sm:$0xff]
        %v983 = vld [vmem:[%s786 + $0x8] sm:$0xff]
        %986 = vrot.lane.b32.xlu0 %v982, 48
        %v987 = vpop.permute.xlu0 %986
        %988 = vrot.lane.b32.xlu0 %v983, 48
        %v989 = vpop.permute.xlu0 %988
        %vm992 = vcmask 523768
        %993 = vst.msk [vmem:[%s165] sm:$0xff] %vm992, %v987
        %994 = vst.msk [vmem:[%s165 + $0x8] sm:$0xff] %vm992, %v989
        %s995 = sand.u32 %s79, 1
        %s996 = scalar_lea.sflag [#allocation4], %s995
        %s997 = sand.u32 %s79, 1
        %s998 = smul.addr %s997, 16
        %s999 = scalar_lea.vmem [#allocation5], %s998
        // Predicated region
        $region29: #{tpu_custom_call.1} parent=23 // pred_check
          %p1000 = pneg %p89
        $region30: #{tpu_custom_call.1} parent=23 // pred_check_branch
          %1002 = sbr.rel (%p1000) target = $region32
        $region31: #{tpu_custom_call.1} parent=23 // pred_region
          %s1003 = smul.u32 2, %s25
          %s1005 = ssub.s32 256, 256
          %1006 = vsyncadd %s996, %s1005
          %s1007 = smul.addr %s24, 2
          %s1008 = sadd.s32 %s1003, %s1007
          %s1009 = smul.addr %s23, 2
          %s1010 = sadd.s32 %s1008, %s1009
          %s1011 = smul.addr %s1010, 128
          %s1012 = scalar_lea.hbm %s1, %s1011
          %s1013 = sshll.u32 %s999, 4
          %s1014 = int_to_ptr.vmem [resolvable:$true] %s1013
          %1019 = dma.vmem_to_hbm [thread:$0]  %s1014, 256, %s1012, %s996, 128, 128, 8
        $region32: #{tpu_custom_call.1} parent=23 // pred_fallthru
          _
      $region24: #{tpu_custom_call.1} parent=5 // pred_fallthru
        _
      %p1020 = scmp.le.s32.totalorder 2, %s13
      // Predicated region
      $region33: #{tpu_custom_call.1} parent=5 // pred_check
        %p1021 = pneg %p1020
      $region34: #{tpu_custom_call.1} parent=5 // pred_check_branch
        %1023 = sbr.rel (%p1021) target = $region36
      $region35: #{tpu_custom_call.1} parent=5 // pred_region
        %s1024 = ssub.s32 %s13, 2
        // Predicated region
        $region37: #{tpu_custom_call.1} parent=35 // pred_check
          %p1025 = pneg %p95
        $region38: #{tpu_custom_call.1} parent=35 // pred_check_branch
          %1027 = sbr.rel (%p1025) target = $region40
        $region39: #{tpu_custom_call.1} parent=35 // pred_region
          %s1028 = sand.u32 %s80, 1
          %s1029 = scalar_lea.sflag [#allocation4], %s1028
          %s1030 = sand.u32 %s80, 1
          %s1031 = smul.addr %s1030, 16
          %s1032 = scalar_lea.vmem [#allocation5], %s1031
          %1033 = dma.done %s1029, 256
        $region40: #{tpu_custom_call.1} parent=35 // pred_fallthru
          _
      $region36: #{tpu_custom_call.1} parent=5 // pred_fallthru
        _
    $region6: #{tpu_custom_call.1} parent=1 // loop_footer
      %s17 = sadd.s32 1, %s13
    $region7: #{tpu_custom_call.1} parent=1 // loop_footer_branch
      %12 = sbr.rel target = $region3
    $region8: #{tpu_custom_call.1} parent=1 // loop_exit
      _
    %1034 = vsyncpa [#allocation3], 1
    %s1035 = scalar_lea.sflag [#allocation3], 1
    %1036 = vsyncpa %s1035, 1
    %1037 = vsyncpa [#allocation4], 1
    %s1038 = scalar_lea.sflag [#allocation4], 1
    %1039 = vsyncpa %s1038, 1

</llo_original>
